<compile_context>
chip_gen: v6e
topology: v6e:2x2x1
jax: 0.10.0
libtpu: 0.0.40
codegen_flags: <defaults>
</compile_context>

<pallas_src>
import math
from functools import partial

import jax
import jax.numpy as jnp
from jax import lax
from jax.experimental import pallas as pl
from jax.experimental.pallas import tpu as pltpu


# ----------------------------- helpers ------------------------------------
def _layernorm(x, w, b, eps=1e-5):
    mu = jnp.mean(x, axis=-1, keepdims=True)
    var = jnp.mean((x - mu) ** 2, axis=-1, keepdims=True)
    return (x - mu) * lax.rsqrt(var + eps) * w + b


def _gelu_exact(x):
    # torch.nn.functional.gelu default ('none' approximation): erf form
    return 0.5 * x * (1.0 + lax.erf(x * (1.0 / math.sqrt(2.0))))


def _mm(pattern, a, b):
    # bf16 MXU operands, f32 accumulation (VPU-side math stays f32).
    return jnp.einsum(pattern, a.astype(jnp.bfloat16), b.astype(jnp.bfloat16),
                      preferred_element_type=jnp.float32)


# ------------- kernel 1: embed + all encoder layers + final LN -------------
def layers_kernel(ids_ref, table_hbm, pe_ref, mask_ref,
                  wqkv_ref, bqkv_ref, wo_ref, bo_ref,
                  ln1w_ref, ln1b_ref, ln2w_ref, ln2b_ref,
                  w1_ref, b1_ref, w2_ref, b2_ref,
                  lnfw_ref, lnfb_ref,
                  out_ref, emb_buf, sems,
                  *, batch, seq_len, n_heads, is_causal):
    B, S = batch, seq_len
    l = pl.program_id(0)
    n_layers = pl.num_programs(0)

    # ---- layer 0 only: embedding gather (HBM table -> VMEM) + pos-enc ----
    @pl.when(l == 0)
    def _():
        copies = []
        for t in range(B * S):                       # overlapped row DMAs
            idx = ids_ref[t]                         # token id from SMEM
            cp = pltpu.make_async_copy(table_hbm.at[pl.ds(idx, 1)],
                                       emb_buf.at[pl.ds(t, 1)],
                                       sems.at[t])
            cp.start()
            copies.append(cp)
        for cp in copies:
            cp.wait()
        pe = pe_ref[...]                             # (S, D)
        for b in range(B):
            # padding_idx=0 honored because table row 0 is zero.
            out_ref[b] = emb_buf[b * S:(b + 1) * S, :] + pe

    D = pe_ref.shape[-1]
    H = n_heads
    dh = D // H
    scale = 1.0 / math.sqrt(dh)

    # Per-layer weights are already VMEM-resident; reused across the batch loop.
    wqkv = wqkv_ref[0]                 # (3D, D)  bf16
    bqkv = bqkv_ref[0]                 # (1, 3D)  f32
    wo = wo_ref[0]                     # (H, D, dh) bf16  (head-major out-proj)
    bo = bo_ref[0]                     # (1, D)
    ln1w, ln1b = ln1w_ref[0], ln1b_ref[0]
    ln2w, ln2b = ln2w_ref[0], ln2b_ref[0]
    w1, b1 = w1_ref[0], b1_ref[0]      # (F, D), (1, F)
    w2, b2 = w2_ref[0], b2_ref[0]      # (D, F), (1, D)

    x = out_ref[...]                   # (B, S, D) f32, VMEM-resident residual

    for b in range(B):                 # static unroll: weights reused from VMEM
        xb = x[b]                                              # (S, D)

        # --- self-attention block (norm_first: xb = xb + SA(LN1(xb))) ---
        h = _layernorm(xb, ln1w, ln1b)
        qkv = _mm('sd,ed->se', h, wqkv) + bqkv                 # (S, 3D)
        q2 = qkv[:, 0 * D:1 * D] * scale                       # scale q, not scores
        k2 = qkv[:, 1 * D:2 * D]
        v2 = qkv[:, 2 * D:3 * D]
        q = pltpu.einshape('shd->hsd', q2.reshape(S, H, dh))   # (H, S, dh)
        k = pltpu.einshape('shd->hsd', k2.reshape(S, H, dh))
        v = pltpu.einshape('shd->hsd', v2.reshape(S, H, dh))

        s = _mm('hqc,hkc->hqk', q, k)                          # (H, S, S) f32
        if is_causal:
            s = s + mask_ref[...][None]                        # precomputed additive mask
        m = jnp.max(s, axis=-1, keepdims=True)
        e = jnp.exp(s - m)
        p = e * pl.reciprocal(jnp.sum(e, axis=-1, keepdims=True), approx=True)
        attn = _mm('hqk,hkc->hqc', p, v)                       # (H, S, dh)
        # head-batched out-projection + sum over heads (no merge transpose)
        o = jnp.sum(_mm('hsc,hec->hse', attn, wo), axis=0)     # (S, D)
        xb = xb + o + bo

        # --- feed-forward block (xb = xb + FF(LN2(xb))) ---
        h2 = _layernorm(xb, ln2w, ln2b)
        f1 = _mm('sd,fd->sf', h2, w1) + b1                     # (S, F)
        f2 = _mm('sf,df->sd', _gelu_exact(f1), w2) + b2        # (S, D)
        out_ref[b] = xb + f2

    # ---- final LayerNorm of the stack, fused into the last layer step ----
    @pl.when(l == n_layers - 1)
    def _():
        out_ref[...] = _layernorm(out_ref[...], lnfw_ref[...], lnfb_ref[...])


# ------------ kernel 2: vocab projection, output already (B, V, S) ---------
def final_kernel(x_ref, wf_ref, bf_ref, out_ref, *, batch):
    x = x_ref[...]                     # (B, S, D) f32, already final-layernormed
    w = wf_ref[...]                    # (TV, D)  bf16
    bias = bf_ref[...]                 # (TV, 1)  f32 (broadcasts along S)
    for b in range(batch):
        # transpose folded into the output layout: logits block is (TV, S)
        out_ref[b] = _mm('vd,sd->vs', w, x[b]) + bias


# ------------------------------ wrapper -------------------------------------
def run_reference(src, params, *, n_heads, is_causal=True):
    """Forward pass of `Reference`; returns a 1-tuple of logits (B, V, S)."""
    B, S = src.shape
    table = params['embed']                  # (V, D) f32
    V, D = table.shape
    L = params['wqkv'].shape[0]
    F = params['w1'].shape[1]
    H = n_heads
    assert D % H == 0
    dh = D // H

    pe = params['pe'][:S]                    # (S, D)
    ids = src.reshape(-1).astype(jnp.int32)  # flattened token ids for SMEM prefetch

    # Additive causal mask precomputed once (no per-layer iota rebuild).
    if is_causal:
        row = jnp.arange(S)[:, None]
        col = jnp.arange(S)[None, :]
        mask = jnp.where(row >= col, 0.0, -1e30).astype(jnp.float32)
    else:
        mask = jnp.zeros((S, S), jnp.float32)

    # Head-major out-projection weights (host-side, one-time layout plumbing).
    wo_h = params['wo'].reshape(L, D, H, dh).transpose(0, 2, 1, 3)  # (L, H, D, dh)

    def fixed(shape):
        return pl.BlockSpec(shape, lambda l, ids, n=len(shape): (0,) * n)

    def per_layer(shape):   # shape excludes the leading layer dim
        return pl.BlockSpec((1,) + shape,
                            lambda l, ids, n=len(shape): (l,) + (0,) * n)

    # ---- 1. fused: embedding gather + pos-enc + L encoder layers + final LN ----
    # NOTE: vmem_limit should be re-swept per generation (<=64 MiB on v7x,
    # ~96-100 MiB on v5e/v6e); tiny at these demo shapes either way.
    x = pl.pallas_call(
        partial(layers_kernel, batch=B, seq_len=S, n_heads=H, is_causal=is_causal),
        out_shape=jax.ShapeDtypeStruct((B, S, D), jnp.float32),
        grid_spec=pltpu.PrefetchScalarGridSpec(
            num_scalar_prefetch=1,
            grid=(L,),
            in_specs=[
                pl.BlockSpec(memory_space=pl.ANY),     # embedding table stays in HBM
                fixed((S, D)),                         # pos-enc
                fixed((S, S)),                         # causal additive mask
                per_layer((3 * D, D)),                 # wqkv
                per_layer((1, 3 * D)),                 # bqkv
                per_layer((H, D, dh)),                 # wo (head-major)
                per_layer((1, D)),                     # bo
                per_layer((1, D)), per_layer((1, D)),  # ln1 w/b
                per_layer((1, D)), per_layer((1, D)),  # ln2 w/b
                per_layer((F, D)),                     # w1
                per_layer((1, F)),                     # b1
                per_layer((D, F)),                     # w2
                per_layer((1, D)),                     # b2
                fixed((1, D)), fixed((1, D)),          # final LN w/b
            ],
            out_specs=pl.BlockSpec((B, S, D), lambda l, ids: (0, 0, 0)),
            scratch_shapes=[pltpu.VMEM((B * S, D), jnp.float32),
                            pltpu.SemaphoreType.DMA((B * S,))]),
        compiler_params=pltpu.CompilerParams(
            dimension_semantics=("arbitrary",),
            vmem_limit_bytes=64 * 1024 * 1024),
    )(ids, table, pe, mask,
      params['wqkv'], params['bqkv'], wo_h, params['bo'],
      params['ln1w'], params['ln1b'], params['ln2w'], params['ln2b'],
      params['w1'], params['b1'], params['w2'], params['b2'],
      params['lnfw'], params['lnfb'])
    # dropout(p) -> identity (eval)

    # ---- 2. vocab projection: grid over vocab tiles only, wf fetched once ----
    if V <= 512:
        Vp = ((V + 7) // 8) * 8          # sublane-aligned single tile
        TV = Vp
    else:
        Vp = ((V + 511) // 512) * 512    # pad to a 512 tile grain (e.g. 50257->50688)
        TV = 512
    wf, bf = params['wf'], params['bf']
    if Vp != V:
        wf = jnp.pad(wf, ((0, Vp - V), (0, 0)))
        bf = jnp.pad(bf, ((0, Vp - V), (0, 0)))

    logits = pl.pallas_call(
        partial(final_kernel, batch=B),
        out_shape=jax.ShapeDtypeStruct((B, Vp, S), jnp.float32),
        grid=(Vp // TV,),
        in_specs=[
            pl.BlockSpec((B, S, D), lambda v: (0, 0, 0)),   # whole batch resident
            pl.BlockSpec((TV, D), lambda v: (v, 0)),        # each wf tile fetched once
            pl.BlockSpec((TV, 1), lambda v: (v, 0)),
        ],
        out_specs=pl.BlockSpec((B, TV, S), lambda v: (0, v, 0)),
        compiler_params=pltpu.CompilerParams(
            dimension_semantics=("parallel",),
            vmem_limit_bytes=64 * 1024 * 1024),
    )(x, wf, bf)
    if Vp != V:
        logits = logits[:, :V, :]

    return (logits,)


# ------------------------- parameter construction ---------------------------
def make_sinusoidal_pe(max_len, d_model):
    pos = jnp.arange(max_len, dtype=jnp.float32)[:, None]
    i = jnp.arange(0, d_model, 2, dtype=jnp.float32)
    div = jnp.exp(-math.log(10000.0) * i / d_model)
    pe = jnp.zeros((max_len, d_model), jnp.float32)
    pe = pe.at[:, 0::2].set(jnp.sin(pos * div))
    pe = pe.at[:, 1::2].set(jnp.cos(pos * div))
    return pe


def init_params(key, *, vocab, mod_dim, n_heads, n_layers, ff_factor, max_len):
    D, V, L = mod_dim, vocab, n_layers
    F = ff_factor * mod_dim
    ks = jax.random.split(key, 12)

    def w(k, shape, scale=0.05, dtype=jnp.float32):
        return (scale * jax.random.normal(k, shape)).astype(dtype)

    return {
        'embed': w(ks[0], (V, D), 0.5).at[0].set(0.0),   # padding_idx=0 row zeroed
        'pe': make_sinusoidal_pe(max_len, D),
        # per-layer weights stacked on a leading layer axis; matmul weights bf16
        'wqkv': w(ks[1], (L, 3 * D, D), dtype=jnp.bfloat16),  # in_proj_weight (3D, D)
        'bqkv': w(ks[2], (L, 1, 3 * D)),
        'wo': w(ks[3], (L, D, D), dtype=jnp.bfloat16),        # out_proj (D, D)
        'bo': w(ks[4], (L, 1, D)),
        'ln1w': jnp.ones((L, 1, D), jnp.float32),
        'ln1b': jnp.zeros((L, 1, D), jnp.float32),
        'ln2w': jnp.ones((L, 1, D), jnp.float32),
        'ln2b': jnp.zeros((L, 1, D), jnp.float32),
        'w1': w(ks[5], (L, F, D), dtype=jnp.bfloat16),        # linear1 (F, D)
        'b1': w(ks[6], (L, 1, F)),
        'w2': w(ks[7], (L, D, F), dtype=jnp.bfloat16),        # linear2 (D, F)
        'b2': w(ks[8], (L, 1, D)),
        # final norm (norm_first=True) + finalize Linear (weight is (out, in))
        'lnfw': jnp.ones((1, D), jnp.float32),
        'lnfb': jnp.zeros((1, D), jnp.float32),
        'wf': w(ks[9], (V, D), dtype=jnp.bfloat16),
        'bf': w(ks[10], (V, 1)),
    }


# --------------------------------- main -------------------------------------
if __name__ == "__main__":
    MOD_DIM = 32
    VOCAB = 32
    N_HEADS = 4
    N_LAYERS = 2
    FF_FACTOR = 4
    B, S = 2, 8

    key = jax.random.PRNGKey(0)
    k_par, k_src = jax.random.split(key)
    params = init_params(k_par, vocab=VOCAB, mod_dim=MOD_DIM, n_heads=N_HEADS,
                         n_layers=N_LAYERS, ff_factor=FF_FACTOR, max_len=64)
    src = jax.random.randint(k_src, (B, S), 0, VOCAB, dtype=jnp.int32)

    (logits,) = run_reference(src, params, n_heads=N_HEADS, is_causal=True)
    logits = jax.block_until_ready(logits)

    assert logits.shape == (B, VOCAB, S), logits.shape
    assert bool(jnp.all(jnp.isfinite(logits)))
    print("KERNEL_OK")
</pallas_src>

<mosaic_0001>
module attributes {stable_mosaic.version = 11 : i64} {
  func.func @layers_kernel(%arg0: i32, %arg1: memref<16xi32, #tpu.memory_space<smem>>, %arg2: memref<32x32xf32, #tpu.memory_space<any>>, %arg3: memref<8x32xf32, #tpu.memory_space<vmem>>, %arg4: memref<8x8xf32, #tpu.memory_space<vmem>>, %arg5: memref<1x96x32xbf16, #tpu.memory_space<vmem>>, %arg6: memref<1x1x96xf32, #tpu.memory_space<vmem>>, %arg7: memref<1x4x32x8xbf16, #tpu.memory_space<vmem>>, %arg8: memref<1x1x32xf32, #tpu.memory_space<vmem>>, %arg9: memref<1x1x32xf32, #tpu.memory_space<vmem>>, %arg10: memref<1x1x32xf32, #tpu.memory_space<vmem>>, %arg11: memref<1x1x32xf32, #tpu.memory_space<vmem>>, %arg12: memref<1x1x32xf32, #tpu.memory_space<vmem>>, %arg13: memref<1x128x32xbf16, #tpu.memory_space<vmem>>, %arg14: memref<1x1x128xf32, #tpu.memory_space<vmem>>, %arg15: memref<1x32x128xbf16, #tpu.memory_space<vmem>>, %arg16: memref<1x1x32xf32, #tpu.memory_space<vmem>>, %arg17: memref<1x32xf32, #tpu.memory_space<vmem>>, %arg18: memref<1x32xf32, #tpu.memory_space<vmem>>, %arg19: memref<2x8x32xf32, #tpu.memory_space<vmem>>, %arg20: memref<16x32xf32, #tpu.memory_space<vmem>>, %arg21: memref<16x!tpu.dma_semaphore, #tpu.memory_space<semaphore_mem>>) attributes {dimension_semantics = [#tpu.dimension_semantics<arbitrary>], iteration_bounds = array<i64: 2>, scalar_prefetch = 1 : i64, scratch_operands = 2 : i64, tpu.core_type = #tpu.core_type<tc>, window_params = [{}, {pipeline_mode = #tpu.pipeline_mode<synchronous>, transform_indices = @transform_1, window_bounds = array<i64: 8, 32>}, {pipeline_mode = #tpu.pipeline_mode<synchronous>, transform_indices = @transform_2, window_bounds = array<i64: 8, 8>}, {transform_indices = @transform_3, window_bounds = array<i64: 1, 96, 32>}, {transform_indices = @transform_4, window_bounds = array<i64: 1, 1, 96>}, {transform_indices = @transform_5, window_bounds = array<i64: 1, 4, 32, 8>}, {transform_indices = @transform_6, window_bounds = array<i64: 1, 1, 32>}, {transform_indices = @transform_7, window_bounds = array<i64: 1, 1, 32>}, {transform_indices = @transform_8, window_bounds = array<i64: 1, 1, 32>}, {transform_indices = @transform_9, window_bounds = array<i64: 1, 1, 32>}, {transform_indices = @transform_10, window_bounds = array<i64: 1, 1, 32>}, {transform_indices = @transform_11, window_bounds = array<i64: 1, 128, 32>}, {transform_indices = @transform_12, window_bounds = array<i64: 1, 1, 128>}, {transform_indices = @transform_13, window_bounds = array<i64: 1, 32, 128>}, {transform_indices = @transform_14, window_bounds = array<i64: 1, 1, 32>}, {pipeline_mode = #tpu.pipeline_mode<synchronous>, transform_indices = @transform_15, window_bounds = array<i64: 1, 32>}, {pipeline_mode = #tpu.pipeline_mode<synchronous>, transform_indices = @transform_16, window_bounds = array<i64: 1, 32>}, {pipeline_mode = #tpu.pipeline_mode<synchronous>, transform_indices = @transform_17, window_bounds = array<i64: 2, 8, 32>}]} {
    %c0_i32 = arith.constant 0 : i32
    %0 = arith.cmpi eq, %arg0, %c0_i32 : i32
    %1 = arith.extui %0 : i1 to i32
    %c0_i32_0 = arith.constant 0 : i32
    %2 = arith.cmpi ne, %1, %c0_i32_0 : i32
    scf.if %2 {
      %c0_95 = arith.constant 0 : index
      %245 = memref.load %arg1[%c0_95] : memref<16xi32, #tpu.memory_space<smem>>
      %c0_i32_96 = arith.constant 0 : i32
      %c0_i32_97 = arith.constant 0 : i32
      %246 = tpu.memref_slice %arg2[%245, %c0_i32_97] : memref<32x32xf32, #tpu.memory_space<any>> -> memref<1x32xf32, #tpu.memory_space<any>>
      %c0_i32_98 = arith.constant 0 : i32
      %c0_i32_99 = arith.constant 0 : i32
      %247 = tpu.memref_slice %arg20[%c0_i32_98, %c0_i32_99] : memref<16x32xf32, #tpu.memory_space<vmem>> -> memref<1x32xf32, #tpu.memory_space<vmem>>
      %248 = tpu.memref_slice %arg21[%c0_i32_96] : memref<16x!tpu.dma_semaphore, #tpu.memory_space<semaphore_mem>> -> memref<1x!tpu.dma_semaphore, #tpu.memory_space<semaphore_mem>>
      %249 = tpu.memref_squeeze %248 : memref<1x!tpu.dma_semaphore, #tpu.memory_space<semaphore_mem>> -> memref<!tpu.dma_semaphore, #tpu.memory_space<semaphore_mem>>
      tpu.enqueue_dma source(%246 : memref<1x32xf32, #tpu.memory_space<any>>) target(%247 : memref<1x32xf32, #tpu.memory_space<vmem>>) target_semaphore(%249 : memref<!tpu.dma_semaphore, #tpu.memory_space<semaphore_mem>>)
      %c1_100 = arith.constant 1 : index
      %250 = memref.load %arg1[%c1_100] : memref<16xi32, #tpu.memory_space<smem>>
      %c1_i32_101 = arith.constant 1 : i32
      %c0_i32_102 = arith.constant 0 : i32
      %251 = tpu.memref_slice %arg2[%250, %c0_i32_102] : memref<32x32xf32, #tpu.memory_space<any>> -> memref<1x32xf32, #tpu.memory_space<any>>
      %c1_i32_103 = arith.constant 1 : i32
      %c0_i32_104 = arith.constant 0 : i32
      %252 = tpu.memref_slice %arg20[%c1_i32_103, %c0_i32_104] : memref<16x32xf32, #tpu.memory_space<vmem>> -> memref<1x32xf32, #tpu.memory_space<vmem>>
      %253 = tpu.memref_slice %arg21[%c1_i32_101] : memref<16x!tpu.dma_semaphore, #tpu.memory_space<semaphore_mem>> -> memref<1x!tpu.dma_semaphore, #tpu.memory_space<semaphore_mem>>
      %254 = tpu.memref_squeeze %253 : memref<1x!tpu.dma_semaphore, #tpu.memory_space<semaphore_mem>> -> memref<!tpu.dma_semaphore, #tpu.memory_space<semaphore_mem>>
      tpu.enqueue_dma source(%251 : memref<1x32xf32, #tpu.memory_space<any>>) target(%252 : memref<1x32xf32, #tpu.memory_space<vmem>>) target_semaphore(%254 : memref<!tpu.dma_semaphore, #tpu.memory_space<semaphore_mem>>)
      %c2 = arith.constant 2 : index
      %255 = memref.load %arg1[%c2] : memref<16xi32, #tpu.memory_space<smem>>
      %c2_i32 = arith.constant 2 : i32
      %c0_i32_105 = arith.constant 0 : i32
      %256 = tpu.memref_slice %arg2[%255, %c0_i32_105] : memref<32x32xf32, #tpu.memory_space<any>> -> memref<1x32xf32, #tpu.memory_space<any>>
      %c2_i32_106 = arith.constant 2 : i32
      %c0_i32_107 = arith.constant 0 : i32
      %257 = tpu.memref_slice %arg20[%c2_i32_106, %c0_i32_107] : memref<16x32xf32, #tpu.memory_space<vmem>> -> memref<1x32xf32, #tpu.memory_space<vmem>>
      %258 = tpu.memref_slice %arg21[%c2_i32] : memref<16x!tpu.dma_semaphore, #tpu.memory_space<semaphore_mem>> -> memref<1x!tpu.dma_semaphore, #tpu.memory_space<semaphore_mem>>
      %259 = tpu.memref_squeeze %258 : memref<1x!tpu.dma_semaphore, #tpu.memory_space<semaphore_mem>> -> memref<!tpu.dma_semaphore, #tpu.memory_space<semaphore_mem>>
      tpu.enqueue_dma source(%256 : memref<1x32xf32, #tpu.memory_space<any>>) target(%257 : memref<1x32xf32, #tpu.memory_space<vmem>>) target_semaphore(%259 : memref<!tpu.dma_semaphore, #tpu.memory_space<semaphore_mem>>)
      %c3 = arith.constant 3 : index
      %260 = memref.load %arg1[%c3] : memref<16xi32, #tpu.memory_space<smem>>
      %c3_i32 = arith.constant 3 : i32
      %c0_i32_108 = arith.constant 0 : i32
      %261 = tpu.memref_slice %arg2[%260, %c0_i32_108] : memref<32x32xf32, #tpu.memory_space<any>> -> memref<1x32xf32, #tpu.memory_space<any>>
      %c3_i32_109 = arith.constant 3 : i32
      %c0_i32_110 = arith.constant 0 : i32
      %262 = tpu.memref_slice %arg20[%c3_i32_109, %c0_i32_110] : memref<16x32xf32, #tpu.memory_space<vmem>> -> memref<1x32xf32, #tpu.memory_space<vmem>>
      %263 = tpu.memref_slice %arg21[%c3_i32] : memref<16x!tpu.dma_semaphore, #tpu.memory_space<semaphore_mem>> -> memref<1x!tpu.dma_semaphore, #tpu.memory_space<semaphore_mem>>
      %264 = tpu.memref_squeeze %263 : memref<1x!tpu.dma_semaphore, #tpu.memory_space<semaphore_mem>> -> memref<!tpu.dma_semaphore, #tpu.memory_space<semaphore_mem>>
      tpu.enqueue_dma source(%261 : memref<1x32xf32, #tpu.memory_space<any>>) target(%262 : memref<1x32xf32, #tpu.memory_space<vmem>>) target_semaphore(%264 : memref<!tpu.dma_semaphore, #tpu.memory_space<semaphore_mem>>)
      %c4 = arith.constant 4 : index
      %265 = memref.load %arg1[%c4] : memref<16xi32, #tpu.memory_space<smem>>
      %c4_i32 = arith.constant 4 : i32
      %c0_i32_111 = arith.constant 0 : i32
      %266 = tpu.memref_slice %arg2[%265, %c0_i32_111] : memref<32x32xf32, #tpu.memory_space<any>> -> memref<1x32xf32, #tpu.memory_space<any>>
      %c4_i32_112 = arith.constant 4 : i32
      %c0_i32_113 = arith.constant 0 : i32
      %267 = tpu.memref_slice %arg20[%c4_i32_112, %c0_i32_113] : memref<16x32xf32, #tpu.memory_space<vmem>> -> memref<1x32xf32, #tpu.memory_space<vmem>>
      %268 = tpu.memref_slice %arg21[%c4_i32] : memref<16x!tpu.dma_semaphore, #tpu.memory_space<semaphore_mem>> -> memref<1x!tpu.dma_semaphore, #tpu.memory_space<semaphore_mem>>
      %269 = tpu.memref_squeeze %268 : memref<1x!tpu.dma_semaphore, #tpu.memory_space<semaphore_mem>> -> memref<!tpu.dma_semaphore, #tpu.memory_space<semaphore_mem>>
      tpu.enqueue_dma source(%266 : memref<1x32xf32, #tpu.memory_space<any>>) target(%267 : memref<1x32xf32, #tpu.memory_space<vmem>>) target_semaphore(%269 : memref<!tpu.dma_semaphore, #tpu.memory_space<semaphore_mem>>)
      %c5 = arith.constant 5 : index
      %270 = memref.load %arg1[%c5] : memref<16xi32, #tpu.memory_space<smem>>
      %c5_i32 = arith.constant 5 : i32
      %c0_i32_114 = arith.constant 0 : i32
      %271 = tpu.memref_slice %arg2[%270, %c0_i32_114] : memref<32x32xf32, #tpu.memory_space<any>> -> memref<1x32xf32, #tpu.memory_space<any>>
      %c5_i32_115 = arith.constant 5 : i32
      %c0_i32_116 = arith.constant 0 : i32
      %272 = tpu.memref_slice %arg20[%c5_i32_115, %c0_i32_116] : memref<16x32xf32, #tpu.memory_space<vmem>> -> memref<1x32xf32, #tpu.memory_space<vmem>>
      %273 = tpu.memref_slice %arg21[%c5_i32] : memref<16x!tpu.dma_semaphore, #tpu.memory_space<semaphore_mem>> -> memref<1x!tpu.dma_semaphore, #tpu.memory_space<semaphore_mem>>
      %274 = tpu.memref_squeeze %273 : memref<1x!tpu.dma_semaphore, #tpu.memory_space<semaphore_mem>> -> memref<!tpu.dma_semaphore, #tpu.memory_space<semaphore_mem>>
      tpu.enqueue_dma source(%271 : memref<1x32xf32, #tpu.memory_space<any>>) target(%272 : memref<1x32xf32, #tpu.memory_space<vmem>>) target_semaphore(%274 : memref<!tpu.dma_semaphore, #tpu.memory_space<semaphore_mem>>)
      %c6 = arith.constant 6 : index
      %275 = memref.load %arg1[%c6] : memref<16xi32, #tpu.memory_space<smem>>
      %c6_i32 = arith.constant 6 : i32
      %c0_i32_117 = arith.constant 0 : i32
      %276 = tpu.memref_slice %arg2[%275, %c0_i32_117] : memref<32x32xf32, #tpu.memory_space<any>> -> memref<1x32xf32, #tpu.memory_space<any>>
      %c6_i32_118 = arith.constant 6 : i32
      %c0_i32_119 = arith.constant 0 : i32
      %277 = tpu.memref_slice %arg20[%c6_i32_118, %c0_i32_119] : memref<16x32xf32, #tpu.memory_space<vmem>> -> memref<1x32xf32, #tpu.memory_space<vmem>>
      %278 = tpu.memref_slice %arg21[%c6_i32] : memref<16x!tpu.dma_semaphore, #tpu.memory_space<semaphore_mem>> -> memref<1x!tpu.dma_semaphore, #tpu.memory_space<semaphore_mem>>
      %279 = tpu.memref_squeeze %278 : memref<1x!tpu.dma_semaphore, #tpu.memory_space<semaphore_mem>> -> memref<!tpu.dma_semaphore, #tpu.memory_space<semaphore_mem>>
      tpu.enqueue_dma source(%276 : memref<1x32xf32, #tpu.memory_space<any>>) target(%277 : memref<1x32xf32, #tpu.memory_space<vmem>>) target_semaphore(%279 : memref<!tpu.dma_semaphore, #tpu.memory_space<semaphore_mem>>)
      %c7 = arith.constant 7 : index
      %280 = memref.load %arg1[%c7] : memref<16xi32, #tpu.memory_space<smem>>
      %c7_i32 = arith.constant 7 : i32
      %c0_i32_120 = arith.constant 0 : i32
      %281 = tpu.memref_slice %arg2[%280, %c0_i32_120] : memref<32x32xf32, #tpu.memory_space<any>> -> memref<1x32xf32, #tpu.memory_space<any>>
      %c7_i32_121 = arith.constant 7 : i32
      %c0_i32_122 = arith.constant 0 : i32
      %282 = tpu.memref_slice %arg20[%c7_i32_121, %c0_i32_122] : memref<16x32xf32, #tpu.memory_space<vmem>> -> memref<1x32xf32, #tpu.memory_space<vmem>>
      %283 = tpu.memref_slice %arg21[%c7_i32] : memref<16x!tpu.dma_semaphore, #tpu.memory_space<semaphore_mem>> -> memref<1x!tpu.dma_semaphore, #tpu.memory_space<semaphore_mem>>
      %284 = tpu.memref_squeeze %283 : memref<1x!tpu.dma_semaphore, #tpu.memory_space<semaphore_mem>> -> memref<!tpu.dma_semaphore, #tpu.memory_space<semaphore_mem>>
      tpu.enqueue_dma source(%281 : memref<1x32xf32, #tpu.memory_space<any>>) target(%282 : memref<1x32xf32, #tpu.memory_space<vmem>>) target_semaphore(%284 : memref<!tpu.dma_semaphore, #tpu.memory_space<semaphore_mem>>)
      %c8 = arith.constant 8 : index
      %285 = memref.load %arg1[%c8] : memref<16xi32, #tpu.memory_space<smem>>
      %c8_i32 = arith.constant 8 : i32
      %c0_i32_123 = arith.constant 0 : i32
      %286 = tpu.memref_slice %arg2[%285, %c0_i32_123] : memref<32x32xf32, #tpu.memory_space<any>> -> memref<1x32xf32, #tpu.memory_space<any>>
      %c8_i32_124 = arith.constant 8 : i32
      %c0_i32_125 = arith.constant 0 : i32
      %287 = tpu.memref_slice %arg20[%c8_i32_124, %c0_i32_125] : memref<16x32xf32, #tpu.memory_space<vmem>> -> memref<1x32xf32, #tpu.memory_space<vmem>>
      %288 = tpu.memref_slice %arg21[%c8_i32] : memref<16x!tpu.dma_semaphore, #tpu.memory_space<semaphore_mem>> -> memref<1x!tpu.dma_semaphore, #tpu.memory_space<semaphore_mem>>
      %289 = tpu.memref_squeeze %288 : memref<1x!tpu.dma_semaphore, #tpu.memory_space<semaphore_mem>> -> memref<!tpu.dma_semaphore, #tpu.memory_space<semaphore_mem>>
      tpu.enqueue_dma source(%286 : memref<1x32xf32, #tpu.memory_space<any>>) target(%287 : memref<1x32xf32, #tpu.memory_space<vmem>>) target_semaphore(%289 : memref<!tpu.dma_semaphore, #tpu.memory_space<semaphore_mem>>)
      %c9 = arith.constant 9 : index
      %290 = memref.load %arg1[%c9] : memref<16xi32, #tpu.memory_space<smem>>
      %c9_i32 = arith.constant 9 : i32
      %c0_i32_126 = arith.constant 0 : i32
      %291 = tpu.memref_slice %arg2[%290, %c0_i32_126] : memref<32x32xf32, #tpu.memory_space<any>> -> memref<1x32xf32, #tpu.memory_space<any>>
      %c9_i32_127 = arith.constant 9 : i32
      %c0_i32_128 = arith.constant 0 : i32
      %292 = tpu.memref_slice %arg20[%c9_i32_127, %c0_i32_128] : memref<16x32xf32, #tpu.memory_space<vmem>> -> memref<1x32xf32, #tpu.memory_space<vmem>>
      %293 = tpu.memref_slice %arg21[%c9_i32] : memref<16x!tpu.dma_semaphore, #tpu.memory_space<semaphore_mem>> -> memref<1x!tpu.dma_semaphore, #tpu.memory_space<semaphore_mem>>
      %294 = tpu.memref_squeeze %293 : memref<1x!tpu.dma_semaphore, #tpu.memory_space<semaphore_mem>> -> memref<!tpu.dma_semaphore, #tpu.memory_space<semaphore_mem>>
      tpu.enqueue_dma source(%291 : memref<1x32xf32, #tpu.memory_space<any>>) target(%292 : memref<1x32xf32, #tpu.memory_space<vmem>>) target_semaphore(%294 : memref<!tpu.dma_semaphore, #tpu.memory_space<semaphore_mem>>)
      %c10 = arith.constant 10 : index
      %295 = memref.load %arg1[%c10] : memref<16xi32, #tpu.memory_space<smem>>
      %c10_i32 = arith.constant 10 : i32
      %c0_i32_129 = arith.constant 0 : i32
      %296 = tpu.memref_slice %arg2[%295, %c0_i32_129] : memref<32x32xf32, #tpu.memory_space<any>> -> memref<1x32xf32, #tpu.memory_space<any>>
      %c10_i32_130 = arith.constant 10 : i32
      %c0_i32_131 = arith.constant 0 : i32
      %297 = tpu.memref_slice %arg20[%c10_i32_130, %c0_i32_131] : memref<16x32xf32, #tpu.memory_space<vmem>> -> memref<1x32xf32, #tpu.memory_space<vmem>>
      %298 = tpu.memref_slice %arg21[%c10_i32] : memref<16x!tpu.dma_semaphore, #tpu.memory_space<semaphore_mem>> -> memref<1x!tpu.dma_semaphore, #tpu.memory_space<semaphore_mem>>
      %299 = tpu.memref_squeeze %298 : memref<1x!tpu.dma_semaphore, #tpu.memory_space<semaphore_mem>> -> memref<!tpu.dma_semaphore, #tpu.memory_space<semaphore_mem>>
      tpu.enqueue_dma source(%296 : memref<1x32xf32, #tpu.memory_space<any>>) target(%297 : memref<1x32xf32, #tpu.memory_space<vmem>>) target_semaphore(%299 : memref<!tpu.dma_semaphore, #tpu.memory_space<semaphore_mem>>)
      %c11 = arith.constant 11 : index
      %300 = memref.load %arg1[%c11] : memref<16xi32, #tpu.memory_space<smem>>
      %c11_i32 = arith.constant 11 : i32
      %c0_i32_132 = arith.constant 0 : i32
      %301 = tpu.memref_slice %arg2[%300, %c0_i32_132] : memref<32x32xf32, #tpu.memory_space<any>> -> memref<1x32xf32, #tpu.memory_space<any>>
      %c11_i32_133 = arith.constant 11 : i32
      %c0_i32_134 = arith.constant 0 : i32
      %302 = tpu.memref_slice %arg20[%c11_i32_133, %c0_i32_134] : memref<16x32xf32, #tpu.memory_space<vmem>> -> memref<1x32xf32, #tpu.memory_space<vmem>>
      %303 = tpu.memref_slice %arg21[%c11_i32] : memref<16x!tpu.dma_semaphore, #tpu.memory_space<semaphore_mem>> -> memref<1x!tpu.dma_semaphore, #tpu.memory_space<semaphore_mem>>
      %304 = tpu.memref_squeeze %303 : memref<1x!tpu.dma_semaphore, #tpu.memory_space<semaphore_mem>> -> memref<!tpu.dma_semaphore, #tpu.memory_space<semaphore_mem>>
      tpu.enqueue_dma source(%301 : memref<1x32xf32, #tpu.memory_space<any>>) target(%302 : memref<1x32xf32, #tpu.memory_space<vmem>>) target_semaphore(%304 : memref<!tpu.dma_semaphore, #tpu.memory_space<semaphore_mem>>)
      %c12 = arith.constant 12 : index
      %305 = memref.load %arg1[%c12] : memref<16xi32, #tpu.memory_space<smem>>
      %c12_i32 = arith.constant 12 : i32
      %c0_i32_135 = arith.constant 0 : i32
      %306 = tpu.memref_slice %arg2[%305, %c0_i32_135] : memref<32x32xf32, #tpu.memory_space<any>> -> memref<1x32xf32, #tpu.memory_space<any>>
      %c12_i32_136 = arith.constant 12 : i32
      %c0_i32_137 = arith.constant 0 : i32
      %307 = tpu.memref_slice %arg20[%c12_i32_136, %c0_i32_137] : memref<16x32xf32, #tpu.memory_space<vmem>> -> memref<1x32xf32, #tpu.memory_space<vmem>>
      %308 = tpu.memref_slice %arg21[%c12_i32] : memref<16x!tpu.dma_semaphore, #tpu.memory_space<semaphore_mem>> -> memref<1x!tpu.dma_semaphore, #tpu.memory_space<semaphore_mem>>
      %309 = tpu.memref_squeeze %308 : memref<1x!tpu.dma_semaphore, #tpu.memory_space<semaphore_mem>> -> memref<!tpu.dma_semaphore, #tpu.memory_space<semaphore_mem>>
      tpu.enqueue_dma source(%306 : memref<1x32xf32, #tpu.memory_space<any>>) target(%307 : memref<1x32xf32, #tpu.memory_space<vmem>>) target_semaphore(%309 : memref<!tpu.dma_semaphore, #tpu.memory_space<semaphore_mem>>)
      %c13 = arith.constant 13 : index
      %310 = memref.load %arg1[%c13] : memref<16xi32, #tpu.memory_space<smem>>
      %c13_i32 = arith.constant 13 : i32
      %c0_i32_138 = arith.constant 0 : i32
      %311 = tpu.memref_slice %arg2[%310, %c0_i32_138] : memref<32x32xf32, #tpu.memory_space<any>> -> memref<1x32xf32, #tpu.memory_space<any>>
      %c13_i32_139 = arith.constant 13 : i32
      %c0_i32_140 = arith.constant 0 : i32
      %312 = tpu.memref_slice %arg20[%c13_i32_139, %c0_i32_140] : memref<16x32xf32, #tpu.memory_space<vmem>> -> memref<1x32xf32, #tpu.memory_space<vmem>>
      %313 = tpu.memref_slice %arg21[%c13_i32] : memref<16x!tpu.dma_semaphore, #tpu.memory_space<semaphore_mem>> -> memref<1x!tpu.dma_semaphore, #tpu.memory_space<semaphore_mem>>
      %314 = tpu.memref_squeeze %313 : memref<1x!tpu.dma_semaphore, #tpu.memory_space<semaphore_mem>> -> memref<!tpu.dma_semaphore, #tpu.memory_space<semaphore_mem>>
      tpu.enqueue_dma source(%311 : memref<1x32xf32, #tpu.memory_space<any>>) target(%312 : memref<1x32xf32, #tpu.memory_space<vmem>>) target_semaphore(%314 : memref<!tpu.dma_semaphore, #tpu.memory_space<semaphore_mem>>)
      %c14 = arith.constant 14 : index
      %315 = memref.load %arg1[%c14] : memref<16xi32, #tpu.memory_space<smem>>
      %c14_i32 = arith.constant 14 : i32
      %c0_i32_141 = arith.constant 0 : i32
      %316 = tpu.memref_slice %arg2[%315, %c0_i32_141] : memref<32x32xf32, #tpu.memory_space<any>> -> memref<1x32xf32, #tpu.memory_space<any>>
      %c14_i32_142 = arith.constant 14 : i32
      %c0_i32_143 = arith.constant 0 : i32
      %317 = tpu.memref_slice %arg20[%c14_i32_142, %c0_i32_143] : memref<16x32xf32, #tpu.memory_space<vmem>> -> memref<1x32xf32, #tpu.memory_space<vmem>>
      %318 = tpu.memref_slice %arg21[%c14_i32] : memref<16x!tpu.dma_semaphore, #tpu.memory_space<semaphore_mem>> -> memref<1x!tpu.dma_semaphore, #tpu.memory_space<semaphore_mem>>
      %319 = tpu.memref_squeeze %318 : memref<1x!tpu.dma_semaphore, #tpu.memory_space<semaphore_mem>> -> memref<!tpu.dma_semaphore, #tpu.memory_space<semaphore_mem>>
      tpu.enqueue_dma source(%316 : memref<1x32xf32, #tpu.memory_space<any>>) target(%317 : memref<1x32xf32, #tpu.memory_space<vmem>>) target_semaphore(%319 : memref<!tpu.dma_semaphore, #tpu.memory_space<semaphore_mem>>)
      %c15 = arith.constant 15 : index
      %320 = memref.load %arg1[%c15] : memref<16xi32, #tpu.memory_space<smem>>
      %c15_i32 = arith.constant 15 : i32
      %c0_i32_144 = arith.constant 0 : i32
      %321 = tpu.memref_slice %arg2[%320, %c0_i32_144] : memref<32x32xf32, #tpu.memory_space<any>> -> memref<1x32xf32, #tpu.memory_space<any>>
      %c15_i32_145 = arith.constant 15 : i32
      %c0_i32_146 = arith.constant 0 : i32
      %322 = tpu.memref_slice %arg20[%c15_i32_145, %c0_i32_146] : memref<16x32xf32, #tpu.memory_space<vmem>> -> memref<1x32xf32, #tpu.memory_space<vmem>>
      %323 = tpu.memref_slice %arg21[%c15_i32] : memref<16x!tpu.dma_semaphore, #tpu.memory_space<semaphore_mem>> -> memref<1x!tpu.dma_semaphore, #tpu.memory_space<semaphore_mem>>
      %324 = tpu.memref_squeeze %323 : memref<1x!tpu.dma_semaphore, #tpu.memory_space<semaphore_mem>> -> memref<!tpu.dma_semaphore, #tpu.memory_space<semaphore_mem>>
      tpu.enqueue_dma source(%321 : memref<1x32xf32, #tpu.memory_space<any>>) target(%322 : memref<1x32xf32, #tpu.memory_space<vmem>>) target_semaphore(%324 : memref<!tpu.dma_semaphore, #tpu.memory_space<semaphore_mem>>)
      %c0_i32_147 = arith.constant 0 : i32
      %c0_i32_148 = arith.constant 0 : i32
      %325 = tpu.memref_slice %arg2[%245, %c0_i32_148] : memref<32x32xf32, #tpu.memory_space<any>> -> memref<1x32xf32, #tpu.memory_space<any>>
      %c0_i32_149 = arith.constant 0 : i32
      %c0_i32_150 = arith.constant 0 : i32
      %326 = tpu.memref_slice %arg20[%c0_i32_149, %c0_i32_150] : memref<16x32xf32, #tpu.memory_space<vmem>> -> memref<1x32xf32, #tpu.memory_space<vmem>>
      %327 = tpu.memref_slice %arg21[%c0_i32_147] : memref<16x!tpu.dma_semaphore, #tpu.memory_space<semaphore_mem>> -> memref<1x!tpu.dma_semaphore, #tpu.memory_space<semaphore_mem>>
      %328 = tpu.memref_squeeze %327 : memref<1x!tpu.dma_semaphore, #tpu.memory_space<semaphore_mem>> -> memref<!tpu.dma_semaphore, #tpu.memory_space<semaphore_mem>>
      tpu.wait_dma2 semaphore(%328 : memref<!tpu.dma_semaphore, #tpu.memory_space<semaphore_mem>>) src(%325 : memref<1x32xf32, #tpu.memory_space<any>>) dst(%326 : memref<1x32xf32, #tpu.memory_space<vmem>>)
      %c1_i32_151 = arith.constant 1 : i32
      %c0_i32_152 = arith.constant 0 : i32
      %329 = tpu.memref_slice %arg2[%250, %c0_i32_152] : memref<32x32xf32, #tpu.memory_space<any>> -> memref<1x32xf32, #tpu.memory_space<any>>
      %c1_i32_153 = arith.constant 1 : i32
      %c0_i32_154 = arith.constant 0 : i32
      %330 = tpu.memref_slice %arg20[%c1_i32_153, %c0_i32_154] : memref<16x32xf32, #tpu.memory_space<vmem>> -> memref<1x32xf32, #tpu.memory_space<vmem>>
      %331 = tpu.memref_slice %arg21[%c1_i32_151] : memref<16x!tpu.dma_semaphore, #tpu.memory_space<semaphore_mem>> -> memref<1x!tpu.dma_semaphore, #tpu.memory_space<semaphore_mem>>
      %332 = tpu.memref_squeeze %331 : memref<1x!tpu.dma_semaphore, #tpu.memory_space<semaphore_mem>> -> memref<!tpu.dma_semaphore, #tpu.memory_space<semaphore_mem>>
      tpu.wait_dma2 semaphore(%332 : memref<!tpu.dma_semaphore, #tpu.memory_space<semaphore_mem>>) src(%329 : memref<1x32xf32, #tpu.memory_space<any>>) dst(%330 : memref<1x32xf32, #tpu.memory_space<vmem>>)
      %c2_i32_155 = arith.constant 2 : i32
      %c0_i32_156 = arith.constant 0 : i32
      %333 = tpu.memref_slice %arg2[%255, %c0_i32_156] : memref<32x32xf32, #tpu.memory_space<any>> -> memref<1x32xf32, #tpu.memory_space<any>>
      %c2_i32_157 = arith.constant 2 : i32
      %c0_i32_158 = arith.constant 0 : i32
      %334 = tpu.memref_slice %arg20[%c2_i32_157, %c0_i32_158] : memref<16x32xf32, #tpu.memory_space<vmem>> -> memref<1x32xf32, #tpu.memory_space<vmem>>
      %335 = tpu.memref_slice %arg21[%c2_i32_155] : memref<16x!tpu.dma_semaphore, #tpu.memory_space<semaphore_mem>> -> memref<1x!tpu.dma_semaphore, #tpu.memory_space<semaphore_mem>>
      %336 = tpu.memref_squeeze %335 : memref<1x!tpu.dma_semaphore, #tpu.memory_space<semaphore_mem>> -> memref<!tpu.dma_semaphore, #tpu.memory_space<semaphore_mem>>
      tpu.wait_dma2 semaphore(%336 : memref<!tpu.dma_semaphore, #tpu.memory_space<semaphore_mem>>) src(%333 : memref<1x32xf32, #tpu.memory_space<any>>) dst(%334 : memref<1x32xf32, #tpu.memory_space<vmem>>)
      %c3_i32_159 = arith.constant 3 : i32
      %c0_i32_160 = arith.constant 0 : i32
      %337 = tpu.memref_slice %arg2[%260, %c0_i32_160] : memref<32x32xf32, #tpu.memory_space<any>> -> memref<1x32xf32, #tpu.memory_space<any>>
      %c3_i32_161 = arith.constant 3 : i32
      %c0_i32_162 = arith.constant 0 : i32
      %338 = tpu.memref_slice %arg20[%c3_i32_161, %c0_i32_162] : memref<16x32xf32, #tpu.memory_space<vmem>> -> memref<1x32xf32, #tpu.memory_space<vmem>>
      %339 = tpu.memref_slice %arg21[%c3_i32_159] : memref<16x!tpu.dma_semaphore, #tpu.memory_space<semaphore_mem>> -> memref<1x!tpu.dma_semaphore, #tpu.memory_space<semaphore_mem>>
      %340 = tpu.memref_squeeze %339 : memref<1x!tpu.dma_semaphore, #tpu.memory_space<semaphore_mem>> -> memref<!tpu.dma_semaphore, #tpu.memory_space<semaphore_mem>>
      tpu.wait_dma2 semaphore(%340 : memref<!tpu.dma_semaphore, #tpu.memory_space<semaphore_mem>>) src(%337 : memref<1x32xf32, #tpu.memory_space<any>>) dst(%338 : memref<1x32xf32, #tpu.memory_space<vmem>>)
      %c4_i32_163 = arith.constant 4 : i32
      %c0_i32_164 = arith.constant 0 : i32
      %341 = tpu.memref_slice %arg2[%265, %c0_i32_164] : memref<32x32xf32, #tpu.memory_space<any>> -> memref<1x32xf32, #tpu.memory_space<any>>
      %c4_i32_165 = arith.constant 4 : i32
      %c0_i32_166 = arith.constant 0 : i32
      %342 = tpu.memref_slice %arg20[%c4_i32_165, %c0_i32_166] : memref<16x32xf32, #tpu.memory_space<vmem>> -> memref<1x32xf32, #tpu.memory_space<vmem>>
      %343 = tpu.memref_slice %arg21[%c4_i32_163] : memref<16x!tpu.dma_semaphore, #tpu.memory_space<semaphore_mem>> -> memref<1x!tpu.dma_semaphore, #tpu.memory_space<semaphore_mem>>
      %344 = tpu.memref_squeeze %343 : memref<1x!tpu.dma_semaphore, #tpu.memory_space<semaphore_mem>> -> memref<!tpu.dma_semaphore, #tpu.memory_space<semaphore_mem>>
      tpu.wait_dma2 semaphore(%344 : memref<!tpu.dma_semaphore, #tpu.memory_space<semaphore_mem>>) src(%341 : memref<1x32xf32, #tpu.memory_space<any>>) dst(%342 : memref<1x32xf32, #tpu.memory_space<vmem>>)
      %c5_i32_167 = arith.constant 5 : i32
      %c0_i32_168 = arith.constant 0 : i32
      %345 = tpu.memref_slice %arg2[%270, %c0_i32_168] : memref<32x32xf32, #tpu.memory_space<any>> -> memref<1x32xf32, #tpu.memory_space<any>>
      %c5_i32_169 = arith.constant 5 : i32
      %c0_i32_170 = arith.constant 0 : i32
      %346 = tpu.memref_slice %arg20[%c5_i32_169, %c0_i32_170] : memref<16x32xf32, #tpu.memory_space<vmem>> -> memref<1x32xf32, #tpu.memory_space<vmem>>
      %347 = tpu.memref_slice %arg21[%c5_i32_167] : memref<16x!tpu.dma_semaphore, #tpu.memory_space<semaphore_mem>> -> memref<1x!tpu.dma_semaphore, #tpu.memory_space<semaphore_mem>>
      %348 = tpu.memref_squeeze %347 : memref<1x!tpu.dma_semaphore, #tpu.memory_space<semaphore_mem>> -> memref<!tpu.dma_semaphore, #tpu.memory_space<semaphore_mem>>
      tpu.wait_dma2 semaphore(%348 : memref<!tpu.dma_semaphore, #tpu.memory_space<semaphore_mem>>) src(%345 : memref<1x32xf32, #tpu.memory_space<any>>) dst(%346 : memref<1x32xf32, #tpu.memory_space<vmem>>)
      %c6_i32_171 = arith.constant 6 : i32
      %c0_i32_172 = arith.constant 0 : i32
      %349 = tpu.memref_slice %arg2[%275, %c0_i32_172] : memref<32x32xf32, #tpu.memory_space<any>> -> memref<1x32xf32, #tpu.memory_space<any>>
      %c6_i32_173 = arith.constant 6 : i32
      %c0_i32_174 = arith.constant 0 : i32
      %350 = tpu.memref_slice %arg20[%c6_i32_173, %c0_i32_174] : memref<16x32xf32, #tpu.memory_space<vmem>> -> memref<1x32xf32, #tpu.memory_space<vmem>>
      %351 = tpu.memref_slice %arg21[%c6_i32_171] : memref<16x!tpu.dma_semaphore, #tpu.memory_space<semaphore_mem>> -> memref<1x!tpu.dma_semaphore, #tpu.memory_space<semaphore_mem>>
      %352 = tpu.memref_squeeze %351 : memref<1x!tpu.dma_semaphore, #tpu.memory_space<semaphore_mem>> -> memref<!tpu.dma_semaphore, #tpu.memory_space<semaphore_mem>>
      tpu.wait_dma2 semaphore(%352 : memref<!tpu.dma_semaphore, #tpu.memory_space<semaphore_mem>>) src(%349 : memref<1x32xf32, #tpu.memory_space<any>>) dst(%350 : memref<1x32xf32, #tpu.memory_space<vmem>>)
      %c7_i32_175 = arith.constant 7 : i32
      %c0_i32_176 = arith.constant 0 : i32
      %353 = tpu.memref_slice %arg2[%280, %c0_i32_176] : memref<32x32xf32, #tpu.memory_space<any>> -> memref<1x32xf32, #tpu.memory_space<any>>
      %c7_i32_177 = arith.constant 7 : i32
      %c0_i32_178 = arith.constant 0 : i32
      %354 = tpu.memref_slice %arg20[%c7_i32_177, %c0_i32_178] : memref<16x32xf32, #tpu.memory_space<vmem>> -> memref<1x32xf32, #tpu.memory_space<vmem>>
      %355 = tpu.memref_slice %arg21[%c7_i32_175] : memref<16x!tpu.dma_semaphore, #tpu.memory_space<semaphore_mem>> -> memref<1x!tpu.dma_semaphore, #tpu.memory_space<semaphore_mem>>
      %356 = tpu.memref_squeeze %355 : memref<1x!tpu.dma_semaphore, #tpu.memory_space<semaphore_mem>> -> memref<!tpu.dma_semaphore, #tpu.memory_space<semaphore_mem>>
      tpu.wait_dma2 semaphore(%356 : memref<!tpu.dma_semaphore, #tpu.memory_space<semaphore_mem>>) src(%353 : memref<1x32xf32, #tpu.memory_space<any>>) dst(%354 : memref<1x32xf32, #tpu.memory_space<vmem>>)
      %c8_i32_179 = arith.constant 8 : i32
      %c0_i32_180 = arith.constant 0 : i32
      %357 = tpu.memref_slice %arg2[%285, %c0_i32_180] : memref<32x32xf32, #tpu.memory_space<any>> -> memref<1x32xf32, #tpu.memory_space<any>>
      %c8_i32_181 = arith.constant 8 : i32
      %c0_i32_182 = arith.constant 0 : i32
      %358 = tpu.memref_slice %arg20[%c8_i32_181, %c0_i32_182] : memref<16x32xf32, #tpu.memory_space<vmem>> -> memref<1x32xf32, #tpu.memory_space<vmem>>
      %359 = tpu.memref_slice %arg21[%c8_i32_179] : memref<16x!tpu.dma_semaphore, #tpu.memory_space<semaphore_mem>> -> memref<1x!tpu.dma_semaphore, #tpu.memory_space<semaphore_mem>>
      %360 = tpu.memref_squeeze %359 : memref<1x!tpu.dma_semaphore, #tpu.memory_space<semaphore_mem>> -> memref<!tpu.dma_semaphore, #tpu.memory_space<semaphore_mem>>
      tpu.wait_dma2 semaphore(%360 : memref<!tpu.dma_semaphore, #tpu.memory_space<semaphore_mem>>) src(%357 : memref<1x32xf32, #tpu.memory_space<any>>) dst(%358 : memref<1x32xf32, #tpu.memory_space<vmem>>)
      %c9_i32_183 = arith.constant 9 : i32
      %c0_i32_184 = arith.constant 0 : i32
      %361 = tpu.memref_slice %arg2[%290, %c0_i32_184] : memref<32x32xf32, #tpu.memory_space<any>> -> memref<1x32xf32, #tpu.memory_space<any>>
      %c9_i32_185 = arith.constant 9 : i32
      %c0_i32_186 = arith.constant 0 : i32
      %362 = tpu.memref_slice %arg20[%c9_i32_185, %c0_i32_186] : memref<16x32xf32, #tpu.memory_space<vmem>> -> memref<1x32xf32, #tpu.memory_space<vmem>>
      %363 = tpu.memref_slice %arg21[%c9_i32_183] : memref<16x!tpu.dma_semaphore, #tpu.memory_space<semaphore_mem>> -> memref<1x!tpu.dma_semaphore, #tpu.memory_space<semaphore_mem>>
      %364 = tpu.memref_squeeze %363 : memref<1x!tpu.dma_semaphore, #tpu.memory_space<semaphore_mem>> -> memref<!tpu.dma_semaphore, #tpu.memory_space<semaphore_mem>>
      tpu.wait_dma2 semaphore(%364 : memref<!tpu.dma_semaphore, #tpu.memory_space<semaphore_mem>>) src(%361 : memref<1x32xf32, #tpu.memory_space<any>>) dst(%362 : memref<1x32xf32, #tpu.memory_space<vmem>>)
      %c10_i32_187 = arith.constant 10 : i32
      %c0_i32_188 = arith.constant 0 : i32
      %365 = tpu.memref_slice %arg2[%295, %c0_i32_188] : memref<32x32xf32, #tpu.memory_space<any>> -> memref<1x32xf32, #tpu.memory_space<any>>
      %c10_i32_189 = arith.constant 10 : i32
      %c0_i32_190 = arith.constant 0 : i32
      %366 = tpu.memref_slice %arg20[%c10_i32_189, %c0_i32_190] : memref<16x32xf32, #tpu.memory_space<vmem>> -> memref<1x32xf32, #tpu.memory_space<vmem>>
      %367 = tpu.memref_slice %arg21[%c10_i32_187] : memref<16x!tpu.dma_semaphore, #tpu.memory_space<semaphore_mem>> -> memref<1x!tpu.dma_semaphore, #tpu.memory_space<semaphore_mem>>
      %368 = tpu.memref_squeeze %367 : memref<1x!tpu.dma_semaphore, #tpu.memory_space<semaphore_mem>> -> memref<!tpu.dma_semaphore, #tpu.memory_space<semaphore_mem>>
      tpu.wait_dma2 semaphore(%368 : memref<!tpu.dma_semaphore, #tpu.memory_space<semaphore_mem>>) src(%365 : memref<1x32xf32, #tpu.memory_space<any>>) dst(%366 : memref<1x32xf32, #tpu.memory_space<vmem>>)
      %c11_i32_191 = arith.constant 11 : i32
      %c0_i32_192 = arith.constant 0 : i32
      %369 = tpu.memref_slice %arg2[%300, %c0_i32_192] : memref<32x32xf32, #tpu.memory_space<any>> -> memref<1x32xf32, #tpu.memory_space<any>>
      %c11_i32_193 = arith.constant 11 : i32
      %c0_i32_194 = arith.constant 0 : i32
      %370 = tpu.memref_slice %arg20[%c11_i32_193, %c0_i32_194] : memref<16x32xf32, #tpu.memory_space<vmem>> -> memref<1x32xf32, #tpu.memory_space<vmem>>
      %371 = tpu.memref_slice %arg21[%c11_i32_191] : memref<16x!tpu.dma_semaphore, #tpu.memory_space<semaphore_mem>> -> memref<1x!tpu.dma_semaphore, #tpu.memory_space<semaphore_mem>>
      %372 = tpu.memref_squeeze %371 : memref<1x!tpu.dma_semaphore, #tpu.memory_space<semaphore_mem>> -> memref<!tpu.dma_semaphore, #tpu.memory_space<semaphore_mem>>
      tpu.wait_dma2 semaphore(%372 : memref<!tpu.dma_semaphore, #tpu.memory_space<semaphore_mem>>) src(%369 : memref<1x32xf32, #tpu.memory_space<any>>) dst(%370 : memref<1x32xf32, #tpu.memory_space<vmem>>)
      %c12_i32_195 = arith.constant 12 : i32
      %c0_i32_196 = arith.constant 0 : i32
      %373 = tpu.memref_slice %arg2[%305, %c0_i32_196] : memref<32x32xf32, #tpu.memory_space<any>> -> memref<1x32xf32, #tpu.memory_space<any>>
      %c12_i32_197 = arith.constant 12 : i32
      %c0_i32_198 = arith.constant 0 : i32
      %374 = tpu.memref_slice %arg20[%c12_i32_197, %c0_i32_198] : memref<16x32xf32, #tpu.memory_space<vmem>> -> memref<1x32xf32, #tpu.memory_space<vmem>>
      %375 = tpu.memref_slice %arg21[%c12_i32_195] : memref<16x!tpu.dma_semaphore, #tpu.memory_space<semaphore_mem>> -> memref<1x!tpu.dma_semaphore, #tpu.memory_space<semaphore_mem>>
      %376 = tpu.memref_squeeze %375 : memref<1x!tpu.dma_semaphore, #tpu.memory_space<semaphore_mem>> -> memref<!tpu.dma_semaphore, #tpu.memory_space<semaphore_mem>>
      tpu.wait_dma2 semaphore(%376 : memref<!tpu.dma_semaphore, #tpu.memory_space<semaphore_mem>>) src(%373 : memref<1x32xf32, #tpu.memory_space<any>>) dst(%374 : memref<1x32xf32, #tpu.memory_space<vmem>>)
      %c13_i32_199 = arith.constant 13 : i32
      %c0_i32_200 = arith.constant 0 : i32
      %377 = tpu.memref_slice %arg2[%310, %c0_i32_200] : memref<32x32xf32, #tpu.memory_space<any>> -> memref<1x32xf32, #tpu.memory_space<any>>
      %c13_i32_201 = arith.constant 13 : i32
      %c0_i32_202 = arith.constant 0 : i32
      %378 = tpu.memref_slice %arg20[%c13_i32_201, %c0_i32_202] : memref<16x32xf32, #tpu.memory_space<vmem>> -> memref<1x32xf32, #tpu.memory_space<vmem>>
      %379 = tpu.memref_slice %arg21[%c13_i32_199] : memref<16x!tpu.dma_semaphore, #tpu.memory_space<semaphore_mem>> -> memref<1x!tpu.dma_semaphore, #tpu.memory_space<semaphore_mem>>
      %380 = tpu.memref_squeeze %379 : memref<1x!tpu.dma_semaphore, #tpu.memory_space<semaphore_mem>> -> memref<!tpu.dma_semaphore, #tpu.memory_space<semaphore_mem>>
      tpu.wait_dma2 semaphore(%380 : memref<!tpu.dma_semaphore, #tpu.memory_space<semaphore_mem>>) src(%377 : memref<1x32xf32, #tpu.memory_space<any>>) dst(%378 : memref<1x32xf32, #tpu.memory_space<vmem>>)
      %c14_i32_203 = arith.constant 14 : i32
      %c0_i32_204 = arith.constant 0 : i32
      %381 = tpu.memref_slice %arg2[%315, %c0_i32_204] : memref<32x32xf32, #tpu.memory_space<any>> -> memref<1x32xf32, #tpu.memory_space<any>>
      %c14_i32_205 = arith.constant 14 : i32
      %c0_i32_206 = arith.constant 0 : i32
      %382 = tpu.memref_slice %arg20[%c14_i32_205, %c0_i32_206] : memref<16x32xf32, #tpu.memory_space<vmem>> -> memref<1x32xf32, #tpu.memory_space<vmem>>
      %383 = tpu.memref_slice %arg21[%c14_i32_203] : memref<16x!tpu.dma_semaphore, #tpu.memory_space<semaphore_mem>> -> memref<1x!tpu.dma_semaphore, #tpu.memory_space<semaphore_mem>>
      %384 = tpu.memref_squeeze %383 : memref<1x!tpu.dma_semaphore, #tpu.memory_space<semaphore_mem>> -> memref<!tpu.dma_semaphore, #tpu.memory_space<semaphore_mem>>
      tpu.wait_dma2 semaphore(%384 : memref<!tpu.dma_semaphore, #tpu.memory_space<semaphore_mem>>) src(%381 : memref<1x32xf32, #tpu.memory_space<any>>) dst(%382 : memref<1x32xf32, #tpu.memory_space<vmem>>)
      %c15_i32_207 = arith.constant 15 : i32
      %c0_i32_208 = arith.constant 0 : i32
      %385 = tpu.memref_slice %arg2[%320, %c0_i32_208] : memref<32x32xf32, #tpu.memory_space<any>> -> memref<1x32xf32, #tpu.memory_space<any>>
      %c15_i32_209 = arith.constant 15 : i32
      %c0_i32_210 = arith.constant 0 : i32
      %386 = tpu.memref_slice %arg20[%c15_i32_209, %c0_i32_210] : memref<16x32xf32, #tpu.memory_space<vmem>> -> memref<1x32xf32, #tpu.memory_space<vmem>>
      %387 = tpu.memref_slice %arg21[%c15_i32_207] : memref<16x!tpu.dma_semaphore, #tpu.memory_space<semaphore_mem>> -> memref<1x!tpu.dma_semaphore, #tpu.memory_space<semaphore_mem>>
      %388 = tpu.memref_squeeze %387 : memref<1x!tpu.dma_semaphore, #tpu.memory_space<semaphore_mem>> -> memref<!tpu.dma_semaphore, #tpu.memory_space<semaphore_mem>>
      tpu.wait_dma2 semaphore(%388 : memref<!tpu.dma_semaphore, #tpu.memory_space<semaphore_mem>>) src(%385 : memref<1x32xf32, #tpu.memory_space<any>>) dst(%386 : memref<1x32xf32, #tpu.memory_space<vmem>>)
      %c0_211 = arith.constant 0 : index
      %c0_212 = arith.constant 0 : index
      %389 = vector.load %arg3[%c0_211, %c0_212] : memref<8x32xf32, #tpu.memory_space<vmem>>, vector<8x32xf32>
      %c0_213 = arith.constant 0 : index
      %c0_214 = arith.constant 0 : index
      %390 = vector.load %arg20[%c0_213, %c0_214] : memref<16x32xf32, #tpu.memory_space<vmem>>, vector<8x32xf32>
      %391 = arith.addf %390, %389 : vector<8x32xf32>
      %c0_215 = arith.constant 0 : index
      %c0_216 = arith.constant 0 : index
      %c0_217 = arith.constant 0 : index
      %392 = vector.load %arg19[%c0_215, %c0_216, %c0_217] : memref<2x8x32xf32, #tpu.memory_space<vmem>>, vector<1x8x32xf32>
      %393 = vector.shape_cast %392 : vector<1x8x32xf32> to vector<8x32xf32>
      %394 = vector.shape_cast %391 : vector<8x32xf32> to vector<1x8x32xf32>
      tpu.vector_store %arg19[%c0_215, %c0_216, %c0_217], %394 {strides = array<i32>} : memref<2x8x32xf32, #tpu.memory_space<vmem>>, vector<1x8x32xf32>,
      %c8_218 = arith.constant 8 : index
      %c0_219 = arith.constant 0 : index
      %395 = vector.load %arg20[%c8_218, %c0_219] : memref<16x32xf32, #tpu.memory_space<vmem>>, vector<8x32xf32>
      %396 = arith.addf %395, %389 : vector<8x32xf32>
      %c1_220 = arith.constant 1 : index
      %c0_221 = arith.constant 0 : index
      %c0_222 = arith.constant 0 : index
      %397 = vector.load %arg19[%c1_220, %c0_221, %c0_222] : memref<2x8x32xf32, #tpu.memory_space<vmem>>, vector<1x8x32xf32>
      %398 = vector.shape_cast %397 : vector<1x8x32xf32> to vector<8x32xf32>
      %399 = vector.shape_cast %396 : vector<8x32xf32> to vector<1x8x32xf32>
      tpu.vector_store %arg19[%c1_220, %c0_221, %c0_222], %399 {strides = array<i32>} : memref<2x8x32xf32, #tpu.memory_space<vmem>>, vector<1x8x32xf32>,
    } else {
    }
    %c0 = arith.constant 0 : index
    %c0_1 = arith.constant 0 : index
    %c0_2 = arith.constant 0 : index
    %3 = vector.load %arg5[%c0, %c0_1, %c0_2] : memref<1x96x32xbf16, #tpu.memory_space<vmem>>, vector<1x96x32xbf16>
    %4 = vector.shape_cast %3 : vector<1x96x32xbf16> to vector<96x32xbf16>
    %c0_3 = arith.constant 0 : index
    %c0_4 = arith.constant 0 : index
    %c0_5 = arith.constant 0 : index
    %5 = vector.load %arg6[%c0_3, %c0_4, %c0_5] : memref<1x1x96xf32, #tpu.memory_space<vmem>>, vector<1x1x96xf32>
    %6 = vector.shape_cast %5 : vector<1x1x96xf32> to vector<1x96xf32>
    %c0_6 = arith.constant 0 : index
    %c0_7 = arith.constant 0 : index
    %c0_8 = arith.constant 0 : index
    %c0_9 = arith.constant 0 : index
    %7 = vector.load %arg7[%c0_6, %c0_7, %c0_8, %c0_9] : memref<1x4x32x8xbf16, #tpu.memory_space<vmem>>, vector<1x4x32x8xbf16>
    %8 = vector.shape_cast %7 : vector<1x4x32x8xbf16> to vector<4x32x8xbf16>
    %c0_10 = arith.constant 0 : index
    %c0_11 = arith.constant 0 : index
    %c0_12 = arith.constant 0 : index
    %9 = vector.load %arg8[%c0_10, %c0_11, %c0_12] : memref<1x1x32xf32, #tpu.memory_space<vmem>>, vector<1x1x32xf32>
    %10 = vector.shape_cast %9 : vector<1x1x32xf32> to vector<1x32xf32>
    %c0_13 = arith.constant 0 : index
    %c0_14 = arith.constant 0 : index
    %c0_15 = arith.constant 0 : index
    %11 = vector.load %arg9[%c0_13, %c0_14, %c0_15] : memref<1x1x32xf32, #tpu.memory_space<vmem>>, vector<1x1x32xf32>
    %12 = vector.shape_cast %11 : vector<1x1x32xf32> to vector<1x32xf32>
    %c0_16 = arith.constant 0 : index
    %c0_17 = arith.constant 0 : index
    %c0_18 = arith.constant 0 : index
    %13 = vector.load %arg10[%c0_16, %c0_17, %c0_18] : memref<1x1x32xf32, #tpu.memory_space<vmem>>, vector<1x1x32xf32>
    %14 = vector.shape_cast %13 : vector<1x1x32xf32> to vector<1x32xf32>
    %c0_19 = arith.constant 0 : index
    %c0_20 = arith.constant 0 : index
    %c0_21 = arith.constant 0 : index
    %15 = vector.load %arg11[%c0_19, %c0_20, %c0_21] : memref<1x1x32xf32, #tpu.memory_space<vmem>>, vector<1x1x32xf32>
    %16 = vector.shape_cast %15 : vector<1x1x32xf32> to vector<1x32xf32>
    %c0_22 = arith.constant 0 : index
    %c0_23 = arith.constant 0 : index
    %c0_24 = arith.constant 0 : index
    %17 = vector.load %arg12[%c0_22, %c0_23, %c0_24] : memref<1x1x32xf32, #tpu.memory_space<vmem>>, vector<1x1x32xf32>
    %18 = vector.shape_cast %17 : vector<1x1x32xf32> to vector<1x32xf32>
    %c0_25 = arith.constant 0 : index
    %c0_26 = arith.constant 0 : index
    %c0_27 = arith.constant 0 : index
    %19 = vector.load %arg13[%c0_25, %c0_26, %c0_27] : memref<1x128x32xbf16, #tpu.memory_space<vmem>>, vector<1x128x32xbf16>
    %20 = vector.shape_cast %19 : vector<1x128x32xbf16> to vector<128x32xbf16>
    %c0_28 = arith.constant 0 : index
    %c0_29 = arith.constant 0 : index
    %c0_30 = arith.constant 0 : index
    %21 = vector.load %arg14[%c0_28, %c0_29, %c0_30] : memref<1x1x128xf32, #tpu.memory_space<vmem>>, vector<1x1x128xf32>
    %22 = vector.shape_cast %21 : vector<1x1x128xf32> to vector<1x128xf32>
    %c0_31 = arith.constant 0 : index
    %c0_32 = arith.constant 0 : index
    %c0_33 = arith.constant 0 : index
    %23 = vector.load %arg15[%c0_31, %c0_32, %c0_33] : memref<1x32x128xbf16, #tpu.memory_space<vmem>>, vector<1x32x128xbf16>
    %24 = vector.shape_cast %23 : vector<1x32x128xbf16> to vector<32x128xbf16>
    %c0_34 = arith.constant 0 : index
    %c0_35 = arith.constant 0 : index
    %c0_36 = arith.constant 0 : index
    %25 = vector.load %arg16[%c0_34, %c0_35, %c0_36] : memref<1x1x32xf32, #tpu.memory_space<vmem>>, vector<1x1x32xf32>
    %26 = vector.shape_cast %25 : vector<1x1x32xf32> to vector<1x32xf32>
    %c0_37 = arith.constant 0 : index
    %c0_38 = arith.constant 0 : index
    %c0_39 = arith.constant 0 : index
    %27 = vector.load %arg19[%c0_37, %c0_38, %c0_39] : memref<2x8x32xf32, #tpu.memory_space<vmem>>, vector<2x8x32xf32>
    %28 = vector.extract_strided_slice %27 {offsets = [0, 0, 0], sizes = [1, 8, 32], strides = [1, 1, 1]} : vector<2x8x32xf32> to vector<1x8x32xf32>
    %29 = vector.shape_cast %28 : vector<1x8x32xf32> to vector<8x32xf32>
    %cst = arith.constant dense<0.000000e+00> : vector<8xf32>
    %30 = vector.multi_reduction <add>, %29, %cst [1] : vector<8x32xf32> to vector<8xf32>
    %31 = vector.shape_cast %30 : vector<8xf32> to vector<8x1xf32>
    %cst_40 = arith.constant 3.200000e+01 : f32
    %32 = vector.broadcast %cst_40 : f32 to vector<8x1xf32>
    %33 = arith.divf %31, %32 : vector<8x1xf32>
    %34 = vector.broadcast %33 : vector<8x1xf32> to vector<8x32xf32>
    %35 = arith.subf %29, %34 : vector<8x32xf32>
    %36 = arith.mulf %35, %35 : vector<8x32xf32>
    %cst_41 = arith.constant dense<0.000000e+00> : vector<8xf32>
    %37 = vector.multi_reduction <add>, %36, %cst_41 [1] : vector<8x32xf32> to vector<8xf32>
    %38 = vector.shape_cast %37 : vector<8xf32> to vector<8x1xf32>
    %cst_42 = arith.constant 3.200000e+01 : f32
    %39 = vector.broadcast %cst_42 : f32 to vector<8x1xf32>
    %40 = arith.divf %38, %39 : vector<8x1xf32>
    %41 = vector.broadcast %33 : vector<8x1xf32> to vector<8x32xf32>
    %42 = arith.subf %29, %41 : vector<8x32xf32>
    %cst_43 = arith.constant 9.99999974E-6 : f32
    %43 = vector.broadcast %cst_43 : f32 to vector<8x1xf32>
    %44 = arith.addf %40, %43 : vector<8x1xf32>
    %45 = math.rsqrt %44 : vector<8x1xf32>
    %46 = vector.broadcast %45 : vector<8x1xf32> to vector<8x32xf32>
    %47 = arith.mulf %42, %46 : vector<8x32xf32>
    %48 = vector.broadcast %12 : vector<1x32xf32> to vector<8x32xf32>
    %49 = arith.mulf %47, %48 : vector<8x32xf32>
    %50 = vector.broadcast %14 : vector<1x32xf32> to vector<8x32xf32>
    %51 = arith.addf %49, %50 : vector<8x32xf32>
    %52 = arith.truncf %51 : vector<8x32xf32> to vector<8x32xbf16>
    "tpu.trace_start"() <{level = 10 : i32, message = "sd,ed->se"}> : () -> ()
    %cst_44 = arith.constant dense<0.000000e+00> : vector<8x96xf32>
    %53 = tpu.matmul %52, %4, %cst_44 {dimension_numbers = #tpu.dot_dimension_numbers<[1], [1], [0], [0], [0, 0, 1, 0], [], []>} : vector<8x32xbf16>, vector<96x32xbf16>, vector<8x96xf32> -> vector<8x96xf32>
    "tpu.trace_stop"() : () -> ()
    %54 = vector.broadcast %6 : vector<1x96xf32> to vector<8x96xf32>
    %55 = arith.addf %53, %54 : vector<8x96xf32>
    %56 = vector.extract_strided_slice %55 {offsets = [0, 0], sizes = [8, 32], strides = [1, 1]} : vector<8x96xf32> to vector<8x32xf32>
    %cst_45 = arith.constant 0.353553385 : f32
    %57 = vector.broadcast %cst_45 : f32 to vector<8x32xf32>
    %58 = arith.mulf %56, %57 : vector<8x32xf32>
    %59 = vector.extract_strided_slice %55 {offsets = [0, 32], sizes = [8, 32], strides = [1, 1]} : vector<8x96xf32> to vector<8x32xf32>
    %60 = vector.extract_strided_slice %55 {offsets = [0, 64], sizes = [8, 32], strides = [1, 1]} : vector<8x96xf32> to vector<8x32xf32>
    %61 = vector.shape_cast %58 : vector<8x32xf32> to vector<8x4x8xf32>
    %62 = tpu.transpose %61, [1, 0, 2] : vector<8x4x8xf32> -> vector<4x8x8xf32>
    %63 = vector.shape_cast %59 : vector<8x32xf32> to vector<8x4x8xf32>
    %64 = tpu.transpose %63, [1, 0, 2] : vector<8x4x8xf32> -> vector<4x8x8xf32>
    %65 = vector.shape_cast %60 : vector<8x32xf32> to vector<8x4x8xf32>
    %66 = tpu.transpose %65, [1, 0, 2] : vector<8x4x8xf32> -> vector<4x8x8xf32>
    %67 = arith.truncf %62 : vector<4x8x8xf32> to vector<4x8x8xbf16>
    %68 = arith.truncf %64 : vector<4x8x8xf32> to vector<4x8x8xbf16>
    "tpu.trace_start"() <{level = 10 : i32, message = "hqc,hkc->hqk"}> : () -> ()
    %cst_46 = arith.constant dense<0.000000e+00> : vector<4x8x8xf32>
    %69 = tpu.matmul %67, %68, %cst_46 {dimension_numbers = #tpu.dot_dimension_numbers<[2], [2], [1], [1], [0, 0, 0, 1, 1, 1], [0], [0]>} : vector<4x8x8xbf16>, vector<4x8x8xbf16>, vector<4x8x8xf32> -> vector<4x8x8xf32>
    "tpu.trace_stop"() : () -> ()
    %c0_47 = arith.constant 0 : index
    %c0_48 = arith.constant 0 : index
    %70 = vector.load %arg4[%c0_47, %c0_48] : memref<8x8xf32, #tpu.memory_space<vmem>>, vector<8x8xf32>
    %71 = vector.shape_cast %70 : vector<8x8xf32> to vector<1x8x8xf32>
    %72 = vector.broadcast %71 : vector<1x8x8xf32> to vector<4x8x8xf32>
    %73 = arith.addf %69, %72 : vector<4x8x8xf32>
    %cst_49 = arith.constant dense<0xFF800000> : vector<4x8xf32>
    %74 = vector.multi_reduction <maximumf>, %73, %cst_49 [2] : vector<4x8x8xf32> to vector<4x8xf32>
    %75 = vector.shape_cast %74 : vector<4x8xf32> to vector<4x8x1xf32>
    %76 = vector.broadcast %75 : vector<4x8x1xf32> to vector<4x8x8xf32>
    %77 = arith.subf %73, %76 : vector<4x8x8xf32>
    %78 = math.exp %77 : vector<4x8x8xf32>
    %cst_50 = arith.constant dense<0.000000e+00> : vector<4x8xf32>
    %79 = vector.multi_reduction <add>, %78, %cst_50 [2] : vector<4x8x8xf32> to vector<4x8xf32>
    %80 = vector.shape_cast %79 : vector<4x8xf32> to vector<4x8x1xf32>
    %81 = tpu.reciprocal %80 {approx = true} : vector<4x8x1xf32> -> vector<4x8x1xf32>
    %82 = vector.broadcast %81 : vector<4x8x1xf32> to vector<4x8x8xf32>
    %83 = arith.mulf %78, %82 : vector<4x8x8xf32>
    %84 = arith.truncf %83 : vector<4x8x8xf32> to vector<4x8x8xbf16>
    %85 = arith.truncf %66 : vector<4x8x8xf32> to vector<4x8x8xbf16>
    "tpu.trace_start"() <{level = 10 : i32, message = "hqk,hkc->hqc"}> : () -> ()
    %cst_51 = arith.constant dense<0.000000e+00> : vector<4x8x8xf32>
    %86 = tpu.matmul %84, %85, %cst_51 {dimension_numbers = #tpu.dot_dimension_numbers<[2], [1], [1], [2], [0, 0, 0, 1, 1, 2], [0], [0]>} : vector<4x8x8xbf16>, vector<4x8x8xbf16>, vector<4x8x8xf32> -> vector<4x8x8xf32>
    "tpu.trace_stop"() : () -> ()
    %87 = arith.truncf %86 : vector<4x8x8xf32> to vector<4x8x8xbf16>
    "tpu.trace_start"() <{level = 10 : i32, message = "hsc,hec->hse"}> : () -> ()
    %cst_52 = arith.constant dense<0.000000e+00> : vector<4x8x32xf32>
    %88 = tpu.matmul %87, %8, %cst_52 {dimension_numbers = #tpu.dot_dimension_numbers<[2], [2], [1], [1], [0, 0, 0, 1, 1, 1], [0], [0]>} : vector<4x8x8xbf16>, vector<4x32x8xbf16>, vector<4x8x32xf32> -> vector<4x8x32xf32>
    "tpu.trace_stop"() : () -> ()
    %cst_53 = arith.constant dense<0.000000e+00> : vector<8x32xf32>
    %89 = vector.multi_reduction <add>, %88, %cst_53 [0] : vector<4x8x32xf32> to vector<8x32xf32>
    %90 = arith.addf %29, %89 : vector<8x32xf32>
    %91 = vector.broadcast %10 : vector<1x32xf32> to vector<8x32xf32>
    %92 = arith.addf %90, %91 : vector<8x32xf32>
    %cst_54 = arith.constant dense<0.000000e+00> : vector<8xf32>
    %93 = vector.multi_reduction <add>, %92, %cst_54 [1] : vector<8x32xf32> to vector<8xf32>
    %94 = vector.shape_cast %93 : vector<8xf32> to vector<8x1xf32>
    %cst_55 = arith.constant 3.200000e+01 : f32
    %95 = vector.broadcast %cst_55 : f32 to vector<8x1xf32>
    %96 = arith.divf %94, %95 : vector<8x1xf32>
    %97 = vector.broadcast %96 : vector<8x1xf32> to vector<8x32xf32>
    %98 = arith.subf %92, %97 : vector<8x32xf32>
    %99 = arith.mulf %98, %98 : vector<8x32xf32>
    %cst_56 = arith.constant dense<0.000000e+00> : vector<8xf32>
    %100 = vector.multi_reduction <add>, %99, %cst_56 [1] : vector<8x32xf32> to vector<8xf32>
    %101 = vector.shape_cast %100 : vector<8xf32> to vector<8x1xf32>
    %cst_57 = arith.constant 3.200000e+01 : f32
    %102 = vector.broadcast %cst_57 : f32 to vector<8x1xf32>
    %103 = arith.divf %101, %102 : vector<8x1xf32>
    %104 = vector.broadcast %96 : vector<8x1xf32> to vector<8x32xf32>
    %105 = arith.subf %92, %104 : vector<8x32xf32>
    %cst_58 = arith.constant 9.99999974E-6 : f32
    %106 = vector.broadcast %cst_58 : f32 to vector<8x1xf32>
    %107 = arith.addf %103, %106 : vector<8x1xf32>
    %108 = math.rsqrt %107 : vector<8x1xf32>
    %109 = vector.broadcast %108 : vector<8x1xf32> to vector<8x32xf32>
    %110 = arith.mulf %105, %109 : vector<8x32xf32>
    %111 = vector.broadcast %16 : vector<1x32xf32> to vector<8x32xf32>
    %112 = arith.mulf %110, %111 : vector<8x32xf32>
    %113 = vector.broadcast %18 : vector<1x32xf32> to vector<8x32xf32>
    %114 = arith.addf %112, %113 : vector<8x32xf32>
    %115 = arith.truncf %114 : vector<8x32xf32> to vector<8x32xbf16>
    "tpu.trace_start"() <{level = 10 : i32, message = "sd,fd->sf"}> : () -> ()
    %cst_59 = arith.constant dense<0.000000e+00> : vector<8x128xf32>
    %116 = tpu.matmul %115, %20, %cst_59 {dimension_numbers = #tpu.dot_dimension_numbers<[1], [1], [0], [0], [0, 0, 1, 0], [], []>} : vector<8x32xbf16>, vector<128x32xbf16>, vector<8x128xf32> -> vector<8x128xf32>
    "tpu.trace_stop"() : () -> ()
    %117 = vector.broadcast %22 : vector<1x128xf32> to vector<8x128xf32>
    %118 = arith.addf %116, %117 : vector<8x128xf32>
    %cst_60 = arith.constant 5.000000e-01 : f32
    %119 = vector.broadcast %cst_60 : f32 to vector<8x128xf32>
    %120 = arith.mulf %119, %118 : vector<8x128xf32>
    %cst_61 = arith.constant 0.707106769 : f32
    %121 = vector.broadcast %cst_61 : f32 to vector<8x128xf32>
    %122 = arith.mulf %118, %121 : vector<8x128xf32>
    %123 = math.erf %122 : vector<8x128xf32>
    %cst_62 = arith.constant 1.000000e+00 : f32
    %124 = vector.broadcast %cst_62 : f32 to vector<8x128xf32>
    %125 = arith.addf %124, %123 : vector<8x128xf32>
    %126 = arith.mulf %120, %125 : vector<8x128xf32>
    %127 = arith.truncf %126 : vector<8x128xf32> to vector<8x128xbf16>
    "tpu.trace_start"() <{level = 10 : i32, message = "sf,df->sd"}> : () -> ()
    %cst_63 = arith.constant dense<0.000000e+00> : vector<8x32xf32>
    %128 = tpu.matmul %127, %24, %cst_63 {dimension_numbers = #tpu.dot_dimension_numbers<[1], [1], [0], [0], [0, 0, 1, 0], [], []>} : vector<8x128xbf16>, vector<32x128xbf16>, vector<8x32xf32> -> vector<8x32xf32>
    "tpu.trace_stop"() : () -> ()
    %129 = vector.broadcast %26 : vector<1x32xf32> to vector<8x32xf32>
    %130 = arith.addf %128, %129 : vector<8x32xf32>
    %131 = arith.addf %92, %130 : vector<8x32xf32>
    %c0_64 = arith.constant 0 : index
    %c0_65 = arith.constant 0 : index
    %c0_66 = arith.constant 0 : index
    %132 = vector.load %arg19[%c0_64, %c0_65, %c0_66] : memref<2x8x32xf32, #tpu.memory_space<vmem>>, vector<1x8x32xf32>
    %133 = vector.shape_cast %132 : vector<1x8x32xf32> to vector<8x32xf32>
    %134 = vector.shape_cast %131 : vector<8x32xf32> to vector<1x8x32xf32>
    tpu.vector_store %arg19[%c0_64, %c0_65, %c0_66], %134 {strides = array<i32>} : memref<2x8x32xf32, #tpu.memory_space<vmem>>, vector<1x8x32xf32>,
    %135 = vector.extract_strided_slice %27 {offsets = [1, 0, 0], sizes = [1, 8, 32], strides = [1, 1, 1]} : vector<2x8x32xf32> to vector<1x8x32xf32>
    %136 = vector.shape_cast %135 : vector<1x8x32xf32> to vector<8x32xf32>
    %cst_67 = arith.constant dense<0.000000e+00> : vector<8xf32>
    %137 = vector.multi_reduction <add>, %136, %cst_67 [1] : vector<8x32xf32> to vector<8xf32>
    %138 = vector.shape_cast %137 : vector<8xf32> to vector<8x1xf32>
    %cst_68 = arith.constant 3.200000e+01 : f32
    %139 = vector.broadcast %cst_68 : f32 to vector<8x1xf32>
    %140 = arith.divf %138, %139 : vector<8x1xf32>
    %141 = vector.broadcast %140 : vector<8x1xf32> to vector<8x32xf32>
    %142 = arith.subf %136, %141 : vector<8x32xf32>
    %143 = arith.mulf %142, %142 : vector<8x32xf32>
    %cst_69 = arith.constant dense<0.000000e+00> : vector<8xf32>
    %144 = vector.multi_reduction <add>, %143, %cst_69 [1] : vector<8x32xf32> to vector<8xf32>
    %145 = vector.shape_cast %144 : vector<8xf32> to vector<8x1xf32>
    %cst_70 = arith.constant 3.200000e+01 : f32
    %146 = vector.broadcast %cst_70 : f32 to vector<8x1xf32>
    %147 = arith.divf %145, %146 : vector<8x1xf32>
    %148 = vector.broadcast %140 : vector<8x1xf32> to vector<8x32xf32>
    %149 = arith.subf %136, %148 : vector<8x32xf32>
    %cst_71 = arith.constant 9.99999974E-6 : f32
    %150 = vector.broadcast %cst_71 : f32 to vector<8x1xf32>
    %151 = arith.addf %147, %150 : vector<8x1xf32>
    %152 = math.rsqrt %151 : vector<8x1xf32>
    %153 = vector.broadcast %152 : vector<8x1xf32> to vector<8x32xf32>
    %154 = arith.mulf %149, %153 : vector<8x32xf32>
    %155 = vector.broadcast %12 : vector<1x32xf32> to vector<8x32xf32>
    %156 = arith.mulf %154, %155 : vector<8x32xf32>
    %157 = vector.broadcast %14 : vector<1x32xf32> to vector<8x32xf32>
    %158 = arith.addf %156, %157 : vector<8x32xf32>
    %159 = arith.truncf %158 : vector<8x32xf32> to vector<8x32xbf16>
    "tpu.trace_start"() <{level = 10 : i32, message = "sd,ed->se"}> : () -> ()
    %cst_72 = arith.constant dense<0.000000e+00> : vector<8x96xf32>
    %160 = tpu.matmul %159, %4, %cst_72 {dimension_numbers = #tpu.dot_dimension_numbers<[1], [1], [0], [0], [0, 0, 1, 0], [], []>} : vector<8x32xbf16>, vector<96x32xbf16>, vector<8x96xf32> -> vector<8x96xf32>
    "tpu.trace_stop"() : () -> ()
    %161 = vector.broadcast %6 : vector<1x96xf32> to vector<8x96xf32>
    %162 = arith.addf %160, %161 : vector<8x96xf32>
    %163 = vector.extract_strided_slice %162 {offsets = [0, 0], sizes = [8, 32], strides = [1, 1]} : vector<8x96xf32> to vector<8x32xf32>
    %cst_73 = arith.constant 0.353553385 : f32
    %164 = vector.broadcast %cst_73 : f32 to vector<8x32xf32>
    %165 = arith.mulf %163, %164 : vector<8x32xf32>
    %166 = vector.extract_strided_slice %162 {offsets = [0, 32], sizes = [8, 32], strides = [1, 1]} : vector<8x96xf32> to vector<8x32xf32>
    %167 = vector.extract_strided_slice %162 {offsets = [0, 64], sizes = [8, 32], strides = [1, 1]} : vector<8x96xf32> to vector<8x32xf32>
    %168 = vector.shape_cast %165 : vector<8x32xf32> to vector<8x4x8xf32>
    %169 = tpu.transpose %168, [1, 0, 2] : vector<8x4x8xf32> -> vector<4x8x8xf32>
    %170 = vector.shape_cast %166 : vector<8x32xf32> to vector<8x4x8xf32>
    %171 = tpu.transpose %170, [1, 0, 2] : vector<8x4x8xf32> -> vector<4x8x8xf32>
    %172 = vector.shape_cast %167 : vector<8x32xf32> to vector<8x4x8xf32>
    %173 = tpu.transpose %172, [1, 0, 2] : vector<8x4x8xf32> -> vector<4x8x8xf32>
    %174 = arith.truncf %169 : vector<4x8x8xf32> to vector<4x8x8xbf16>
    %175 = arith.truncf %171 : vector<4x8x8xf32> to vector<4x8x8xbf16>
    "tpu.trace_start"() <{level = 10 : i32, message = "hqc,hkc->hqk"}> : () -> ()
    %cst_74 = arith.constant dense<0.000000e+00> : vector<4x8x8xf32>
    %176 = tpu.matmul %174, %175, %cst_74 {dimension_numbers = #tpu.dot_dimension_numbers<[2], [2], [1], [1], [0, 0, 0, 1, 1, 1], [0], [0]>} : vector<4x8x8xbf16>, vector<4x8x8xbf16>, vector<4x8x8xf32> -> vector<4x8x8xf32>
    "tpu.trace_stop"() : () -> ()
    %c0_75 = arith.constant 0 : index
    %c0_76 = arith.constant 0 : index
    %177 = vector.load %arg4[%c0_75, %c0_76] : memref<8x8xf32, #tpu.memory_space<vmem>>, vector<8x8xf32>
    %178 = vector.shape_cast %177 : vector<8x8xf32> to vector<1x8x8xf32>
    %179 = vector.broadcast %178 : vector<1x8x8xf32> to vector<4x8x8xf32>
    %180 = arith.addf %176, %179 : vector<4x8x8xf32>
    %cst_77 = arith.constant dense<0xFF800000> : vector<4x8xf32>
    %181 = vector.multi_reduction <maximumf>, %180, %cst_77 [2] : vector<4x8x8xf32> to vector<4x8xf32>
    %182 = vector.shape_cast %181 : vector<4x8xf32> to vector<4x8x1xf32>
    %183 = vector.broadcast %182 : vector<4x8x1xf32> to vector<4x8x8xf32>
    %184 = arith.subf %180, %183 : vector<4x8x8xf32>
    %185 = math.exp %184 : vector<4x8x8xf32>
    %cst_78 = arith.constant dense<0.000000e+00> : vector<4x8xf32>
    %186 = vector.multi_reduction <add>, %185, %cst_78 [2] : vector<4x8x8xf32> to vector<4x8xf32>
    %187 = vector.shape_cast %186 : vector<4x8xf32> to vector<4x8x1xf32>
    %188 = tpu.reciprocal %187 {approx = true} : vector<4x8x1xf32> -> vector<4x8x1xf32>
    %189 = vector.broadcast %188 : vector<4x8x1xf32> to vector<4x8x8xf32>
    %190 = arith.mulf %185, %189 : vector<4x8x8xf32>
    %191 = arith.truncf %190 : vector<4x8x8xf32> to vector<4x8x8xbf16>
    %192 = arith.truncf %173 : vector<4x8x8xf32> to vector<4x8x8xbf16>
    "tpu.trace_start"() <{level = 10 : i32, message = "hqk,hkc->hqc"}> : () -> ()
    %cst_79 = arith.constant dense<0.000000e+00> : vector<4x8x8xf32>
    %193 = tpu.matmul %191, %192, %cst_79 {dimension_numbers = #tpu.dot_dimension_numbers<[2], [1], [1], [2], [0, 0, 0, 1, 1, 2], [0], [0]>} : vector<4x8x8xbf16>, vector<4x8x8xbf16>, vector<4x8x8xf32> -> vector<4x8x8xf32>
    "tpu.trace_stop"() : () -> ()
    %194 = arith.truncf %193 : vector<4x8x8xf32> to vector<4x8x8xbf16>
    "tpu.trace_start"() <{level = 10 : i32, message = "hsc,hec->hse"}> : () -> ()
    %cst_80 = arith.constant dense<0.000000e+00> : vector<4x8x32xf32>
    %195 = tpu.matmul %194, %8, %cst_80 {dimension_numbers = #tpu.dot_dimension_numbers<[2], [2], [1], [1], [0, 0, 0, 1, 1, 1], [0], [0]>} : vector<4x8x8xbf16>, vector<4x32x8xbf16>, vector<4x8x32xf32> -> vector<4x8x32xf32>
    "tpu.trace_stop"() : () -> ()
    %cst_81 = arith.constant dense<0.000000e+00> : vector<8x32xf32>
    %196 = vector.multi_reduction <add>, %195, %cst_81 [0] : vector<4x8x32xf32> to vector<8x32xf32>
    %197 = arith.addf %136, %196 : vector<8x32xf32>
    %198 = vector.broadcast %10 : vector<1x32xf32> to vector<8x32xf32>
    %199 = arith.addf %197, %198 : vector<8x32xf32>
    %cst_82 = arith.constant dense<0.000000e+00> : vector<8xf32>
    %200 = vector.multi_reduction <add>, %199, %cst_82 [1] : vector<8x32xf32> to vector<8xf32>
    %201 = vector.shape_cast %200 : vector<8xf32> to vector<8x1xf32>
    %cst_83 = arith.constant 3.200000e+01 : f32
    %202 = vector.broadcast %cst_83 : f32 to vector<8x1xf32>
    %203 = arith.divf %201, %202 : vector<8x1xf32>
    %204 = vector.broadcast %203 : vector<8x1xf32> to vector<8x32xf32>
    %205 = arith.subf %199, %204 : vector<8x32xf32>
    %206 = arith.mulf %205, %205 : vector<8x32xf32>
    %cst_84 = arith.constant dense<0.000000e+00> : vector<8xf32>
    %207 = vector.multi_reduction <add>, %206, %cst_84 [1] : vector<8x32xf32> to vector<8xf32>
    %208 = vector.shape_cast %207 : vector<8xf32> to vector<8x1xf32>
    %cst_85 = arith.constant 3.200000e+01 : f32
    %209 = vector.broadcast %cst_85 : f32 to vector<8x1xf32>
    %210 = arith.divf %208, %209 : vector<8x1xf32>
    %211 = vector.broadcast %203 : vector<8x1xf32> to vector<8x32xf32>
    %212 = arith.subf %199, %211 : vector<8x32xf32>
    %cst_86 = arith.constant 9.99999974E-6 : f32
    %213 = vector.broadcast %cst_86 : f32 to vector<8x1xf32>
    %214 = arith.addf %210, %213 : vector<8x1xf32>
    %215 = math.rsqrt %214 : vector<8x1xf32>
    %216 = vector.broadcast %215 : vector<8x1xf32> to vector<8x32xf32>
    %217 = arith.mulf %212, %216 : vector<8x32xf32>
    %218 = vector.broadcast %16 : vector<1x32xf32> to vector<8x32xf32>
    %219 = arith.mulf %217, %218 : vector<8x32xf32>
    %220 = vector.broadcast %18 : vector<1x32xf32> to vector<8x32xf32>
    %221 = arith.addf %219, %220 : vector<8x32xf32>
    %222 = arith.truncf %221 : vector<8x32xf32> to vector<8x32xbf16>
    "tpu.trace_start"() <{level = 10 : i32, message = "sd,fd->sf"}> : () -> ()
    %cst_87 = arith.constant dense<0.000000e+00> : vector<8x128xf32>
    %223 = tpu.matmul %222, %20, %cst_87 {dimension_numbers = #tpu.dot_dimension_numbers<[1], [1], [0], [0], [0, 0, 1, 0], [], []>} : vector<8x32xbf16>, vector<128x32xbf16>, vector<8x128xf32> -> vector<8x128xf32>
    "tpu.trace_stop"() : () -> ()
    %224 = vector.broadcast %22 : vector<1x128xf32> to vector<8x128xf32>
    %225 = arith.addf %223, %224 : vector<8x128xf32>
    %cst_88 = arith.constant 5.000000e-01 : f32
    %226 = vector.broadcast %cst_88 : f32 to vector<8x128xf32>
    %227 = arith.mulf %226, %225 : vector<8x128xf32>
    %cst_89 = arith.constant 0.707106769 : f32
    %228 = vector.broadcast %cst_89 : f32 to vector<8x128xf32>
    %229 = arith.mulf %225, %228 : vector<8x128xf32>
    %230 = math.erf %229 : vector<8x128xf32>
    %cst_90 = arith.constant 1.000000e+00 : f32
    %231 = vector.broadcast %cst_90 : f32 to vector<8x128xf32>
    %232 = arith.addf %231, %230 : vector<8x128xf32>
    %233 = arith.mulf %227, %232 : vector<8x128xf32>
    %234 = arith.truncf %233 : vector<8x128xf32> to vector<8x128xbf16>
    "tpu.trace_start"() <{level = 10 : i32, message = "sf,df->sd"}> : () -> ()
    %cst_91 = arith.constant dense<0.000000e+00> : vector<8x32xf32>
    %235 = tpu.matmul %234, %24, %cst_91 {dimension_numbers = #tpu.dot_dimension_numbers<[1], [1], [0], [0], [0, 0, 1, 0], [], []>} : vector<8x128xbf16>, vector<32x128xbf16>, vector<8x32xf32> -> vector<8x32xf32>
    "tpu.trace_stop"() : () -> ()
    %236 = vector.broadcast %26 : vector<1x32xf32> to vector<8x32xf32>
    %237 = arith.addf %235, %236 : vector<8x32xf32>
    %238 = arith.addf %199, %237 : vector<8x32xf32>
    %c1 = arith.constant 1 : index
    %c0_92 = arith.constant 0 : index
    %c0_93 = arith.constant 0 : index
    %239 = vector.load %arg19[%c1, %c0_92, %c0_93] : memref<2x8x32xf32, #tpu.memory_space<vmem>>, vector<1x8x32xf32>
    %240 = vector.shape_cast %239 : vector<1x8x32xf32> to vector<8x32xf32>
    %241 = vector.shape_cast %238 : vector<8x32xf32> to vector<1x8x32xf32>
    tpu.vector_store %arg19[%c1, %c0_92, %c0_93], %241 {strides = array<i32>} : memref<2x8x32xf32, #tpu.memory_space<vmem>>, vector<1x8x32xf32>,
    %c1_i32 = arith.constant 1 : i32
    %242 = arith.cmpi eq, %arg0, %c1_i32 : i32
    %243 = arith.extui %242 : i1 to i32
    %c0_i32_94 = arith.constant 0 : i32
    %244 = arith.cmpi ne, %243, %c0_i32_94 : i32
    scf.if %244 {
      %c0_95 = arith.constant 0 : index
      %c0_96 = arith.constant 0 : index
      %c0_97 = arith.constant 0 : index
      %245 = vector.load %arg19[%c0_95, %c0_96, %c0_97] : memref<2x8x32xf32, #tpu.memory_space<vmem>>, vector<2x8x32xf32>
      %c0_98 = arith.constant 0 : index
      %c0_99 = arith.constant 0 : index
      %246 = vector.load %arg17[%c0_98, %c0_99] : memref<1x32xf32, #tpu.memory_space<vmem>>, vector<1x32xf32>
      %c0_100 = arith.constant 0 : index
      %c0_101 = arith.constant 0 : index
      %247 = vector.load %arg18[%c0_100, %c0_101] : memref<1x32xf32, #tpu.memory_space<vmem>>, vector<1x32xf32>
      %cst_102 = arith.constant dense<0.000000e+00> : vector<2x8xf32>
      %248 = vector.multi_reduction <add>, %245, %cst_102 [2] : vector<2x8x32xf32> to vector<2x8xf32>
      %249 = vector.shape_cast %248 : vector<2x8xf32> to vector<2x8x1xf32>
      %cst_103 = arith.constant 3.200000e+01 : f32
      %250 = vector.broadcast %cst_103 : f32 to vector<2x8x1xf32>
      %251 = arith.divf %249, %250 : vector<2x8x1xf32>
      %252 = vector.broadcast %251 : vector<2x8x1xf32> to vector<2x8x32xf32>
      %253 = arith.subf %245, %252 : vector<2x8x32xf32>
      %254 = arith.mulf %253, %253 : vector<2x8x32xf32>
      %cst_104 = arith.constant dense<0.000000e+00> : vector<2x8xf32>
      %255 = vector.multi_reduction <add>, %254, %cst_104 [2] : vector<2x8x32xf32> to vector<2x8xf32>
      %256 = vector.shape_cast %255 : vector<2x8xf32> to vector<2x8x1xf32>
      %cst_105 = arith.constant 3.200000e+01 : f32
      %257 = vector.broadcast %cst_105 : f32 to vector<2x8x1xf32>
      %258 = arith.divf %256, %257 : vector<2x8x1xf32>
      %259 = vector.broadcast %251 : vector<2x8x1xf32> to vector<2x8x32xf32>
      %260 = arith.subf %245, %259 : vector<2x8x32xf32>
      %cst_106 = arith.constant 9.99999974E-6 : f32
      %261 = vector.broadcast %cst_106 : f32 to vector<2x8x1xf32>
      %262 = arith.addf %258, %261 : vector<2x8x1xf32>
      %263 = math.rsqrt %262 : vector<2x8x1xf32>
      %264 = vector.broadcast %263 : vector<2x8x1xf32> to vector<2x8x32xf32>
      %265 = arith.mulf %260, %264 : vector<2x8x32xf32>
      %266 = vector.shape_cast %246 : vector<1x32xf32> to vector<1x1x32xf32>
      %267 = vector.broadcast %266 : vector<1x1x32xf32> to vector<2x8x32xf32>
      %268 = arith.mulf %265, %267 : vector<2x8x32xf32>
      %269 = vector.shape_cast %247 : vector<1x32xf32> to vector<1x1x32xf32>
      %270 = vector.broadcast %269 : vector<1x1x32xf32> to vector<2x8x32xf32>
      %271 = arith.addf %268, %270 : vector<2x8x32xf32>
      %c0_107 = arith.constant 0 : index
      %c0_108 = arith.constant 0 : index
      %c0_109 = arith.constant 0 : index
      %272 = vector.load %arg19[%c0_107, %c0_108, %c0_109] : memref<2x8x32xf32, #tpu.memory_space<vmem>>, vector<2x8x32xf32>
      tpu.vector_store %arg19[%c0_107, %c0_108, %c0_109], %271 {strides = array<i32>} : memref<2x8x32xf32, #tpu.memory_space<vmem>>, vector<2x8x32xf32>,
    } else {
    }
    return
  }
  func.func @transform_1(%arg0: i32, %arg1: memref<16xi32, #tpu.memory_space<smem>>) -> (i32, i32) {
    %c0_i32 = arith.constant 0 : i32
    %c0_i32_0 = arith.constant 0 : i32
    %c0_i32_1 = arith.constant 0 : i32
    return %c0_i32, %c0_i32_0 : i32, i32
  }
  func.func @transform_2(%arg0: i32, %arg1: memref<16xi32, #tpu.memory_space<smem>>) -> (i32, i32) {
    %c0_i32 = arith.constant 0 : i32
    %c0_i32_0 = arith.constant 0 : i32
    %c0_i32_1 = arith.constant 0 : i32
    return %c0_i32, %c0_i32_0 : i32, i32
  }
  func.func @transform_3(%arg0: i32, %arg1: memref<16xi32, #tpu.memory_space<smem>>) -> (i32, i32, i32) {
    %c0_i32 = arith.constant 0 : i32
    %c0_i32_0 = arith.constant 0 : i32
    %c0_i32_1 = arith.constant 0 : i32
    return %arg0, %c0_i32, %c0_i32_0 : i32, i32, i32
  }
  func.func @transform_4(%arg0: i32, %arg1: memref<16xi32, #tpu.memory_space<smem>>) -> (i32, i32, i32) {
    %c0_i32 = arith.constant 0 : i32
    %c0_i32_0 = arith.constant 0 : i32
    %c0_i32_1 = arith.constant 0 : i32
    return %arg0, %c0_i32, %c0_i32_0 : i32, i32, i32
  }
  func.func @transform_5(%arg0: i32, %arg1: memref<16xi32, #tpu.memory_space<smem>>) -> (i32, i32, i32, i32) {
    %c0_i32 = arith.constant 0 : i32
    %c0_i32_0 = arith.constant 0 : i32
    %c0_i32_1 = arith.constant 0 : i32
    %c0_i32_2 = arith.constant 0 : i32
    return %arg0, %c0_i32, %c0_i32_0, %c0_i32_1 : i32, i32, i32, i32
  }
  func.func @transform_6(%arg0: i32, %arg1: memref<16xi32, #tpu.memory_space<smem>>) -> (i32, i32, i32) {
    %c0_i32 = arith.constant 0 : i32
    %c0_i32_0 = arith.constant 0 : i32
    %c0_i32_1 = arith.constant 0 : i32
    return %arg0, %c0_i32, %c0_i32_0 : i32, i32, i32
  }
  func.func @transform_7(%arg0: i32, %arg1: memref<16xi32, #tpu.memory_space<smem>>) -> (i32, i32, i32) {
    %c0_i32 = arith.constant 0 : i32
    %c0_i32_0 = arith.constant 0 : i32
    %c0_i32_1 = arith.constant 0 : i32
    return %arg0, %c0_i32, %c0_i32_0 : i32, i32, i32
  }
  func.func @transform_8(%arg0: i32, %arg1: memref<16xi32, #tpu.memory_space<smem>>) -> (i32, i32, i32) {
    %c0_i32 = arith.constant 0 : i32
    %c0_i32_0 = arith.constant 0 : i32
    %c0_i32_1 = arith.constant 0 : i32
    return %arg0, %c0_i32, %c0_i32_0 : i32, i32, i32
  }
  func.func @transform_9(%arg0: i32, %arg1: memref<16xi32, #tpu.memory_space<smem>>) -> (i32, i32, i32) {
    %c0_i32 = arith.constant 0 : i32
    %c0_i32_0 = arith.constant 0 : i32
    %c0_i32_1 = arith.constant 0 : i32
    return %arg0, %c0_i32, %c0_i32_0 : i32, i32, i32
  }
  func.func @transform_10(%arg0: i32, %arg1: memref<16xi32, #tpu.memory_space<smem>>) -> (i32, i32, i32) {
    %c0_i32 = arith.constant 0 : i32
    %c0_i32_0 = arith.constant 0 : i32
    %c0_i32_1 = arith.constant 0 : i32
    return %arg0, %c0_i32, %c0_i32_0 : i32, i32, i32
  }
  func.func @transform_11(%arg0: i32, %arg1: memref<16xi32, #tpu.memory_space<smem>>) -> (i32, i32, i32) {
    %c0_i32 = arith.constant 0 : i32
    %c0_i32_0 = arith.constant 0 : i32
    %c0_i32_1 = arith.constant 0 : i32
    return %arg0, %c0_i32, %c0_i32_0 : i32, i32, i32
  }
  func.func @transform_12(%arg0: i32, %arg1: memref<16xi32, #tpu.memory_space<smem>>) -> (i32, i32, i32) {
    %c0_i32 = arith.constant 0 : i32
    %c0_i32_0 = arith.constant 0 : i32
    %c0_i32_1 = arith.constant 0 : i32
    return %arg0, %c0_i32, %c0_i32_0 : i32, i32, i32
  }
  func.func @transform_13(%arg0: i32, %arg1: memref<16xi32, #tpu.memory_space<smem>>) -> (i32, i32, i32) {
    %c0_i32 = arith.constant 0 : i32
    %c0_i32_0 = arith.constant 0 : i32
    %c0_i32_1 = arith.constant 0 : i32
    return %arg0, %c0_i32, %c0_i32_0 : i32, i32, i32
  }
  func.func @transform_14(%arg0: i32, %arg1: memref<16xi32, #tpu.memory_space<smem>>) -> (i32, i32, i32) {
    %c0_i32 = arith.constant 0 : i32
    %c0_i32_0 = arith.constant 0 : i32
    %c0_i32_1 = arith.constant 0 : i32
    return %arg0, %c0_i32, %c0_i32_0 : i32, i32, i32
  }
  func.func @transform_15(%arg0: i32, %arg1: memref<16xi32, #tpu.memory_space<smem>>) -> (i32, i32) {
    %c0_i32 = arith.constant 0 : i32
    %c0_i32_0 = arith.constant 0 : i32
    %c0_i32_1 = arith.constant 0 : i32
    return %c0_i32, %c0_i32_0 : i32, i32
  }
  func.func @transform_16(%arg0: i32, %arg1: memref<16xi32, #tpu.memory_space<smem>>) -> (i32, i32) {
    %c0_i32 = arith.constant 0 : i32
    %c0_i32_0 = arith.constant 0 : i32
    %c0_i32_1 = arith.constant 0 : i32
    return %c0_i32, %c0_i32_0 : i32, i32
  }
  func.func @transform_17(%arg0: i32, %arg1: memref<16xi32, #tpu.memory_space<smem>>) -> (i32, i32, i32) {
    %c0_i32 = arith.constant 0 : i32
    %c0_i32_0 = arith.constant 0 : i32
    %c0_i32_1 = arith.constant 0 : i32
    %c0_i32_2 = arith.constant 0 : i32
    return %c0_i32, %c0_i32_0, %c0_i32_1 : i32, i32, i32
  }
}

</mosaic_0001>

<llo_original>
// kernel: tpu_custom_call.1
$region0: #{tpu_custom_call.1}
  #allocation0 [shape = 'u32[]', space=smem, size = 0x4, offset = 0x4, fixed_abs, tag = 'smem constant byte address 0x4 - core index']
  #allocation1 [shape = 'u32[144,128]{1,0:T(1,128)}', space=vmem, size = 0x12000, scoped, tag = 'internal scratch']
  #allocation2 [shape = 'f32[16,32]{1,0:T(8,128)}', space=vmem, size = 0x2000, scoped, tag = 'scratch operand']
  #allocation3 [shape = 's32[16]{0}', space=sflag, size = 0x40, scoped, tag = 'scratch operand']
  #allocation4 [shape = 's32[1]{0}', space=sflag, size = 0x4, scoped, tag = 'scoped memory for tpu_custom_call.1']
  #allocation5 [shape = 'u8[512]{0}', space=smem, size = 0x200, scoped, tag = 'prefetched SMEM operand 0']
  #allocation8 [shape = 's32[]', space=sflag, size = 0x4, offset = 0, fixed_abs, tag = 'sflag constant byte address 0x0 - dummy sync flag']
  #allocation9 [shape = 's32[]', space=sflag, size = 0x4, offset = 0, fixed_abs, tag = 'sflag constant byte address 0x0 - dummy sync flag']
  #allocation10 [shape = 's32[]', space=sflag, size = 0x4, offset = 0, fixed_abs, tag = 'sflag constant byte address 0x0 - dummy sync flag']
  #allocation11 [shape = 's32[]', space=sflag, size = 0x4, offset = 0, fixed_abs, tag = 'sflag constant byte address 0x0 - dummy sync flag']
  #allocation12 [shape = 's32[]', space=sflag, size = 0x4, offset = 0, fixed_abs, tag = 'sflag constant byte address 0x0 - dummy sync flag']
  #allocation13 [shape = 's32[]', space=sflag, size = 0x4, offset = 0, fixed_abs, tag = 'sflag constant byte address 0x0 - dummy sync flag']
  #allocation14 [shape = 's32[]', space=sflag, size = 0x4, offset = 0, fixed_abs, tag = 'sflag constant byte address 0x0 - dummy sync flag']
  #allocation15 [shape = 's32[]', space=sflag, size = 0x4, offset = 0, fixed_abs, tag = 'sflag constant byte address 0x0 - dummy sync flag']
  #allocation16 [shape = 's32[]', space=sflag, size = 0x4, offset = 0, fixed_abs, tag = 'sflag constant byte address 0x0 - dummy sync flag']
  #allocation17 [shape = 's32[]', space=sflag, size = 0x4, offset = 0, fixed_abs, tag = 'sflag constant byte address 0x0 - dummy sync flag']
  #allocation18 [shape = 's32[]', space=sflag, size = 0x4, offset = 0, fixed_abs, tag = 'sflag constant byte address 0x0 - dummy sync flag']
  #allocation19 [shape = 's32[]', space=sflag, size = 0x4, offset = 0, fixed_abs, tag = 'sflag constant byte address 0x0 - dummy sync flag']
  #allocation20 [shape = 's32[]', space=sflag, size = 0x4, offset = 0, fixed_abs, tag = 'sflag constant byte address 0x0 - dummy sync flag']
  #allocation21 [shape = 's32[]', space=sflag, size = 0x4, offset = 0, fixed_abs, tag = 'sflag constant byte address 0x0 - dummy sync flag']
  #allocation22 [shape = 's32[]', space=sflag, size = 0x4, offset = 0, fixed_abs, tag = 'sflag constant byte address 0x0 - dummy sync flag']
  #allocation23 [shape = 's32[]', space=sflag, size = 0x4, offset = 0, fixed_abs, tag = 'sflag constant byte address 0x0 - dummy sync flag']
  %s0 = inlined_call_operand.vmem [shape: s32[16], index: 0, kind: input, shape index: {}]
  %s1 = inlined_call_operand.vmem [shape: f32[32,32], index: 1, kind: input, shape index: {}]
  %s2 = inlined_call_operand.vmem [shape: f32[8,32], index: 2, kind: input, shape index: {}]
  %s3 = inlined_call_operand.vmem [shape: f32[8,8], index: 3, kind: input, shape index: {}]
  %s4 = inlined_call_operand.vmem [shape: bf16[2,96,32], index: 4, kind: input, shape index: {}]
  %s5 = inlined_call_operand.vmem [shape: f32[2,1,96], index: 5, kind: input, shape index: {}]
  %s6 = inlined_call_operand.vmem [shape: bf16[2,4,32,8], index: 6, kind: input, shape index: {}]
  %s7 = inlined_call_operand.vmem [shape: f32[2,1,32], index: 7, kind: input, shape index: {}]
  %s8 = inlined_call_operand.vmem [shape: f32[2,1,32], index: 8, kind: input, shape index: {}]
  %s9 = inlined_call_operand.vmem [shape: f32[2,1,32], index: 9, kind: input, shape index: {}]
  %s10 = inlined_call_operand.vmem [shape: f32[2,1,32], index: 10, kind: input, shape index: {}]
  %s11 = inlined_call_operand.vmem [shape: f32[2,1,32], index: 11, kind: input, shape index: {}]
  %s12 = inlined_call_operand.vmem [shape: bf16[2,128,32], index: 12, kind: input, shape index: {}]
  %s13 = inlined_call_operand.vmem [shape: f32[2,1,128], index: 13, kind: input, shape index: {}]
  %s14 = inlined_call_operand.vmem [shape: bf16[2,32,128], index: 14, kind: input, shape index: {}]
  %s15 = inlined_call_operand.vmem [shape: f32[2,1,32], index: 15, kind: input, shape index: {}]
  %s16 = inlined_call_operand.vmem [shape: f32[1,32], index: 16, kind: input, shape index: {}]
  %s17 = inlined_call_operand.vmem [shape: f32[1,32], index: 17, kind: input, shape index: {}]
  %s18 = inlined_call_operand.hbm [shape: f32[2,8,32], index: 18, kind: output, shape index: {}]
  %s19 = sld [smem:[#allocation0]]
  $region585: #{tpu_custom_call.1} parent=0
    _
  %s21 = ssub.s32 1, %s19
  %s22 = scalar_select 0, %s21, %s19
  %s23 = sshll.u32 %s0, 4
  %s24 = int_to_ptr.vmem [resolvable:$true] %s23
  %26 = dma.vmem_to_smem %s24, 16, [#allocation5], [#allocation4]
  %27 = dma.done [#allocation4], 16
  %28 = sfence
  $region1: #{tpu_custom_call.1} parent=0
    #allocation6 [shape = 'u8[8192]{0}', space=vmem, size = 0x2000, scoped, tag = 'output window, operand 0, single buffered']
    #allocation7 [shape = 's32[2]{0}', space=sflag, size = 0x8, scoped, tag = 'scoped memory for tpu_custom_call.1']
    %29 = vsyncpa [#allocation7], 0
    loop: start=0, step=1, limit=4
    $region2: #{tpu_custom_call.1} parent=1 // loop_pre_header
      _
    $region3: #{tpu_custom_call.1} parent=1 // loop_header
      %s31 = sphi 0, %s35
      %p32 = scmp.ge.s32.totalorder %s31, 4
      %s39 = sphi 0, %s39
      %s41 = sphi 0, %s39
      %s42 = sphi 0, %s41
      %s56 = sphi 0, %s42
      %s60 = sphi 0, %s60
      %s62 = sphi 0, %s60
      %s63 = sphi 0, %s62
      %s77 = sphi 0, %s63
      %s83 = sphi 0, %s85
      %s86 = sphi 0, %s83
      %s87 = sphi 0, %s86
      %s103 = sphi 0, %s87
      %s109 = sphi 0, %s111
      %s112 = sphi 0, %s109
      %s113 = sphi 0, %s112
      %s129 = sphi 0, %s113
      %s135 = sphi 0, %s137
      %s138 = sphi 0, %s135
      %s139 = sphi 0, %s138
      %s155 = sphi 0, %s139
      %s161 = sphi 0, %s163
      %s164 = sphi 0, %s161
      %s165 = sphi 0, %s164
      %s181 = sphi 0, %s165
      %s187 = sphi 0, %s189
      %s190 = sphi 0, %s187
      %s191 = sphi 0, %s190
      %s207 = sphi 0, %s191
      %s213 = sphi 0, %s215
      %s216 = sphi 0, %s213
      %s217 = sphi 0, %s216
      %s233 = sphi 0, %s217
      %s239 = sphi 0, %s241
      %s242 = sphi 0, %s239
      %s243 = sphi 0, %s242
      %s259 = sphi 0, %s243
      %s265 = sphi 0, %s267
      %s268 = sphi 0, %s265
      %s269 = sphi 0, %s268
      %s285 = sphi 0, %s269
      %s291 = sphi 0, %s293
      %s294 = sphi 0, %s291
      %s295 = sphi 0, %s294
      %s311 = sphi 0, %s295
      %s317 = sphi 0, %s319
      %s320 = sphi 0, %s317
      %s321 = sphi 0, %s320
      %s337 = sphi 0, %s321
      %s343 = sphi 0, %s345
      %s346 = sphi 0, %s343
      %s347 = sphi 0, %s346
      %s363 = sphi 0, %s347
      %s369 = sphi 0, %s371
      %s372 = sphi 0, %s369
      %s373 = sphi 0, %s372
      %s389 = sphi 0, %s373
      %s393 = sphi 0, %s393
      %s395 = sphi 0, %s393
      %s396 = sphi 0, %s395
      %s410 = sphi 0, %s396
      %s414 = sphi 0, %s414
      %s416 = sphi 0, %s414
      %s417 = sphi 0, %s416
      %s431 = sphi 0, %s417
      %s435 = sphi 0, %s435
      %s437 = sphi 0, %s435
      %s438 = sphi 0, %s437
      %s452 = sphi 0, %s438
    $region4: #{tpu_custom_call.1} parent=1 // loop_header_branch
      %34 = sbr.rel (%p32) target = $region8
    $region5: #{tpu_custom_call.1} parent=1 // loop_body
      %s36 = ssub.s32 %s31, 1
      %s37 = ssub.s32 %s31, 2
      %s38 = sadd.s32 %s31, 1
      %s40 = sadd.s32 %s39, 1
      %p43 = scmp.eq.s32.totalorder %s31, 1
      %p44 = scmp.ne.s32.totalorder %s39, %s41
      %p45 = scmp.eq.s32.totalorder %s31, 0
      %p46 = por %p44, %p45
      %p47 = scmp.ne.s32.totalorder %s39, %s41
      %p48 = scmp.eq.s32.totalorder %s36, 1
      %p49 = por %p47, %p48
      %p50 = scmp.ne.s32.totalorder %s41, %s42
      %p51 = scmp.eq.s32.totalorder %s36, 0
      %p52 = por %p50, %p51
      %p53 = scmp.ne.s32.totalorder %s41, %s42
      %p54 = scmp.eq.s32.totalorder %s37, 1
      %p55 = por %p53, %p54
      %p57 = scmp.ne.s32.totalorder %s42, %s56
      %p58 = scmp.eq.s32.totalorder %s37, 0
      %p59 = por %p57, %p58
      %s61 = sadd.s32 %s60, 1
      %p64 = scmp.eq.s32.totalorder %s31, 1
      %p65 = scmp.ne.s32.totalorder %s60, %s62
      %p66 = scmp.eq.s32.totalorder %s31, 0
      %p67 = por %p65, %p66
      %p68 = scmp.ne.s32.totalorder %s60, %s62
      %p69 = scmp.eq.s32.totalorder %s36, 1
      %p70 = por %p68, %p69
      %p71 = scmp.ne.s32.totalorder %s62, %s63
      %p72 = scmp.eq.s32.totalorder %s36, 0
      %p73 = por %p71, %p72
      %p74 = scmp.ne.s32.totalorder %s62, %s63
      %p75 = scmp.eq.s32.totalorder %s37, 1
      %p76 = por %p74, %p75
      %p78 = scmp.ne.s32.totalorder %s63, %s77
      %p79 = scmp.eq.s32.totalorder %s37, 0
      %p80 = por %p78, %p79
      %s81 = ssub.s32 %s31, %s38
      %p82 = scmp.eq.s32.totalorder %s81, 0
      %s84 = sadd.s32 %s83, 1
      %s85 = scalar_select %p82, %s83, %s84
      %p88 = pneg %p82
      %p89 = scmp.eq.s32.totalorder %s31, 1
      %p90 = por %p88, %p89
      %p91 = scmp.ne.s32.totalorder %s83, %s86
      %p92 = scmp.eq.s32.totalorder %s31, 0
      %p93 = por %p91, %p92
      %p94 = scmp.ne.s32.totalorder %s83, %s86
      %p95 = scmp.eq.s32.totalorder %s36, 1
      %p96 = por %p94, %p95
      %p97 = scmp.ne.s32.totalorder %s86, %s87
      %p98 = scmp.eq.s32.totalorder %s36, 0
      %p99 = por %p97, %p98
      %p100 = scmp.ne.s32.totalorder %s86, %s87
      %p101 = scmp.eq.s32.totalorder %s37, 1
      %p102 = por %p100, %p101
      %p104 = scmp.ne.s32.totalorder %s87, %s103
      %p105 = scmp.eq.s32.totalorder %s37, 0
      %p106 = por %p104, %p105
      %s107 = ssub.s32 %s31, %s38
      %p108 = scmp.eq.s32.totalorder %s107, 0
      %s110 = sadd.s32 %s109, 1
      %s111 = scalar_select %p108, %s109, %s110
      %p114 = pneg %p108
      %p115 = scmp.eq.s32.totalorder %s31, 1
      %p116 = por %p114, %p115
      %p117 = scmp.ne.s32.totalorder %s109, %s112
      %p118 = scmp.eq.s32.totalorder %s31, 0
      %p119 = por %p117, %p118
      %p120 = scmp.ne.s32.totalorder %s109, %s112
      %p121 = scmp.eq.s32.totalorder %s36, 1
      %p122 = por %p120, %p121
      %p123 = scmp.ne.s32.totalorder %s112, %s113
      %p124 = scmp.eq.s32.totalorder %s36, 0
      %p125 = por %p123, %p124
      %p126 = scmp.ne.s32.totalorder %s112, %s113
      %p127 = scmp.eq.s32.totalorder %s37, 1
      %p128 = por %p126, %p127
      %p130 = scmp.ne.s32.totalorder %s113, %s129
      %p131 = scmp.eq.s32.totalorder %s37, 0
      %p132 = por %p130, %p131
      %s133 = ssub.s32 %s31, %s38
      %p134 = scmp.eq.s32.totalorder %s133, 0
      %s136 = sadd.s32 %s135, 1
      %s137 = scalar_select %p134, %s135, %s136
      %p140 = pneg %p134
      %p141 = scmp.eq.s32.totalorder %s31, 1
      %p142 = por %p140, %p141
      %p143 = scmp.ne.s32.totalorder %s135, %s138
      %p144 = scmp.eq.s32.totalorder %s31, 0
      %p145 = por %p143, %p144
      %p146 = scmp.ne.s32.totalorder %s135, %s138
      %p147 = scmp.eq.s32.totalorder %s36, 1
      %p148 = por %p146, %p147
      %p149 = scmp.ne.s32.totalorder %s138, %s139
      %p150 = scmp.eq.s32.totalorder %s36, 0
      %p151 = por %p149, %p150
      %p152 = scmp.ne.s32.totalorder %s138, %s139
      %p153 = scmp.eq.s32.totalorder %s37, 1
      %p154 = por %p152, %p153
      %p156 = scmp.ne.s32.totalorder %s139, %s155
      %p157 = scmp.eq.s32.totalorder %s37, 0
      %p158 = por %p156, %p157
      %s159 = ssub.s32 %s31, %s38
      %p160 = scmp.eq.s32.totalorder %s159, 0
      %s162 = sadd.s32 %s161, 1
      %s163 = scalar_select %p160, %s161, %s162
      %p166 = pneg %p160
      %p167 = scmp.eq.s32.totalorder %s31, 1
      %p168 = por %p166, %p167
      %p169 = scmp.ne.s32.totalorder %s161, %s164
      %p170 = scmp.eq.s32.totalorder %s31, 0
      %p171 = por %p169, %p170
      %p172 = scmp.ne.s32.totalorder %s161, %s164
      %p173 = scmp.eq.s32.totalorder %s36, 1
      %p174 = por %p172, %p173
      %p175 = scmp.ne.s32.totalorder %s164, %s165
      %p176 = scmp.eq.s32.totalorder %s36, 0
      %p177 = por %p175, %p176
      %p178 = scmp.ne.s32.totalorder %s164, %s165
      %p179 = scmp.eq.s32.totalorder %s37, 1
      %p180 = por %p178, %p179
      %p182 = scmp.ne.s32.totalorder %s165, %s181
      %p183 = scmp.eq.s32.totalorder %s37, 0
      %p184 = por %p182, %p183
      %s185 = ssub.s32 %s31, %s38
      %p186 = scmp.eq.s32.totalorder %s185, 0
      %s188 = sadd.s32 %s187, 1
      %s189 = scalar_select %p186, %s187, %s188
      %p192 = pneg %p186
      %p193 = scmp.eq.s32.totalorder %s31, 1
      %p194 = por %p192, %p193
      %p195 = scmp.ne.s32.totalorder %s187, %s190
      %p196 = scmp.eq.s32.totalorder %s31, 0
      %p197 = por %p195, %p196
      %p198 = scmp.ne.s32.totalorder %s187, %s190
      %p199 = scmp.eq.s32.totalorder %s36, 1
      %p200 = por %p198, %p199
      %p201 = scmp.ne.s32.totalorder %s190, %s191
      %p202 = scmp.eq.s32.totalorder %s36, 0
      %p203 = por %p201, %p202
      %p204 = scmp.ne.s32.totalorder %s190, %s191
      %p205 = scmp.eq.s32.totalorder %s37, 1
      %p206 = por %p204, %p205
      %p208 = scmp.ne.s32.totalorder %s191, %s207
      %p209 = scmp.eq.s32.totalorder %s37, 0
      %p210 = por %p208, %p209
      %s211 = ssub.s32 %s31, %s38
      %p212 = scmp.eq.s32.totalorder %s211, 0
      %s214 = sadd.s32 %s213, 1
      %s215 = scalar_select %p212, %s213, %s214
      %p218 = pneg %p212
      %p219 = scmp.eq.s32.totalorder %s31, 1
      %p220 = por %p218, %p219
      %p221 = scmp.ne.s32.totalorder %s213, %s216
      %p222 = scmp.eq.s32.totalorder %s31, 0
      %p223 = por %p221, %p222
      %p224 = scmp.ne.s32.totalorder %s213, %s216
      %p225 = scmp.eq.s32.totalorder %s36, 1
      %p226 = por %p224, %p225
      %p227 = scmp.ne.s32.totalorder %s216, %s217
      %p228 = scmp.eq.s32.totalorder %s36, 0
      %p229 = por %p227, %p228
      %p230 = scmp.ne.s32.totalorder %s216, %s217
      %p231 = scmp.eq.s32.totalorder %s37, 1
      %p232 = por %p230, %p231
      %p234 = scmp.ne.s32.totalorder %s217, %s233
      %p235 = scmp.eq.s32.totalorder %s37, 0
      %p236 = por %p234, %p235
      %s237 = ssub.s32 %s31, %s38
      %p238 = scmp.eq.s32.totalorder %s237, 0
      %s240 = sadd.s32 %s239, 1
      %s241 = scalar_select %p238, %s239, %s240
      %p244 = pneg %p238
      %p245 = scmp.eq.s32.totalorder %s31, 1
      %p246 = por %p244, %p245
      %p247 = scmp.ne.s32.totalorder %s239, %s242
      %p248 = scmp.eq.s32.totalorder %s31, 0
      %p249 = por %p247, %p248
      %p250 = scmp.ne.s32.totalorder %s239, %s242
      %p251 = scmp.eq.s32.totalorder %s36, 1
      %p252 = por %p250, %p251
      %p253 = scmp.ne.s32.totalorder %s242, %s243
      %p254 = scmp.eq.s32.totalorder %s36, 0
      %p255 = por %p253, %p254
      %p256 = scmp.ne.s32.totalorder %s242, %s243
      %p257 = scmp.eq.s32.totalorder %s37, 1
      %p258 = por %p256, %p257
      %p260 = scmp.ne.s32.totalorder %s243, %s259
      %p261 = scmp.eq.s32.totalorder %s37, 0
      %p262 = por %p260, %p261
      %s263 = ssub.s32 %s31, %s38
      %p264 = scmp.eq.s32.totalorder %s263, 0
      %s266 = sadd.s32 %s265, 1
      %s267 = scalar_select %p264, %s265, %s266
      %p270 = pneg %p264
      %p271 = scmp.eq.s32.totalorder %s31, 1
      %p272 = por %p270, %p271
      %p273 = scmp.ne.s32.totalorder %s265, %s268
      %p274 = scmp.eq.s32.totalorder %s31, 0
      %p275 = por %p273, %p274
      %p276 = scmp.ne.s32.totalorder %s265, %s268
      %p277 = scmp.eq.s32.totalorder %s36, 1
      %p278 = por %p276, %p277
      %p279 = scmp.ne.s32.totalorder %s268, %s269
      %p280 = scmp.eq.s32.totalorder %s36, 0
      %p281 = por %p279, %p280
      %p282 = scmp.ne.s32.totalorder %s268, %s269
      %p283 = scmp.eq.s32.totalorder %s37, 1
      %p284 = por %p282, %p283
      %p286 = scmp.ne.s32.totalorder %s269, %s285
      %p287 = scmp.eq.s32.totalorder %s37, 0
      %p288 = por %p286, %p287
      %s289 = ssub.s32 %s31, %s38
      %p290 = scmp.eq.s32.totalorder %s289, 0
      %s292 = sadd.s32 %s291, 1
      %s293 = scalar_select %p290, %s291, %s292
      %p296 = pneg %p290
      %p297 = scmp.eq.s32.totalorder %s31, 1
      %p298 = por %p296, %p297
      %p299 = scmp.ne.s32.totalorder %s291, %s294
      %p300 = scmp.eq.s32.totalorder %s31, 0
      %p301 = por %p299, %p300
      %p302 = scmp.ne.s32.totalorder %s291, %s294
      %p303 = scmp.eq.s32.totalorder %s36, 1
      %p304 = por %p302, %p303
      %p305 = scmp.ne.s32.totalorder %s294, %s295
      %p306 = scmp.eq.s32.totalorder %s36, 0
      %p307 = por %p305, %p306
      %p308 = scmp.ne.s32.totalorder %s294, %s295
      %p309 = scmp.eq.s32.totalorder %s37, 1
      %p310 = por %p308, %p309
      %p312 = scmp.ne.s32.totalorder %s295, %s311
      %p313 = scmp.eq.s32.totalorder %s37, 0
      %p314 = por %p312, %p313
      %s315 = ssub.s32 %s31, %s38
      %p316 = scmp.eq.s32.totalorder %s315, 0
      %s318 = sadd.s32 %s317, 1
      %s319 = scalar_select %p316, %s317, %s318
      %p322 = pneg %p316
      %p323 = scmp.eq.s32.totalorder %s31, 1
      %p324 = por %p322, %p323
      %p325 = scmp.ne.s32.totalorder %s317, %s320
      %p326 = scmp.eq.s32.totalorder %s31, 0
      %p327 = por %p325, %p326
      %p328 = scmp.ne.s32.totalorder %s317, %s320
      %p329 = scmp.eq.s32.totalorder %s36, 1
      %p330 = por %p328, %p329
      %p331 = scmp.ne.s32.totalorder %s320, %s321
      %p332 = scmp.eq.s32.totalorder %s36, 0
      %p333 = por %p331, %p332
      %p334 = scmp.ne.s32.totalorder %s320, %s321
      %p335 = scmp.eq.s32.totalorder %s37, 1
      %p336 = por %p334, %p335
      %p338 = scmp.ne.s32.totalorder %s321, %s337
      %p339 = scmp.eq.s32.totalorder %s37, 0
      %p340 = por %p338, %p339
      %s341 = ssub.s32 %s31, %s38
      %p342 = scmp.eq.s32.totalorder %s341, 0
      %s344 = sadd.s32 %s343, 1
      %s345 = scalar_select %p342, %s343, %s344
      %p348 = pneg %p342
      %p349 = scmp.eq.s32.totalorder %s31, 1
      %p350 = por %p348, %p349
      %p351 = scmp.ne.s32.totalorder %s343, %s346
      %p352 = scmp.eq.s32.totalorder %s31, 0
      %p353 = por %p351, %p352
      %p354 = scmp.ne.s32.totalorder %s343, %s346
      %p355 = scmp.eq.s32.totalorder %s36, 1
      %p356 = por %p354, %p355
      %p357 = scmp.ne.s32.totalorder %s346, %s347
      %p358 = scmp.eq.s32.totalorder %s36, 0
      %p359 = por %p357, %p358
      %p360 = scmp.ne.s32.totalorder %s346, %s347
      %p361 = scmp.eq.s32.totalorder %s37, 1
      %p362 = por %p360, %p361
      %p364 = scmp.ne.s32.totalorder %s347, %s363
      %p365 = scmp.eq.s32.totalorder %s37, 0
      %p366 = por %p364, %p365
      %s367 = ssub.s32 %s31, %s38
      %p368 = scmp.eq.s32.totalorder %s367, 0
      %s370 = sadd.s32 %s369, 1
      %s371 = scalar_select %p368, %s369, %s370
      %p374 = pneg %p368
      %p375 = scmp.eq.s32.totalorder %s31, 1
      %p376 = por %p374, %p375
      %p377 = scmp.ne.s32.totalorder %s369, %s372
      %p378 = scmp.eq.s32.totalorder %s31, 0
      %p379 = por %p377, %p378
      %p380 = scmp.ne.s32.totalorder %s369, %s372
      %p381 = scmp.eq.s32.totalorder %s36, 1
      %p382 = por %p380, %p381
      %p383 = scmp.ne.s32.totalorder %s372, %s373
      %p384 = scmp.eq.s32.totalorder %s36, 0
      %p385 = por %p383, %p384
      %p386 = scmp.ne.s32.totalorder %s372, %s373
      %p387 = scmp.eq.s32.totalorder %s37, 1
      %p388 = por %p386, %p387
      %p390 = scmp.ne.s32.totalorder %s373, %s389
      %p391 = scmp.eq.s32.totalorder %s37, 0
      %p392 = por %p390, %p391
      %s394 = sadd.s32 %s393, 1
      %p397 = scmp.eq.s32.totalorder %s31, 1
      %p398 = scmp.ne.s32.totalorder %s393, %s395
      %p399 = scmp.eq.s32.totalorder %s31, 0
      %p400 = por %p398, %p399
      %p401 = scmp.ne.s32.totalorder %s393, %s395
      %p402 = scmp.eq.s32.totalorder %s36, 1
      %p403 = por %p401, %p402
      %p404 = scmp.ne.s32.totalorder %s395, %s396
      %p405 = scmp.eq.s32.totalorder %s36, 0
      %p406 = por %p404, %p405
      %p407 = scmp.ne.s32.totalorder %s395, %s396
      %p408 = scmp.eq.s32.totalorder %s37, 1
      %p409 = por %p407, %p408
      %p411 = scmp.ne.s32.totalorder %s396, %s410
      %p412 = scmp.eq.s32.totalorder %s37, 0
      %p413 = por %p411, %p412
      %s415 = sadd.s32 %s414, 1
      %p418 = scmp.eq.s32.totalorder %s31, 1
      %p419 = scmp.ne.s32.totalorder %s414, %s416
      %p420 = scmp.eq.s32.totalorder %s31, 0
      %p421 = por %p419, %p420
      %p422 = scmp.ne.s32.totalorder %s414, %s416
      %p423 = scmp.eq.s32.totalorder %s36, 1
      %p424 = por %p422, %p423
      %p425 = scmp.ne.s32.totalorder %s416, %s417
      %p426 = scmp.eq.s32.totalorder %s36, 0
      %p427 = por %p425, %p426
      %p428 = scmp.ne.s32.totalorder %s416, %s417
      %p429 = scmp.eq.s32.totalorder %s37, 1
      %p430 = por %p428, %p429
      %p432 = scmp.ne.s32.totalorder %s417, %s431
      %p433 = scmp.eq.s32.totalorder %s37, 0
      %p434 = por %p432, %p433
      %s436 = sadd.s32 %s435, 1
      %p439 = scmp.eq.s32.totalorder %s31, 1
      %p440 = scmp.ne.s32.totalorder %s435, %s437
      %p441 = scmp.eq.s32.totalorder %s31, 0
      %p442 = por %p440, %p441
      %p443 = scmp.ne.s32.totalorder %s435, %s437
      %p444 = scmp.eq.s32.totalorder %s36, 1
      %p445 = por %p443, %p444
      %p446 = scmp.ne.s32.totalorder %s437, %s438
      %p447 = scmp.eq.s32.totalorder %s36, 0
      %p448 = por %p446, %p447
      %p449 = scmp.ne.s32.totalorder %s437, %s438
      %p450 = scmp.eq.s32.totalorder %s37, 1
      %p451 = por %p449, %p450
      %p453 = scmp.ne.s32.totalorder %s438, %s452
      %p454 = scmp.eq.s32.totalorder %s37, 0
      %p455 = por %p453, %p454
      %p456 = scmp.le.s32.totalorder 1, %s31
      %p457 = scmp.lt.s32.totalorder %s31, 3
      %p458 = pnand %p456, %p457
      %p459 = pneg %p458
      // Predicated region
      $region9: #{tpu_custom_call.1} parent=5 // pred_check
        _
      $region10: #{tpu_custom_call.1} parent=5 // pred_check_branch
        %461 = sbr.rel (%p458) target = $region12
      $region11: #{tpu_custom_call.1} parent=5 // pred_region
        %s462 = ssub.s32 %s31, 1
        // Predicated region
        $region13: #{tpu_custom_call.1} parent=11 // pred_check
          %p463 = pneg %p52
        $region14: #{tpu_custom_call.1} parent=11 // pred_check_branch
          %465 = sbr.rel (%p463) target = $region16
        $region15: #{tpu_custom_call.1} parent=11 // pred_region
          _
        $region16: #{tpu_custom_call.1} parent=11 // pred_fallthru
          _
        // Predicated region
        $region17: #{tpu_custom_call.1} parent=11 // pred_check
          %p466 = pneg %p73
        $region18: #{tpu_custom_call.1} parent=11 // pred_check_branch
          %468 = sbr.rel (%p466) target = $region20
        $region19: #{tpu_custom_call.1} parent=11 // pred_region
          _
        $region20: #{tpu_custom_call.1} parent=11 // pred_fallthru
          _
        // Predicated region
        $region21: #{tpu_custom_call.1} parent=11 // pred_check
          %p469 = pneg %p406
        $region22: #{tpu_custom_call.1} parent=11 // pred_check_branch
          %471 = sbr.rel (%p469) target = $region24
        $region23: #{tpu_custom_call.1} parent=11 // pred_region
          _
        $region24: #{tpu_custom_call.1} parent=11 // pred_fallthru
          _
        // Predicated region
        $region25: #{tpu_custom_call.1} parent=11 // pred_check
          %p472 = pneg %p427
        $region26: #{tpu_custom_call.1} parent=11 // pred_check_branch
          %474 = sbr.rel (%p472) target = $region28
        $region27: #{tpu_custom_call.1} parent=11 // pred_region
          _
        $region28: #{tpu_custom_call.1} parent=11 // pred_fallthru
          _
      $region12: #{tpu_custom_call.1} parent=5 // pred_fallthru
        _
      %p475 = scmp.lt.s32.totalorder %s31, 2
      // Predicated region
      $region29: #{tpu_custom_call.1} parent=5 // pred_check
        %p476 = pneg %p475
      $region30: #{tpu_custom_call.1} parent=5 // pred_check_branch
        %478 = sbr.rel (%p476) target = $region32
      $region31: #{tpu_custom_call.1} parent=5 // pred_region
        // Predicated region
        $region33: #{tpu_custom_call.1} parent=31 // pred_check
          %p479 = pneg %p93
        $region34: #{tpu_custom_call.1} parent=31 // pred_check_branch
          %481 = sbr.rel (%p479) target = $region36
        $region35: #{tpu_custom_call.1} parent=31 // pred_region
          %p482 = scmp.lt.s32.totalorder %s31, 1
          %s483 = scalar_select %p482, %s31, 1
          %s484 = smul.addr %s483, 12
          %s485 = smul.addr %s484, 4
          %s486 = scalar_lea.vmem %s4, %s485
        $region36: #{tpu_custom_call.1} parent=31 // pred_fallthru
          _
        // Predicated region
        $region37: #{tpu_custom_call.1} parent=31 // pred_check
          %p487 = pneg %p119
        $region38: #{tpu_custom_call.1} parent=31 // pred_check_branch
          %489 = sbr.rel (%p487) target = $region40
        $region39: #{tpu_custom_call.1} parent=31 // pred_region
          %p490 = scmp.lt.s32.totalorder %s31, 1
          %s491 = scalar_select %p490, %s31, 1
          %s492 = scalar_lea.vmem %s5, %s491
        $region40: #{tpu_custom_call.1} parent=31 // pred_fallthru
          _
        // Predicated region
        $region41: #{tpu_custom_call.1} parent=31 // pred_check
          %p493 = pneg %p145
        $region42: #{tpu_custom_call.1} parent=31 // pred_check_branch
          %495 = sbr.rel (%p493) target = $region44
        $region43: #{tpu_custom_call.1} parent=31 // pred_region
          %p496 = scmp.lt.s32.totalorder %s31, 1
          %s497 = scalar_select %p496, %s31, 1
          %s498 = smul.addr %s497, 16
          %s499 = smul.addr %s498, 4
          %s500 = scalar_lea.vmem %s6, %s499
        $region44: #{tpu_custom_call.1} parent=31 // pred_fallthru
          _
        // Predicated region
        $region45: #{tpu_custom_call.1} parent=31 // pred_check
          %p501 = pneg %p171
        $region46: #{tpu_custom_call.1} parent=31 // pred_check_branch
          %503 = sbr.rel (%p501) target = $region48
        $region47: #{tpu_custom_call.1} parent=31 // pred_region
          %p504 = scmp.lt.s32.totalorder %s31, 1
          %s505 = scalar_select %p504, %s31, 1
          %s506 = scalar_lea.vmem %s7, %s505
        $region48: #{tpu_custom_call.1} parent=31 // pred_fallthru
          _
        // Predicated region
        $region49: #{tpu_custom_call.1} parent=31 // pred_check
          %p507 = pneg %p197
        $region50: #{tpu_custom_call.1} parent=31 // pred_check_branch
          %509 = sbr.rel (%p507) target = $region52
        $region51: #{tpu_custom_call.1} parent=31 // pred_region
          %p510 = scmp.lt.s32.totalorder %s31, 1
          %s511 = scalar_select %p510, %s31, 1
          %s512 = scalar_lea.vmem %s8, %s511
        $region52: #{tpu_custom_call.1} parent=31 // pred_fallthru
          _
        // Predicated region
        $region53: #{tpu_custom_call.1} parent=31 // pred_check
          %p513 = pneg %p223
        $region54: #{tpu_custom_call.1} parent=31 // pred_check_branch
          %515 = sbr.rel (%p513) target = $region56
        $region55: #{tpu_custom_call.1} parent=31 // pred_region
          %p516 = scmp.lt.s32.totalorder %s31, 1
          %s517 = scalar_select %p516, %s31, 1
          %s518 = scalar_lea.vmem %s9, %s517
        $region56: #{tpu_custom_call.1} parent=31 // pred_fallthru
          _
        // Predicated region
        $region57: #{tpu_custom_call.1} parent=31 // pred_check
          %p519 = pneg %p249
        $region58: #{tpu_custom_call.1} parent=31 // pred_check_branch
          %521 = sbr.rel (%p519) target = $region60
        $region59: #{tpu_custom_call.1} parent=31 // pred_region
          %p522 = scmp.lt.s32.totalorder %s31, 1
          %s523 = scalar_select %p522, %s31, 1
          %s524 = scalar_lea.vmem %s10, %s523
        $region60: #{tpu_custom_call.1} parent=31 // pred_fallthru
          _
        // Predicated region
        $region61: #{tpu_custom_call.1} parent=31 // pred_check
          %p525 = pneg %p275
        $region62: #{tpu_custom_call.1} parent=31 // pred_check_branch
          %527 = sbr.rel (%p525) target = $region64
        $region63: #{tpu_custom_call.1} parent=31 // pred_region
          %p528 = scmp.lt.s32.totalorder %s31, 1
          %s529 = scalar_select %p528, %s31, 1
          %s530 = scalar_lea.vmem %s11, %s529
        $region64: #{tpu_custom_call.1} parent=31 // pred_fallthru
          _
        // Predicated region
        $region65: #{tpu_custom_call.1} parent=31 // pred_check
          %p531 = pneg %p301
        $region66: #{tpu_custom_call.1} parent=31 // pred_check_branch
          %533 = sbr.rel (%p531) target = $region68
        $region67: #{tpu_custom_call.1} parent=31 // pred_region
          %p534 = scmp.lt.s32.totalorder %s31, 1
          %s535 = scalar_select %p534, %s31, 1
          %s536 = smul.addr %s535, 16
          %s537 = smul.addr %s536, 4
          %s538 = scalar_lea.vmem %s12, %s537
        $region68: #{tpu_custom_call.1} parent=31 // pred_fallthru
          _
        // Predicated region
        $region69: #{tpu_custom_call.1} parent=31 // pred_check
          %p539 = pneg %p327
        $region70: #{tpu_custom_call.1} parent=31 // pred_check_branch
          %541 = sbr.rel (%p539) target = $region72
        $region71: #{tpu_custom_call.1} parent=31 // pred_region
          %p542 = scmp.lt.s32.totalorder %s31, 1
          %s543 = scalar_select %p542, %s31, 1
          %s544 = scalar_lea.vmem %s13, %s543
        $region72: #{tpu_custom_call.1} parent=31 // pred_fallthru
          _
        // Predicated region
        $region73: #{tpu_custom_call.1} parent=31 // pred_check
          %p545 = pneg %p353
        $region74: #{tpu_custom_call.1} parent=31 // pred_check_branch
          %547 = sbr.rel (%p545) target = $region76
        $region75: #{tpu_custom_call.1} parent=31 // pred_region
          %p548 = scmp.lt.s32.totalorder %s31, 1
          %s549 = scalar_select %p548, %s31, 1
          %s550 = smul.addr %s549, 4
          %s551 = smul.addr %s550, 4
          %s552 = scalar_lea.vmem %s14, %s551
        $region76: #{tpu_custom_call.1} parent=31 // pred_fallthru
          _
        // Predicated region
        $region77: #{tpu_custom_call.1} parent=31 // pred_check
          %p553 = pneg %p379
        $region78: #{tpu_custom_call.1} parent=31 // pred_check_branch
          %555 = sbr.rel (%p553) target = $region80
        $region79: #{tpu_custom_call.1} parent=31 // pred_region
          %p556 = scmp.lt.s32.totalorder %s31, 1
          %s557 = scalar_select %p556, %s31, 1
          %s558 = scalar_lea.vmem %s15, %s557
        $region80: #{tpu_custom_call.1} parent=31 // pred_fallthru
          _
      $region32: #{tpu_custom_call.1} parent=5 // pred_fallthru
        _
      %p559 = scmp.le.s32.totalorder 1, %s31
      %p560 = scmp.lt.s32.totalorder %s31, 3
      %p561 = pnand %p559, %p560
      %p562 = pneg %p561
      // Predicated region
      $region81: #{tpu_custom_call.1} parent=5 // pred_check
        _
      $region82: #{tpu_custom_call.1} parent=5 // pred_check_branch
        %564 = sbr.rel (%p561) target = $region84
      $region83: #{tpu_custom_call.1} parent=5 // pred_region
        %s565 = ssub.s32 %s31, 1
        %p566 = pneg %p52
        %p567 = pneg %p49
        %p568 = pneg %p73
        %p569 = pneg %p70
        %p570 = scmp.lt.s32.totalorder %s36, 1
        %s571 = scalar_select %p570, %s36, 1
        %s572 = smul.addr %s571, 12
        %s573 = smul.addr %s572, 4
        %s574 = scalar_lea.vmem %s4, %s573
        %p575 = pneg %p99
        %p576 = pneg %p96
        %p577 = scmp.lt.s32.totalorder %s36, 1
        %s578 = scalar_select %p577, %s36, 1
        %s579 = scalar_lea.vmem %s5, %s578
        %p580 = pneg %p125
        %p581 = pneg %p122
        %p582 = scmp.lt.s32.totalorder %s36, 1
        %s583 = scalar_select %p582, %s36, 1
        %s584 = smul.addr %s583, 16
        %s585 = smul.addr %s584, 4
        %s586 = scalar_lea.vmem %s6, %s585
        %p587 = pneg %p151
        %p588 = pneg %p148
        %p589 = scmp.lt.s32.totalorder %s36, 1
        %s590 = scalar_select %p589, %s36, 1
        %s591 = scalar_lea.vmem %s7, %s590
        %p592 = pneg %p177
        %p593 = pneg %p174
        %p594 = scmp.lt.s32.totalorder %s36, 1
        %s595 = scalar_select %p594, %s36, 1
        %s596 = scalar_lea.vmem %s8, %s595
        %p597 = pneg %p203
        %p598 = pneg %p200
        %p599 = scmp.lt.s32.totalorder %s36, 1
        %s600 = scalar_select %p599, %s36, 1
        %s601 = scalar_lea.vmem %s9, %s600
        %p602 = pneg %p229
        %p603 = pneg %p226
        %p604 = scmp.lt.s32.totalorder %s36, 1
        %s605 = scalar_select %p604, %s36, 1
        %s606 = scalar_lea.vmem %s10, %s605
        %p607 = pneg %p255
        %p608 = pneg %p252
        %p609 = scmp.lt.s32.totalorder %s36, 1
        %s610 = scalar_select %p609, %s36, 1
        %s611 = scalar_lea.vmem %s11, %s610
        %p612 = pneg %p281
        %p613 = pneg %p278
        %p614 = scmp.lt.s32.totalorder %s36, 1
        %s615 = scalar_select %p614, %s36, 1
        %s616 = smul.addr %s615, 16
        %s617 = smul.addr %s616, 4
        %s618 = scalar_lea.vmem %s12, %s617
        %p619 = pneg %p307
        %p620 = pneg %p304
        %p621 = scmp.lt.s32.totalorder %s36, 1
        %s622 = scalar_select %p621, %s36, 1
        %s623 = scalar_lea.vmem %s13, %s622
        %p624 = pneg %p333
        %p625 = pneg %p330
        %p626 = scmp.lt.s32.totalorder %s36, 1
        %s627 = scalar_select %p626, %s36, 1
        %s628 = smul.addr %s627, 4
        %s629 = smul.addr %s628, 4
        %s630 = scalar_lea.vmem %s14, %s629
        %p631 = pneg %p359
        %p632 = pneg %p356
        %p633 = scmp.lt.s32.totalorder %s36, 1
        %s634 = scalar_select %p633, %s36, 1
        %s635 = scalar_lea.vmem %s15, %s634
        %p636 = pneg %p385
        %p637 = pneg %p382
        %p638 = pneg %p406
        %p639 = pneg %p403
        %p640 = pneg %p427
        %p641 = pneg %p424
        %p642 = pneg %p448
        %p643 = pneg %p445
        %p644 = scmp.lt.s32.totalorder %s36, 1
        %s645 = scalar_select %p644, %s36, 1
        %s646 = smul.addr %s645, 12
        %s647 = smul.addr %s646, 4
        %s648 = scalar_lea.vmem %s4, %s647
        %p649 = scmp.lt.s32.totalorder %s36, 1
        %s650 = scalar_select %p649, %s36, 1
        %s651 = scalar_lea.vmem %s5, %s650
        %p652 = scmp.lt.s32.totalorder %s36, 1
        %s653 = scalar_select %p652, %s36, 1
        %s654 = smul.addr %s653, 16
        %s655 = smul.addr %s654, 4
        %s656 = scalar_lea.vmem %s6, %s655
        %p657 = scmp.lt.s32.totalorder %s36, 1
        %s658 = scalar_select %p657, %s36, 1
        %s659 = scalar_lea.vmem %s7, %s658
        %p660 = scmp.lt.s32.totalorder %s36, 1
        %s661 = scalar_select %p660, %s36, 1
        %s662 = scalar_lea.vmem %s8, %s661
        %p663 = scmp.lt.s32.totalorder %s36, 1
        %s664 = scalar_select %p663, %s36, 1
        %s665 = scalar_lea.vmem %s9, %s664
        %p666 = scmp.lt.s32.totalorder %s36, 1
        %s667 = scalar_select %p666, %s36, 1
        %s668 = scalar_lea.vmem %s10, %s667
        %p669 = scmp.lt.s32.totalorder %s36, 1
        %s670 = scalar_select %p669, %s36, 1
        %s671 = scalar_lea.vmem %s11, %s670
        %p672 = scmp.lt.s32.totalorder %s36, 1
        %s673 = scalar_select %p672, %s36, 1
        %s674 = smul.addr %s673, 16
        %s675 = smul.addr %s674, 4
        %s676 = scalar_lea.vmem %s12, %s675
        %p677 = scmp.lt.s32.totalorder %s36, 1
        %s678 = scalar_select %p677, %s36, 1
        %s679 = scalar_lea.vmem %s13, %s678
        %p680 = scmp.lt.s32.totalorder %s36, 1
        %s681 = scalar_select %p680, %s36, 1
        %s682 = smul.addr %s681, 4
        %s683 = smul.addr %s682, 4
        %s684 = scalar_lea.vmem %s14, %s683
        %p685 = scmp.lt.s32.totalorder %s36, 1
        %s686 = scalar_select %p685, %s36, 1
        %s687 = scalar_lea.vmem %s15, %s686
        %p689 = scmp.eq.s32.totalorder %s36, 0
        // Predicated region
        $region85: #{tpu_custom_call.1} parent=83 // pred_check
          %p690 = pneg %p689
        $region86: #{tpu_custom_call.1} parent=83 // pred_check_branch
          %692 = sbr.rel (%p690) target = $region88
        $region87: #{tpu_custom_call.1} parent=83 // pred_region
          %s693 = sld [smem:[#allocation5]]
          %s694 = scalar_lea.vmem %s1, %s693
          %p696 = scmp.lt.u32.totalorder 1, 8
          %p697 = pneg %p696
          // Predicated region
          $region89: #{tpu_custom_call.1} parent=87 // pred_check
            _
          $region90: #{tpu_custom_call.1} parent=87 // pred_check_branch
            %699 = sbr.rel (%p696) target = $region92
          $region91: #{tpu_custom_call.1} parent=87 // pred_region
            %s715 = sand.u32 1, 7
            %p716 = scmp.eq.s32.totalorder %s715, 0
            %p717 = pneg %p716
            // Predicated region
            $region104: #{tpu_custom_call.1} parent=91 // pred_check
              _
            $region105: #{tpu_custom_call.1} parent=91 // pred_check_branch
              %719 = sbr.rel (%p716) target = $region107
            $region106: #{tpu_custom_call.1} parent=91 // pred_region
              %s720 = sand.u32 1, 7
              %s721 = ssub.s32 1, %s720
              %s722 = scalar_lea.vmem %s694, %s721
              %s723 = ssub.s32 1, %s720
              %s724 = scalar_lea.vmem [#allocation2], %s723
              %s725 = sshll.u32 1, %s720
              %s726 = ssub.s32 %s725, 1
              loop: start=0, step=1, limit=1
              $region108: #{tpu_custom_call.1} parent=106 // loop_pre_header
                _
              $region109: #{tpu_custom_call.1} parent=106 // loop_header
                %s728 = sphi 0, %s732
                %p729 = scmp.ge.s32.totalorder %s728, 1
                %s733 = sphi %s722, %s722
                %s734 = sphi %s724, %s724
              $region110: #{tpu_custom_call.1} parent=106 // loop_header_branch
                %731 = sbr.rel (%p729) target = $region114
              $region111: #{tpu_custom_call.1} parent=106 // loop_body
                %v735 = vld [vmem:[%s733] sm:%s726]
                %736 = vst [vmem:[%s734] sm:%s726] %v735
              $region112: #{tpu_custom_call.1} parent=106 // loop_footer
                %s732 = sadd.s32 1, %s728
              $region113: #{tpu_custom_call.1} parent=106 // loop_footer_branch
                %727 = sbr.rel target = $region109
              $region114: #{tpu_custom_call.1} parent=106 // loop_exit
                _
            $region107: #{tpu_custom_call.1} parent=91 // pred_fallthru
              _
          $region92: #{tpu_custom_call.1} parent=87 // pred_fallthru
            _
          // Predicated region
          $region93: #{tpu_custom_call.1} parent=87 // pred_check
            %p700 = pneg %p696
          $region94: #{tpu_custom_call.1} parent=87 // pred_check_branch
            %702 = sbr.rel (%p700) target = $region96
          $region95: #{tpu_custom_call.1} parent=87 // pred_region
            %s703 = sshll.u32 1, 1
            %s704 = ssub.s32 %s703, 1
            loop: start=0, step=1, limit=1
            $region97: #{tpu_custom_call.1} parent=95 // loop_pre_header
              _
            $region98: #{tpu_custom_call.1} parent=95 // loop_header
              %s706 = sphi 0, %s710
              %p707 = scmp.ge.s32.totalorder %s706, 1
              %s711 = sphi %s694, %s694
              %s712 = sphi [#allocation2], [#allocation2]
            $region99: #{tpu_custom_call.1} parent=95 // loop_header_branch
              %709 = sbr.rel (%p707) target = $region103
            $region100: #{tpu_custom_call.1} parent=95 // loop_body
              %v713 = vld [vmem:[%s711] sm:%s704]
              %714 = vst [vmem:[%s712] sm:%s704] %v713
            $region101: #{tpu_custom_call.1} parent=95 // loop_footer
              %s710 = sadd.s32 1, %s706
            $region102: #{tpu_custom_call.1} parent=95 // loop_footer_branch
              %705 = sbr.rel target = $region98
            $region103: #{tpu_custom_call.1} parent=95 // loop_exit
              _
          $region96: #{tpu_custom_call.1} parent=87 // pred_fallthru
            _
          // Predicated region
          $region115: #{tpu_custom_call.1} parent=87 // pred_check
            _
          $region116: #{tpu_custom_call.1} parent=87 // pred_check_branch
            %739 = sbr.rel (0) target = $region118
          $region117: #{tpu_custom_call.1} parent=87 // pred_region
            %740 = vsyncadd [#allocation3], 16
          $region118: #{tpu_custom_call.1} parent=87 // pred_fallthru
            _
          %s741 = sld [smem:[#allocation5 + $0x1]]
          %s742 = scalar_lea.vmem %s1, %s741
          %s743 = scalar_lea.vmem [#allocation2], 1
          %s744 = scalar_lea.sflag [#allocation3], 1
          %p746 = scmp.lt.u32.totalorder 1, 8
          %p747 = pneg %p746
          // Predicated region
          $region119: #{tpu_custom_call.1} parent=87 // pred_check
            _
          $region120: #{tpu_custom_call.1} parent=87 // pred_check_branch
            %749 = sbr.rel (%p746) target = $region122
          $region121: #{tpu_custom_call.1} parent=87 // pred_region
            %s765 = sand.u32 1, 7
            %p766 = scmp.eq.s32.totalorder %s765, 0
            %p767 = pneg %p766
            // Predicated region
            $region134: #{tpu_custom_call.1} parent=121 // pred_check
              _
            $region135: #{tpu_custom_call.1} parent=121 // pred_check_branch
              %769 = sbr.rel (%p766) target = $region137
            $region136: #{tpu_custom_call.1} parent=121 // pred_region
              %s770 = sand.u32 1, 7
              %s771 = ssub.s32 1, %s770
              %s772 = scalar_lea.vmem %s742, %s771
              %s773 = ssub.s32 1, %s770
              %s774 = scalar_lea.vmem %s743, %s773 [#allocation2]
              %s775 = sshll.u32 1, %s770
              %s776 = ssub.s32 %s775, 1
              loop: start=0, step=1, limit=1
              $region138: #{tpu_custom_call.1} parent=136 // loop_pre_header
                _
              $region139: #{tpu_custom_call.1} parent=136 // loop_header
                %s778 = sphi 0, %s782
                %p779 = scmp.ge.s32.totalorder %s778, 1
                %s783 = sphi %s772, %s772
                %s784 = sphi %s774, %s774
              $region140: #{tpu_custom_call.1} parent=136 // loop_header_branch
                %781 = sbr.rel (%p779) target = $region144
              $region141: #{tpu_custom_call.1} parent=136 // loop_body
                %v785 = vld [vmem:[%s783] sm:%s776]
                %786 = vst [vmem:[%s784] sm:%s776] %v785
              $region142: #{tpu_custom_call.1} parent=136 // loop_footer
                %s782 = sadd.s32 1, %s778
              $region143: #{tpu_custom_call.1} parent=136 // loop_footer_branch
                %777 = sbr.rel target = $region139
              $region144: #{tpu_custom_call.1} parent=136 // loop_exit
                _
            $region137: #{tpu_custom_call.1} parent=121 // pred_fallthru
              _
          $region122: #{tpu_custom_call.1} parent=87 // pred_fallthru
            _
          // Predicated region
          $region123: #{tpu_custom_call.1} parent=87 // pred_check
            %p750 = pneg %p746
          $region124: #{tpu_custom_call.1} parent=87 // pred_check_branch
            %752 = sbr.rel (%p750) target = $region126
          $region125: #{tpu_custom_call.1} parent=87 // pred_region
            %s753 = sshll.u32 1, 1
            %s754 = ssub.s32 %s753, 1
            loop: start=0, step=1, limit=1
            $region127: #{tpu_custom_call.1} parent=125 // loop_pre_header
              _
            $region128: #{tpu_custom_call.1} parent=125 // loop_header
              %s756 = sphi 0, %s760
              %p757 = scmp.ge.s32.totalorder %s756, 1
              %s761 = sphi %s742, %s742
              %s762 = sphi %s743, %s743
            $region129: #{tpu_custom_call.1} parent=125 // loop_header_branch
              %759 = sbr.rel (%p757) target = $region133
            $region130: #{tpu_custom_call.1} parent=125 // loop_body
              %v763 = vld [vmem:[%s761] sm:%s754]
              %764 = vst [vmem:[%s762] sm:%s754] %v763
            $region131: #{tpu_custom_call.1} parent=125 // loop_footer
              %s760 = sadd.s32 1, %s756
            $region132: #{tpu_custom_call.1} parent=125 // loop_footer_branch
              %755 = sbr.rel target = $region128
            $region133: #{tpu_custom_call.1} parent=125 // loop_exit
              _
          $region126: #{tpu_custom_call.1} parent=87 // pred_fallthru
            _
          // Predicated region
          $region145: #{tpu_custom_call.1} parent=87 // pred_check
            _
          $region146: #{tpu_custom_call.1} parent=87 // pred_check_branch
            %789 = sbr.rel (0) target = $region148
          $region147: #{tpu_custom_call.1} parent=87 // pred_region
            %790 = vsyncadd %s744, 16
          $region148: #{tpu_custom_call.1} parent=87 // pred_fallthru
            _
          %s791 = sld [smem:[#allocation5 + $0x2]]
          %s792 = scalar_lea.vmem %s1, %s791
          %s793 = scalar_lea.vmem [#allocation2], 2
          %s794 = scalar_lea.sflag [#allocation3], 2
          %p796 = scmp.lt.u32.totalorder 1, 8
          %p797 = pneg %p796
          // Predicated region
          $region149: #{tpu_custom_call.1} parent=87 // pred_check
            _
          $region150: #{tpu_custom_call.1} parent=87 // pred_check_branch
            %799 = sbr.rel (%p796) target = $region152
          $region151: #{tpu_custom_call.1} parent=87 // pred_region
            %s815 = sand.u32 1, 7
            %p816 = scmp.eq.s32.totalorder %s815, 0
            %p817 = pneg %p816
            // Predicated region
            $region164: #{tpu_custom_call.1} parent=151 // pred_check
              _
            $region165: #{tpu_custom_call.1} parent=151 // pred_check_branch
              %819 = sbr.rel (%p816) target = $region167
            $region166: #{tpu_custom_call.1} parent=151 // pred_region
              %s820 = sand.u32 1, 7
              %s821 = ssub.s32 1, %s820
              %s822 = scalar_lea.vmem %s792, %s821
              %s823 = ssub.s32 1, %s820
              %s824 = scalar_lea.vmem %s793, %s823 [#allocation2]
              %s825 = sshll.u32 1, %s820
              %s826 = ssub.s32 %s825, 1
              loop: start=0, step=1, limit=1
              $region168: #{tpu_custom_call.1} parent=166 // loop_pre_header
                _
              $region169: #{tpu_custom_call.1} parent=166 // loop_header
                %s828 = sphi 0, %s832
                %p829 = scmp.ge.s32.totalorder %s828, 1
                %s833 = sphi %s822, %s822
                %s834 = sphi %s824, %s824
              $region170: #{tpu_custom_call.1} parent=166 // loop_header_branch
                %831 = sbr.rel (%p829) target = $region174
              $region171: #{tpu_custom_call.1} parent=166 // loop_body
                %v835 = vld [vmem:[%s833] sm:%s826]
                %836 = vst [vmem:[%s834] sm:%s826] %v835
              $region172: #{tpu_custom_call.1} parent=166 // loop_footer
                %s832 = sadd.s32 1, %s828
              $region173: #{tpu_custom_call.1} parent=166 // loop_footer_branch
                %827 = sbr.rel target = $region169
              $region174: #{tpu_custom_call.1} parent=166 // loop_exit
                _
            $region167: #{tpu_custom_call.1} parent=151 // pred_fallthru
              _
          $region152: #{tpu_custom_call.1} parent=87 // pred_fallthru
            _
          // Predicated region
          $region153: #{tpu_custom_call.1} parent=87 // pred_check
            %p800 = pneg %p796
          $region154: #{tpu_custom_call.1} parent=87 // pred_check_branch
            %802 = sbr.rel (%p800) target = $region156
          $region155: #{tpu_custom_call.1} parent=87 // pred_region
            %s803 = sshll.u32 1, 1
            %s804 = ssub.s32 %s803, 1
            loop: start=0, step=1, limit=1
            $region157: #{tpu_custom_call.1} parent=155 // loop_pre_header
              _
            $region158: #{tpu_custom_call.1} parent=155 // loop_header
              %s806 = sphi 0, %s810
              %p807 = scmp.ge.s32.totalorder %s806, 1
              %s811 = sphi %s792, %s792
              %s812 = sphi %s793, %s793
            $region159: #{tpu_custom_call.1} parent=155 // loop_header_branch
              %809 = sbr.rel (%p807) target = $region163
            $region160: #{tpu_custom_call.1} parent=155 // loop_body
              %v813 = vld [vmem:[%s811] sm:%s804]
              %814 = vst [vmem:[%s812] sm:%s804] %v813
            $region161: #{tpu_custom_call.1} parent=155 // loop_footer
              %s810 = sadd.s32 1, %s806
            $region162: #{tpu_custom_call.1} parent=155 // loop_footer_branch
              %805 = sbr.rel target = $region158
            $region163: #{tpu_custom_call.1} parent=155 // loop_exit
              _
          $region156: #{tpu_custom_call.1} parent=87 // pred_fallthru
            _
          // Predicated region
          $region175: #{tpu_custom_call.1} parent=87 // pred_check
            _
          $region176: #{tpu_custom_call.1} parent=87 // pred_check_branch
            %839 = sbr.rel (0) target = $region178
          $region177: #{tpu_custom_call.1} parent=87 // pred_region
            %840 = vsyncadd %s794, 16
          $region178: #{tpu_custom_call.1} parent=87 // pred_fallthru
            _
          %s841 = sld [smem:[#allocation5 + $0x3]]
          %s842 = scalar_lea.vmem %s1, %s841
          %s843 = scalar_lea.vmem [#allocation2], 3
          %s844 = scalar_lea.sflag [#allocation3], 3
          %p846 = scmp.lt.u32.totalorder 1, 8
          %p847 = pneg %p846
          // Predicated region
          $region179: #{tpu_custom_call.1} parent=87 // pred_check
            _
          $region180: #{tpu_custom_call.1} parent=87 // pred_check_branch
            %849 = sbr.rel (%p846) target = $region182
          $region181: #{tpu_custom_call.1} parent=87 // pred_region
            %s865 = sand.u32 1, 7
            %p866 = scmp.eq.s32.totalorder %s865, 0
            %p867 = pneg %p866
            // Predicated region
            $region194: #{tpu_custom_call.1} parent=181 // pred_check
              _
            $region195: #{tpu_custom_call.1} parent=181 // pred_check_branch
              %869 = sbr.rel (%p866) target = $region197
            $region196: #{tpu_custom_call.1} parent=181 // pred_region
              %s870 = sand.u32 1, 7
              %s871 = ssub.s32 1, %s870
              %s872 = scalar_lea.vmem %s842, %s871
              %s873 = ssub.s32 1, %s870
              %s874 = scalar_lea.vmem %s843, %s873 [#allocation2]
              %s875 = sshll.u32 1, %s870
              %s876 = ssub.s32 %s875, 1
              loop: start=0, step=1, limit=1
              $region198: #{tpu_custom_call.1} parent=196 // loop_pre_header
                _
              $region199: #{tpu_custom_call.1} parent=196 // loop_header
                %s878 = sphi 0, %s882
                %p879 = scmp.ge.s32.totalorder %s878, 1
                %s883 = sphi %s872, %s872
                %s884 = sphi %s874, %s874
              $region200: #{tpu_custom_call.1} parent=196 // loop_header_branch
                %881 = sbr.rel (%p879) target = $region204
              $region201: #{tpu_custom_call.1} parent=196 // loop_body
                %v885 = vld [vmem:[%s883] sm:%s876]
                %886 = vst [vmem:[%s884] sm:%s876] %v885
              $region202: #{tpu_custom_call.1} parent=196 // loop_footer
                %s882 = sadd.s32 1, %s878
              $region203: #{tpu_custom_call.1} parent=196 // loop_footer_branch
                %877 = sbr.rel target = $region199
              $region204: #{tpu_custom_call.1} parent=196 // loop_exit
                _
            $region197: #{tpu_custom_call.1} parent=181 // pred_fallthru
              _
          $region182: #{tpu_custom_call.1} parent=87 // pred_fallthru
            _
          // Predicated region
          $region183: #{tpu_custom_call.1} parent=87 // pred_check
            %p850 = pneg %p846
          $region184: #{tpu_custom_call.1} parent=87 // pred_check_branch
            %852 = sbr.rel (%p850) target = $region186
          $region185: #{tpu_custom_call.1} parent=87 // pred_region
            %s853 = sshll.u32 1, 1
            %s854 = ssub.s32 %s853, 1
            loop: start=0, step=1, limit=1
            $region187: #{tpu_custom_call.1} parent=185 // loop_pre_header
              _
            $region188: #{tpu_custom_call.1} parent=185 // loop_header
              %s856 = sphi 0, %s860
              %p857 = scmp.ge.s32.totalorder %s856, 1
              %s861 = sphi %s842, %s842
              %s862 = sphi %s843, %s843
            $region189: #{tpu_custom_call.1} parent=185 // loop_header_branch
              %859 = sbr.rel (%p857) target = $region193
            $region190: #{tpu_custom_call.1} parent=185 // loop_body
              %v863 = vld [vmem:[%s861] sm:%s854]
              %864 = vst [vmem:[%s862] sm:%s854] %v863
            $region191: #{tpu_custom_call.1} parent=185 // loop_footer
              %s860 = sadd.s32 1, %s856
            $region192: #{tpu_custom_call.1} parent=185 // loop_footer_branch
              %855 = sbr.rel target = $region188
            $region193: #{tpu_custom_call.1} parent=185 // loop_exit
              _
          $region186: #{tpu_custom_call.1} parent=87 // pred_fallthru
            _
          // Predicated region
          $region205: #{tpu_custom_call.1} parent=87 // pred_check
            _
          $region206: #{tpu_custom_call.1} parent=87 // pred_check_branch
            %889 = sbr.rel (0) target = $region208
          $region207: #{tpu_custom_call.1} parent=87 // pred_region
            %890 = vsyncadd %s844, 16
          $region208: #{tpu_custom_call.1} parent=87 // pred_fallthru
            _
          %s891 = sld [smem:[#allocation5 + $0x4]]
          %s892 = scalar_lea.vmem %s1, %s891
          %s893 = scalar_lea.vmem [#allocation2], 4
          %s894 = scalar_lea.sflag [#allocation3], 4
          %p896 = scmp.lt.u32.totalorder 1, 8
          %p897 = pneg %p896
          // Predicated region
          $region209: #{tpu_custom_call.1} parent=87 // pred_check
            _
          $region210: #{tpu_custom_call.1} parent=87 // pred_check_branch
            %899 = sbr.rel (%p896) target = $region212
          $region211: #{tpu_custom_call.1} parent=87 // pred_region
            %s915 = sand.u32 1, 7
            %p916 = scmp.eq.s32.totalorder %s915, 0
            %p917 = pneg %p916
            // Predicated region
            $region224: #{tpu_custom_call.1} parent=211 // pred_check
              _
            $region225: #{tpu_custom_call.1} parent=211 // pred_check_branch
              %919 = sbr.rel (%p916) target = $region227
            $region226: #{tpu_custom_call.1} parent=211 // pred_region
              %s920 = sand.u32 1, 7
              %s921 = ssub.s32 1, %s920
              %s922 = scalar_lea.vmem %s892, %s921
              %s923 = ssub.s32 1, %s920
              %s924 = scalar_lea.vmem %s893, %s923 [#allocation2]
              %s925 = sshll.u32 1, %s920
              %s926 = ssub.s32 %s925, 1
              loop: start=0, step=1, limit=1
              $region228: #{tpu_custom_call.1} parent=226 // loop_pre_header
                _
              $region229: #{tpu_custom_call.1} parent=226 // loop_header
                %s928 = sphi 0, %s932
                %p929 = scmp.ge.s32.totalorder %s928, 1
                %s933 = sphi %s922, %s922
                %s934 = sphi %s924, %s924
              $region230: #{tpu_custom_call.1} parent=226 // loop_header_branch
                %931 = sbr.rel (%p929) target = $region234
              $region231: #{tpu_custom_call.1} parent=226 // loop_body
                %v935 = vld [vmem:[%s933] sm:%s926]
                %936 = vst [vmem:[%s934] sm:%s926] %v935
              $region232: #{tpu_custom_call.1} parent=226 // loop_footer
                %s932 = sadd.s32 1, %s928
              $region233: #{tpu_custom_call.1} parent=226 // loop_footer_branch
                %927 = sbr.rel target = $region229
              $region234: #{tpu_custom_call.1} parent=226 // loop_exit
                _
            $region227: #{tpu_custom_call.1} parent=211 // pred_fallthru
              _
          $region212: #{tpu_custom_call.1} parent=87 // pred_fallthru
            _
          // Predicated region
          $region213: #{tpu_custom_call.1} parent=87 // pred_check
            %p900 = pneg %p896
          $region214: #{tpu_custom_call.1} parent=87 // pred_check_branch
            %902 = sbr.rel (%p900) target = $region216
          $region215: #{tpu_custom_call.1} parent=87 // pred_region
            %s903 = sshll.u32 1, 1
            %s904 = ssub.s32 %s903, 1
            loop: start=0, step=1, limit=1
            $region217: #{tpu_custom_call.1} parent=215 // loop_pre_header
              _
            $region218: #{tpu_custom_call.1} parent=215 // loop_header
              %s906 = sphi 0, %s910
              %p907 = scmp.ge.s32.totalorder %s906, 1
              %s911 = sphi %s892, %s892
              %s912 = sphi %s893, %s893
            $region219: #{tpu_custom_call.1} parent=215 // loop_header_branch
              %909 = sbr.rel (%p907) target = $region223
            $region220: #{tpu_custom_call.1} parent=215 // loop_body
              %v913 = vld [vmem:[%s911] sm:%s904]
              %914 = vst [vmem:[%s912] sm:%s904] %v913
            $region221: #{tpu_custom_call.1} parent=215 // loop_footer
              %s910 = sadd.s32 1, %s906
            $region222: #{tpu_custom_call.1} parent=215 // loop_footer_branch
              %905 = sbr.rel target = $region218
            $region223: #{tpu_custom_call.1} parent=215 // loop_exit
              _
          $region216: #{tpu_custom_call.1} parent=87 // pred_fallthru
            _
          // Predicated region
          $region235: #{tpu_custom_call.1} parent=87 // pred_check
            _
          $region236: #{tpu_custom_call.1} parent=87 // pred_check_branch
            %939 = sbr.rel (0) target = $region238
          $region237: #{tpu_custom_call.1} parent=87 // pred_region
            %940 = vsyncadd %s894, 16
          $region238: #{tpu_custom_call.1} parent=87 // pred_fallthru
            _
          %s941 = sld [smem:[#allocation5 + $0x5]]
          %s942 = scalar_lea.vmem %s1, %s941
          %s943 = scalar_lea.vmem [#allocation2], 5
          %s944 = scalar_lea.sflag [#allocation3], 5
          %p946 = scmp.lt.u32.totalorder 1, 8
          %p947 = pneg %p946
          // Predicated region
          $region239: #{tpu_custom_call.1} parent=87 // pred_check
            _
          $region240: #{tpu_custom_call.1} parent=87 // pred_check_branch
            %949 = sbr.rel (%p946) target = $region242
          $region241: #{tpu_custom_call.1} parent=87 // pred_region
            %s965 = sand.u32 1, 7
            %p966 = scmp.eq.s32.totalorder %s965, 0
            %p967 = pneg %p966
            // Predicated region
            $region254: #{tpu_custom_call.1} parent=241 // pred_check
              _
            $region255: #{tpu_custom_call.1} parent=241 // pred_check_branch
              %969 = sbr.rel (%p966) target = $region257
            $region256: #{tpu_custom_call.1} parent=241 // pred_region
              %s970 = sand.u32 1, 7
              %s971 = ssub.s32 1, %s970
              %s972 = scalar_lea.vmem %s942, %s971
              %s973 = ssub.s32 1, %s970
              %s974 = scalar_lea.vmem %s943, %s973 [#allocation2]
              %s975 = sshll.u32 1, %s970
              %s976 = ssub.s32 %s975, 1
              loop: start=0, step=1, limit=1
              $region258: #{tpu_custom_call.1} parent=256 // loop_pre_header
                _
              $region259: #{tpu_custom_call.1} parent=256 // loop_header
                %s978 = sphi 0, %s982
                %p979 = scmp.ge.s32.totalorder %s978, 1
                %s983 = sphi %s972, %s972
                %s984 = sphi %s974, %s974
              $region260: #{tpu_custom_call.1} parent=256 // loop_header_branch
                %981 = sbr.rel (%p979) target = $region264
              $region261: #{tpu_custom_call.1} parent=256 // loop_body
                %v985 = vld [vmem:[%s983] sm:%s976]
                %986 = vst [vmem:[%s984] sm:%s976] %v985
              $region262: #{tpu_custom_call.1} parent=256 // loop_footer
                %s982 = sadd.s32 1, %s978
              $region263: #{tpu_custom_call.1} parent=256 // loop_footer_branch
                %977 = sbr.rel target = $region259
              $region264: #{tpu_custom_call.1} parent=256 // loop_exit
                _
            $region257: #{tpu_custom_call.1} parent=241 // pred_fallthru
              _
          $region242: #{tpu_custom_call.1} parent=87 // pred_fallthru
            _
          // Predicated region
          $region243: #{tpu_custom_call.1} parent=87 // pred_check
            %p950 = pneg %p946
          $region244: #{tpu_custom_call.1} parent=87 // pred_check_branch
            %952 = sbr.rel (%p950) target = $region246
          $region245: #{tpu_custom_call.1} parent=87 // pred_region
            %s953 = sshll.u32 1, 1
            %s954 = ssub.s32 %s953, 1
            loop: start=0, step=1, limit=1
            $region247: #{tpu_custom_call.1} parent=245 // loop_pre_header
              _
            $region248: #{tpu_custom_call.1} parent=245 // loop_header
              %s956 = sphi 0, %s960
              %p957 = scmp.ge.s32.totalorder %s956, 1
              %s961 = sphi %s942, %s942
              %s962 = sphi %s943, %s943
            $region249: #{tpu_custom_call.1} parent=245 // loop_header_branch
              %959 = sbr.rel (%p957) target = $region253
            $region250: #{tpu_custom_call.1} parent=245 // loop_body
              %v963 = vld [vmem:[%s961] sm:%s954]
              %964 = vst [vmem:[%s962] sm:%s954] %v963
            $region251: #{tpu_custom_call.1} parent=245 // loop_footer
              %s960 = sadd.s32 1, %s956
            $region252: #{tpu_custom_call.1} parent=245 // loop_footer_branch
              %955 = sbr.rel target = $region248
            $region253: #{tpu_custom_call.1} parent=245 // loop_exit
              _
          $region246: #{tpu_custom_call.1} parent=87 // pred_fallthru
            _
          // Predicated region
          $region265: #{tpu_custom_call.1} parent=87 // pred_check
            _
          $region266: #{tpu_custom_call.1} parent=87 // pred_check_branch
            %989 = sbr.rel (0) target = $region268
          $region267: #{tpu_custom_call.1} parent=87 // pred_region
            %990 = vsyncadd %s944, 16
          $region268: #{tpu_custom_call.1} parent=87 // pred_fallthru
            _
          %s991 = sld [smem:[#allocation5 + $0x6]]
          %s992 = scalar_lea.vmem %s1, %s991
          %s993 = scalar_lea.vmem [#allocation2], 6
          %s994 = scalar_lea.sflag [#allocation3], 6
          %p996 = scmp.lt.u32.totalorder 1, 8
          %p997 = pneg %p996
          // Predicated region
          $region269: #{tpu_custom_call.1} parent=87 // pred_check
            _
          $region270: #{tpu_custom_call.1} parent=87 // pred_check_branch
            %999 = sbr.rel (%p996) target = $region272
          $region271: #{tpu_custom_call.1} parent=87 // pred_region
            %s1015 = sand.u32 1, 7
            %p1016 = scmp.eq.s32.totalorder %s1015, 0
            %p1017 = pneg %p1016
            // Predicated region
            $region284: #{tpu_custom_call.1} parent=271 // pred_check
              _
            $region285: #{tpu_custom_call.1} parent=271 // pred_check_branch
              %1019 = sbr.rel (%p1016) target = $region287
            $region286: #{tpu_custom_call.1} parent=271 // pred_region
              %s1020 = sand.u32 1, 7
              %s1021 = ssub.s32 1, %s1020
              %s1022 = scalar_lea.vmem %s992, %s1021
              %s1023 = ssub.s32 1, %s1020
              %s1024 = scalar_lea.vmem %s993, %s1023 [#allocation2]
              %s1025 = sshll.u32 1, %s1020
              %s1026 = ssub.s32 %s1025, 1
              loop: start=0, step=1, limit=1
              $region288: #{tpu_custom_call.1} parent=286 // loop_pre_header
                _
              $region289: #{tpu_custom_call.1} parent=286 // loop_header
                %s1028 = sphi 0, %s1032
                %p1029 = scmp.ge.s32.totalorder %s1028, 1
                %s1033 = sphi %s1022, %s1022
                %s1034 = sphi %s1024, %s1024
              $region290: #{tpu_custom_call.1} parent=286 // loop_header_branch
                %1031 = sbr.rel (%p1029) target = $region294
              $region291: #{tpu_custom_call.1} parent=286 // loop_body
                %v1035 = vld [vmem:[%s1033] sm:%s1026]
                %1036 = vst [vmem:[%s1034] sm:%s1026] %v1035
              $region292: #{tpu_custom_call.1} parent=286 // loop_footer
                %s1032 = sadd.s32 1, %s1028
              $region293: #{tpu_custom_call.1} parent=286 // loop_footer_branch
                %1027 = sbr.rel target = $region289
              $region294: #{tpu_custom_call.1} parent=286 // loop_exit
                _
            $region287: #{tpu_custom_call.1} parent=271 // pred_fallthru
              _
          $region272: #{tpu_custom_call.1} parent=87 // pred_fallthru
            _
          // Predicated region
          $region273: #{tpu_custom_call.1} parent=87 // pred_check
            %p1000 = pneg %p996
          $region274: #{tpu_custom_call.1} parent=87 // pred_check_branch
            %1002 = sbr.rel (%p1000) target = $region276
          $region275: #{tpu_custom_call.1} parent=87 // pred_region
            %s1003 = sshll.u32 1, 1
            %s1004 = ssub.s32 %s1003, 1
            loop: start=0, step=1, limit=1
            $region277: #{tpu_custom_call.1} parent=275 // loop_pre_header
              _
            $region278: #{tpu_custom_call.1} parent=275 // loop_header
              %s1006 = sphi 0, %s1010
              %p1007 = scmp.ge.s32.totalorder %s1006, 1
              %s1011 = sphi %s992, %s992
              %s1012 = sphi %s993, %s993
            $region279: #{tpu_custom_call.1} parent=275 // loop_header_branch
              %1009 = sbr.rel (%p1007) target = $region283
            $region280: #{tpu_custom_call.1} parent=275 // loop_body
              %v1013 = vld [vmem:[%s1011] sm:%s1004]
              %1014 = vst [vmem:[%s1012] sm:%s1004] %v1013
            $region281: #{tpu_custom_call.1} parent=275 // loop_footer
              %s1010 = sadd.s32 1, %s1006
            $region282: #{tpu_custom_call.1} parent=275 // loop_footer_branch
              %1005 = sbr.rel target = $region278
            $region283: #{tpu_custom_call.1} parent=275 // loop_exit
              _
          $region276: #{tpu_custom_call.1} parent=87 // pred_fallthru
            _
          // Predicated region
          $region295: #{tpu_custom_call.1} parent=87 // pred_check
            _
          $region296: #{tpu_custom_call.1} parent=87 // pred_check_branch
            %1039 = sbr.rel (0) target = $region298
          $region297: #{tpu_custom_call.1} parent=87 // pred_region
            %1040 = vsyncadd %s994, 16
          $region298: #{tpu_custom_call.1} parent=87 // pred_fallthru
            _
          %s1041 = sld [smem:[#allocation5 + $0x7]]
          %s1042 = scalar_lea.vmem %s1, %s1041
          %s1043 = scalar_lea.vmem [#allocation2], 7
          %s1044 = scalar_lea.sflag [#allocation3], 7
          %p1046 = scmp.lt.u32.totalorder 1, 8
          %p1047 = pneg %p1046
          // Predicated region
          $region299: #{tpu_custom_call.1} parent=87 // pred_check
            _
          $region300: #{tpu_custom_call.1} parent=87 // pred_check_branch
            %1049 = sbr.rel (%p1046) target = $region302
          $region301: #{tpu_custom_call.1} parent=87 // pred_region
            %s1065 = sand.u32 1, 7
            %p1066 = scmp.eq.s32.totalorder %s1065, 0
            %p1067 = pneg %p1066
            // Predicated region
            $region314: #{tpu_custom_call.1} parent=301 // pred_check
              _
            $region315: #{tpu_custom_call.1} parent=301 // pred_check_branch
              %1069 = sbr.rel (%p1066) target = $region317
            $region316: #{tpu_custom_call.1} parent=301 // pred_region
              %s1070 = sand.u32 1, 7
              %s1071 = ssub.s32 1, %s1070
              %s1072 = scalar_lea.vmem %s1042, %s1071
              %s1073 = ssub.s32 1, %s1070
              %s1074 = scalar_lea.vmem %s1043, %s1073 [#allocation2]
              %s1075 = sshll.u32 1, %s1070
              %s1076 = ssub.s32 %s1075, 1
              loop: start=0, step=1, limit=1
              $region318: #{tpu_custom_call.1} parent=316 // loop_pre_header
                _
              $region319: #{tpu_custom_call.1} parent=316 // loop_header
                %s1078 = sphi 0, %s1082
                %p1079 = scmp.ge.s32.totalorder %s1078, 1
                %s1083 = sphi %s1072, %s1072
                %s1084 = sphi %s1074, %s1074
              $region320: #{tpu_custom_call.1} parent=316 // loop_header_branch
                %1081 = sbr.rel (%p1079) target = $region324
              $region321: #{tpu_custom_call.1} parent=316 // loop_body
                %v1085 = vld [vmem:[%s1083] sm:%s1076]
                %1086 = vst [vmem:[%s1084] sm:%s1076] %v1085
              $region322: #{tpu_custom_call.1} parent=316 // loop_footer
                %s1082 = sadd.s32 1, %s1078
              $region323: #{tpu_custom_call.1} parent=316 // loop_footer_branch
                %1077 = sbr.rel target = $region319
              $region324: #{tpu_custom_call.1} parent=316 // loop_exit
                _
            $region317: #{tpu_custom_call.1} parent=301 // pred_fallthru
              _
          $region302: #{tpu_custom_call.1} parent=87 // pred_fallthru
            _
          // Predicated region
          $region303: #{tpu_custom_call.1} parent=87 // pred_check
            %p1050 = pneg %p1046
          $region304: #{tpu_custom_call.1} parent=87 // pred_check_branch
            %1052 = sbr.rel (%p1050) target = $region306
          $region305: #{tpu_custom_call.1} parent=87 // pred_region
            %s1053 = sshll.u32 1, 1
            %s1054 = ssub.s32 %s1053, 1
            loop: start=0, step=1, limit=1
            $region307: #{tpu_custom_call.1} parent=305 // loop_pre_header
              _
            $region308: #{tpu_custom_call.1} parent=305 // loop_header
              %s1056 = sphi 0, %s1060
              %p1057 = scmp.ge.s32.totalorder %s1056, 1
              %s1061 = sphi %s1042, %s1042
              %s1062 = sphi %s1043, %s1043
            $region309: #{tpu_custom_call.1} parent=305 // loop_header_branch
              %1059 = sbr.rel (%p1057) target = $region313
            $region310: #{tpu_custom_call.1} parent=305 // loop_body
              %v1063 = vld [vmem:[%s1061] sm:%s1054]
              %1064 = vst [vmem:[%s1062] sm:%s1054] %v1063
            $region311: #{tpu_custom_call.1} parent=305 // loop_footer
              %s1060 = sadd.s32 1, %s1056
            $region312: #{tpu_custom_call.1} parent=305 // loop_footer_branch
              %1055 = sbr.rel target = $region308
            $region313: #{tpu_custom_call.1} parent=305 // loop_exit
              _
          $region306: #{tpu_custom_call.1} parent=87 // pred_fallthru
            _
          // Predicated region
          $region325: #{tpu_custom_call.1} parent=87 // pred_check
            _
          $region326: #{tpu_custom_call.1} parent=87 // pred_check_branch
            %1089 = sbr.rel (0) target = $region328
          $region327: #{tpu_custom_call.1} parent=87 // pred_region
            %1090 = vsyncadd %s1044, 16
          $region328: #{tpu_custom_call.1} parent=87 // pred_fallthru
            _
          %s1091 = sld [smem:[#allocation5 + $0x8]]
          %s1092 = scalar_lea.vmem %s1, %s1091
          %s1093 = scalar_lea.vmem [#allocation2], 8
          %s1094 = scalar_lea.sflag [#allocation3], 8
          %p1096 = scmp.lt.u32.totalorder 1, 8
          %p1097 = pneg %p1096
          // Predicated region
          $region329: #{tpu_custom_call.1} parent=87 // pred_check
            _
          $region330: #{tpu_custom_call.1} parent=87 // pred_check_branch
            %1099 = sbr.rel (%p1096) target = $region332
          $region331: #{tpu_custom_call.1} parent=87 // pred_region
            %s1115 = sand.u32 1, 7
            %p1116 = scmp.eq.s32.totalorder %s1115, 0
            %p1117 = pneg %p1116
            // Predicated region
            $region344: #{tpu_custom_call.1} parent=331 // pred_check
              _
            $region345: #{tpu_custom_call.1} parent=331 // pred_check_branch
              %1119 = sbr.rel (%p1116) target = $region347
            $region346: #{tpu_custom_call.1} parent=331 // pred_region
              %s1120 = sand.u32 1, 7
              %s1121 = ssub.s32 1, %s1120
              %s1122 = scalar_lea.vmem %s1092, %s1121
              %s1123 = ssub.s32 1, %s1120
              %s1124 = scalar_lea.vmem %s1093, %s1123 [#allocation2]
              %s1125 = sshll.u32 1, %s1120
              %s1126 = ssub.s32 %s1125, 1
              loop: start=0, step=1, limit=1
              $region348: #{tpu_custom_call.1} parent=346 // loop_pre_header
                _
              $region349: #{tpu_custom_call.1} parent=346 // loop_header
                %s1128 = sphi 0, %s1132
                %p1129 = scmp.ge.s32.totalorder %s1128, 1
                %s1133 = sphi %s1122, %s1122
                %s1134 = sphi %s1124, %s1124
              $region350: #{tpu_custom_call.1} parent=346 // loop_header_branch
                %1131 = sbr.rel (%p1129) target = $region354
              $region351: #{tpu_custom_call.1} parent=346 // loop_body
                %v1135 = vld [vmem:[%s1133] sm:%s1126]
                %1136 = vst [vmem:[%s1134] sm:%s1126] %v1135
              $region352: #{tpu_custom_call.1} parent=346 // loop_footer
                %s1132 = sadd.s32 1, %s1128
              $region353: #{tpu_custom_call.1} parent=346 // loop_footer_branch
                %1127 = sbr.rel target = $region349
              $region354: #{tpu_custom_call.1} parent=346 // loop_exit
                _
            $region347: #{tpu_custom_call.1} parent=331 // pred_fallthru
              _
          $region332: #{tpu_custom_call.1} parent=87 // pred_fallthru
            _
          // Predicated region
          $region333: #{tpu_custom_call.1} parent=87 // pred_check
            %p1100 = pneg %p1096
          $region334: #{tpu_custom_call.1} parent=87 // pred_check_branch
            %1102 = sbr.rel (%p1100) target = $region336
          $region335: #{tpu_custom_call.1} parent=87 // pred_region
            %s1103 = sshll.u32 1, 1
            %s1104 = ssub.s32 %s1103, 1
            loop: start=0, step=1, limit=1
            $region337: #{tpu_custom_call.1} parent=335 // loop_pre_header
              _
            $region338: #{tpu_custom_call.1} parent=335 // loop_header
              %s1106 = sphi 0, %s1110
              %p1107 = scmp.ge.s32.totalorder %s1106, 1
              %s1111 = sphi %s1092, %s1092
              %s1112 = sphi %s1093, %s1093
            $region339: #{tpu_custom_call.1} parent=335 // loop_header_branch
              %1109 = sbr.rel (%p1107) target = $region343
            $region340: #{tpu_custom_call.1} parent=335 // loop_body
              %v1113 = vld [vmem:[%s1111] sm:%s1104]
              %1114 = vst [vmem:[%s1112] sm:%s1104] %v1113
            $region341: #{tpu_custom_call.1} parent=335 // loop_footer
              %s1110 = sadd.s32 1, %s1106
            $region342: #{tpu_custom_call.1} parent=335 // loop_footer_branch
              %1105 = sbr.rel target = $region338
            $region343: #{tpu_custom_call.1} parent=335 // loop_exit
              _
          $region336: #{tpu_custom_call.1} parent=87 // pred_fallthru
            _
          // Predicated region
          $region355: #{tpu_custom_call.1} parent=87 // pred_check
            _
          $region356: #{tpu_custom_call.1} parent=87 // pred_check_branch
            %1139 = sbr.rel (0) target = $region358
          $region357: #{tpu_custom_call.1} parent=87 // pred_region
            %1140 = vsyncadd %s1094, 16
          $region358: #{tpu_custom_call.1} parent=87 // pred_fallthru
            _
          %s1141 = sld [smem:[#allocation5 + $0x9]]
          %s1142 = scalar_lea.vmem %s1, %s1141
          %s1143 = scalar_lea.vmem [#allocation2], 9
          %s1144 = scalar_lea.sflag [#allocation3], 9
          %p1146 = scmp.lt.u32.totalorder 1, 8
          %p1147 = pneg %p1146
          // Predicated region
          $region359: #{tpu_custom_call.1} parent=87 // pred_check
            _
          $region360: #{tpu_custom_call.1} parent=87 // pred_check_branch
            %1149 = sbr.rel (%p1146) target = $region362
          $region361: #{tpu_custom_call.1} parent=87 // pred_region
            %s1165 = sand.u32 1, 7
            %p1166 = scmp.eq.s32.totalorder %s1165, 0
            %p1167 = pneg %p1166
            // Predicated region
            $region374: #{tpu_custom_call.1} parent=361 // pred_check
              _
            $region375: #{tpu_custom_call.1} parent=361 // pred_check_branch
              %1169 = sbr.rel (%p1166) target = $region377
            $region376: #{tpu_custom_call.1} parent=361 // pred_region
              %s1170 = sand.u32 1, 7
              %s1171 = ssub.s32 1, %s1170
              %s1172 = scalar_lea.vmem %s1142, %s1171
              %s1173 = ssub.s32 1, %s1170
              %s1174 = scalar_lea.vmem %s1143, %s1173 [#allocation2]
              %s1175 = sshll.u32 1, %s1170
              %s1176 = ssub.s32 %s1175, 1
              loop: start=0, step=1, limit=1
              $region378: #{tpu_custom_call.1} parent=376 // loop_pre_header
                _
              $region379: #{tpu_custom_call.1} parent=376 // loop_header
                %s1178 = sphi 0, %s1182
                %p1179 = scmp.ge.s32.totalorder %s1178, 1
                %s1183 = sphi %s1172, %s1172
                %s1184 = sphi %s1174, %s1174
              $region380: #{tpu_custom_call.1} parent=376 // loop_header_branch
                %1181 = sbr.rel (%p1179) target = $region384
              $region381: #{tpu_custom_call.1} parent=376 // loop_body
                %v1185 = vld [vmem:[%s1183] sm:%s1176]
                %1186 = vst [vmem:[%s1184] sm:%s1176] %v1185
              $region382: #{tpu_custom_call.1} parent=376 // loop_footer
                %s1182 = sadd.s32 1, %s1178
              $region383: #{tpu_custom_call.1} parent=376 // loop_footer_branch
                %1177 = sbr.rel target = $region379
              $region384: #{tpu_custom_call.1} parent=376 // loop_exit
                _
            $region377: #{tpu_custom_call.1} parent=361 // pred_fallthru
              _
          $region362: #{tpu_custom_call.1} parent=87 // pred_fallthru
            _
          // Predicated region
          $region363: #{tpu_custom_call.1} parent=87 // pred_check
            %p1150 = pneg %p1146
          $region364: #{tpu_custom_call.1} parent=87 // pred_check_branch
            %1152 = sbr.rel (%p1150) target = $region366
          $region365: #{tpu_custom_call.1} parent=87 // pred_region
            %s1153 = sshll.u32 1, 1
            %s1154 = ssub.s32 %s1153, 1
            loop: start=0, step=1, limit=1
            $region367: #{tpu_custom_call.1} parent=365 // loop_pre_header
              _
            $region368: #{tpu_custom_call.1} parent=365 // loop_header
              %s1156 = sphi 0, %s1160
              %p1157 = scmp.ge.s32.totalorder %s1156, 1
              %s1161 = sphi %s1142, %s1142
              %s1162 = sphi %s1143, %s1143
            $region369: #{tpu_custom_call.1} parent=365 // loop_header_branch
              %1159 = sbr.rel (%p1157) target = $region373
            $region370: #{tpu_custom_call.1} parent=365 // loop_body
              %v1163 = vld [vmem:[%s1161] sm:%s1154]
              %1164 = vst [vmem:[%s1162] sm:%s1154] %v1163
            $region371: #{tpu_custom_call.1} parent=365 // loop_footer
              %s1160 = sadd.s32 1, %s1156
            $region372: #{tpu_custom_call.1} parent=365 // loop_footer_branch
              %1155 = sbr.rel target = $region368
            $region373: #{tpu_custom_call.1} parent=365 // loop_exit
              _
          $region366: #{tpu_custom_call.1} parent=87 // pred_fallthru
            _
          // Predicated region
          $region385: #{tpu_custom_call.1} parent=87 // pred_check
            _
          $region386: #{tpu_custom_call.1} parent=87 // pred_check_branch
            %1189 = sbr.rel (0) target = $region388
          $region387: #{tpu_custom_call.1} parent=87 // pred_region
            %1190 = vsyncadd %s1144, 16
          $region388: #{tpu_custom_call.1} parent=87 // pred_fallthru
            _
          %s1191 = sld [smem:[#allocation5 + $0xa]]
          %s1192 = scalar_lea.vmem %s1, %s1191
          %s1193 = scalar_lea.vmem [#allocation2], 10
          %s1194 = scalar_lea.sflag [#allocation3], 10
          %p1196 = scmp.lt.u32.totalorder 1, 8
          %p1197 = pneg %p1196
          // Predicated region
          $region389: #{tpu_custom_call.1} parent=87 // pred_check
            _
          $region390: #{tpu_custom_call.1} parent=87 // pred_check_branch
            %1199 = sbr.rel (%p1196) target = $region392
          $region391: #{tpu_custom_call.1} parent=87 // pred_region
            %s1215 = sand.u32 1, 7
            %p1216 = scmp.eq.s32.totalorder %s1215, 0
            %p1217 = pneg %p1216
            // Predicated region
            $region404: #{tpu_custom_call.1} parent=391 // pred_check
              _
            $region405: #{tpu_custom_call.1} parent=391 // pred_check_branch
              %1219 = sbr.rel (%p1216) target = $region407
            $region406: #{tpu_custom_call.1} parent=391 // pred_region
              %s1220 = sand.u32 1, 7
              %s1221 = ssub.s32 1, %s1220
              %s1222 = scalar_lea.vmem %s1192, %s1221
              %s1223 = ssub.s32 1, %s1220
              %s1224 = scalar_lea.vmem %s1193, %s1223 [#allocation2]
              %s1225 = sshll.u32 1, %s1220
              %s1226 = ssub.s32 %s1225, 1
              loop: start=0, step=1, limit=1
              $region408: #{tpu_custom_call.1} parent=406 // loop_pre_header
                _
              $region409: #{tpu_custom_call.1} parent=406 // loop_header
                %s1228 = sphi 0, %s1232
                %p1229 = scmp.ge.s32.totalorder %s1228, 1
                %s1233 = sphi %s1222, %s1222
                %s1234 = sphi %s1224, %s1224
              $region410: #{tpu_custom_call.1} parent=406 // loop_header_branch
                %1231 = sbr.rel (%p1229) target = $region414
              $region411: #{tpu_custom_call.1} parent=406 // loop_body
                %v1235 = vld [vmem:[%s1233] sm:%s1226]
                %1236 = vst [vmem:[%s1234] sm:%s1226] %v1235
              $region412: #{tpu_custom_call.1} parent=406 // loop_footer
                %s1232 = sadd.s32 1, %s1228
              $region413: #{tpu_custom_call.1} parent=406 // loop_footer_branch
                %1227 = sbr.rel target = $region409
              $region414: #{tpu_custom_call.1} parent=406 // loop_exit
                _
            $region407: #{tpu_custom_call.1} parent=391 // pred_fallthru
              _
          $region392: #{tpu_custom_call.1} parent=87 // pred_fallthru
            _
          // Predicated region
          $region393: #{tpu_custom_call.1} parent=87 // pred_check
            %p1200 = pneg %p1196
          $region394: #{tpu_custom_call.1} parent=87 // pred_check_branch
            %1202 = sbr.rel (%p1200) target = $region396
          $region395: #{tpu_custom_call.1} parent=87 // pred_region
            %s1203 = sshll.u32 1, 1
            %s1204 = ssub.s32 %s1203, 1
            loop: start=0, step=1, limit=1
            $region397: #{tpu_custom_call.1} parent=395 // loop_pre_header
              _
            $region398: #{tpu_custom_call.1} parent=395 // loop_header
              %s1206 = sphi 0, %s1210
              %p1207 = scmp.ge.s32.totalorder %s1206, 1
              %s1211 = sphi %s1192, %s1192
              %s1212 = sphi %s1193, %s1193
            $region399: #{tpu_custom_call.1} parent=395 // loop_header_branch
              %1209 = sbr.rel (%p1207) target = $region403
            $region400: #{tpu_custom_call.1} parent=395 // loop_body
              %v1213 = vld [vmem:[%s1211] sm:%s1204]
              %1214 = vst [vmem:[%s1212] sm:%s1204] %v1213
            $region401: #{tpu_custom_call.1} parent=395 // loop_footer
              %s1210 = sadd.s32 1, %s1206
            $region402: #{tpu_custom_call.1} parent=395 // loop_footer_branch
              %1205 = sbr.rel target = $region398
            $region403: #{tpu_custom_call.1} parent=395 // loop_exit
              _
          $region396: #{tpu_custom_call.1} parent=87 // pred_fallthru
            _
          // Predicated region
          $region415: #{tpu_custom_call.1} parent=87 // pred_check
            _
          $region416: #{tpu_custom_call.1} parent=87 // pred_check_branch
            %1239 = sbr.rel (0) target = $region418
          $region417: #{tpu_custom_call.1} parent=87 // pred_region
            %1240 = vsyncadd %s1194, 16
          $region418: #{tpu_custom_call.1} parent=87 // pred_fallthru
            _
          %s1241 = sld [smem:[#allocation5 + $0xb]]
          %s1242 = scalar_lea.vmem %s1, %s1241
          %s1243 = scalar_lea.vmem [#allocation2], 11
          %s1244 = scalar_lea.sflag [#allocation3], 11
          %p1246 = scmp.lt.u32.totalorder 1, 8
          %p1247 = pneg %p1246
          // Predicated region
          $region419: #{tpu_custom_call.1} parent=87 // pred_check
            _
          $region420: #{tpu_custom_call.1} parent=87 // pred_check_branch
            %1249 = sbr.rel (%p1246) target = $region422
          $region421: #{tpu_custom_call.1} parent=87 // pred_region
            %s1265 = sand.u32 1, 7
            %p1266 = scmp.eq.s32.totalorder %s1265, 0
            %p1267 = pneg %p1266
            // Predicated region
            $region434: #{tpu_custom_call.1} parent=421 // pred_check
              _
            $region435: #{tpu_custom_call.1} parent=421 // pred_check_branch
              %1269 = sbr.rel (%p1266) target = $region437
            $region436: #{tpu_custom_call.1} parent=421 // pred_region
              %s1270 = sand.u32 1, 7
              %s1271 = ssub.s32 1, %s1270
              %s1272 = scalar_lea.vmem %s1242, %s1271
              %s1273 = ssub.s32 1, %s1270
              %s1274 = scalar_lea.vmem %s1243, %s1273 [#allocation2]
              %s1275 = sshll.u32 1, %s1270
              %s1276 = ssub.s32 %s1275, 1
              loop: start=0, step=1, limit=1
              $region438: #{tpu_custom_call.1} parent=436 // loop_pre_header
                _
              $region439: #{tpu_custom_call.1} parent=436 // loop_header
                %s1278 = sphi 0, %s1282
                %p1279 = scmp.ge.s32.totalorder %s1278, 1
                %s1283 = sphi %s1272, %s1272
                %s1284 = sphi %s1274, %s1274
              $region440: #{tpu_custom_call.1} parent=436 // loop_header_branch
                %1281 = sbr.rel (%p1279) target = $region444
              $region441: #{tpu_custom_call.1} parent=436 // loop_body
                %v1285 = vld [vmem:[%s1283] sm:%s1276]
                %1286 = vst [vmem:[%s1284] sm:%s1276] %v1285
              $region442: #{tpu_custom_call.1} parent=436 // loop_footer
                %s1282 = sadd.s32 1, %s1278
              $region443: #{tpu_custom_call.1} parent=436 // loop_footer_branch
                %1277 = sbr.rel target = $region439
              $region444: #{tpu_custom_call.1} parent=436 // loop_exit
                _
            $region437: #{tpu_custom_call.1} parent=421 // pred_fallthru
              _
          $region422: #{tpu_custom_call.1} parent=87 // pred_fallthru
            _
          // Predicated region
          $region423: #{tpu_custom_call.1} parent=87 // pred_check
            %p1250 = pneg %p1246
          $region424: #{tpu_custom_call.1} parent=87 // pred_check_branch
            %1252 = sbr.rel (%p1250) target = $region426
          $region425: #{tpu_custom_call.1} parent=87 // pred_region
            %s1253 = sshll.u32 1, 1
            %s1254 = ssub.s32 %s1253, 1
            loop: start=0, step=1, limit=1
            $region427: #{tpu_custom_call.1} parent=425 // loop_pre_header
              _
            $region428: #{tpu_custom_call.1} parent=425 // loop_header
              %s1256 = sphi 0, %s1260
              %p1257 = scmp.ge.s32.totalorder %s1256, 1
              %s1261 = sphi %s1242, %s1242
              %s1262 = sphi %s1243, %s1243
            $region429: #{tpu_custom_call.1} parent=425 // loop_header_branch
              %1259 = sbr.rel (%p1257) target = $region433
            $region430: #{tpu_custom_call.1} parent=425 // loop_body
              %v1263 = vld [vmem:[%s1261] sm:%s1254]
              %1264 = vst [vmem:[%s1262] sm:%s1254] %v1263
            $region431: #{tpu_custom_call.1} parent=425 // loop_footer
              %s1260 = sadd.s32 1, %s1256
            $region432: #{tpu_custom_call.1} parent=425 // loop_footer_branch
              %1255 = sbr.rel target = $region428
            $region433: #{tpu_custom_call.1} parent=425 // loop_exit
              _
          $region426: #{tpu_custom_call.1} parent=87 // pred_fallthru
            _
          // Predicated region
          $region445: #{tpu_custom_call.1} parent=87 // pred_check
            _
          $region446: #{tpu_custom_call.1} parent=87 // pred_check_branch
            %1289 = sbr.rel (0) target = $region448
          $region447: #{tpu_custom_call.1} parent=87 // pred_region
            %1290 = vsyncadd %s1244, 16
          $region448: #{tpu_custom_call.1} parent=87 // pred_fallthru
            _
          %s1291 = sld [smem:[#allocation5 + $0xc]]
          %s1292 = scalar_lea.vmem %s1, %s1291
          %s1293 = scalar_lea.vmem [#allocation2], 12
          %s1294 = scalar_lea.sflag [#allocation3], 12
          %p1296 = scmp.lt.u32.totalorder 1, 8
          %p1297 = pneg %p1296
          // Predicated region
          $region449: #{tpu_custom_call.1} parent=87 // pred_check
            _
          $region450: #{tpu_custom_call.1} parent=87 // pred_check_branch
            %1299 = sbr.rel (%p1296) target = $region452
          $region451: #{tpu_custom_call.1} parent=87 // pred_region
            %s1315 = sand.u32 1, 7
            %p1316 = scmp.eq.s32.totalorder %s1315, 0
            %p1317 = pneg %p1316
            // Predicated region
            $region464: #{tpu_custom_call.1} parent=451 // pred_check
              _
            $region465: #{tpu_custom_call.1} parent=451 // pred_check_branch
              %1319 = sbr.rel (%p1316) target = $region467
            $region466: #{tpu_custom_call.1} parent=451 // pred_region
              %s1320 = sand.u32 1, 7
              %s1321 = ssub.s32 1, %s1320
              %s1322 = scalar_lea.vmem %s1292, %s1321
              %s1323 = ssub.s32 1, %s1320
              %s1324 = scalar_lea.vmem %s1293, %s1323 [#allocation2]
              %s1325 = sshll.u32 1, %s1320
              %s1326 = ssub.s32 %s1325, 1
              loop: start=0, step=1, limit=1
              $region468: #{tpu_custom_call.1} parent=466 // loop_pre_header
                _
              $region469: #{tpu_custom_call.1} parent=466 // loop_header
                %s1328 = sphi 0, %s1332
                %p1329 = scmp.ge.s32.totalorder %s1328, 1
                %s1333 = sphi %s1322, %s1322
                %s1334 = sphi %s1324, %s1324
              $region470: #{tpu_custom_call.1} parent=466 // loop_header_branch
                %1331 = sbr.rel (%p1329) target = $region474
              $region471: #{tpu_custom_call.1} parent=466 // loop_body
                %v1335 = vld [vmem:[%s1333] sm:%s1326]
                %1336 = vst [vmem:[%s1334] sm:%s1326] %v1335
              $region472: #{tpu_custom_call.1} parent=466 // loop_footer
                %s1332 = sadd.s32 1, %s1328
              $region473: #{tpu_custom_call.1} parent=466 // loop_footer_branch
                %1327 = sbr.rel target = $region469
              $region474: #{tpu_custom_call.1} parent=466 // loop_exit
                _
            $region467: #{tpu_custom_call.1} parent=451 // pred_fallthru
              _
          $region452: #{tpu_custom_call.1} parent=87 // pred_fallthru
            _
          // Predicated region
          $region453: #{tpu_custom_call.1} parent=87 // pred_check
            %p1300 = pneg %p1296
          $region454: #{tpu_custom_call.1} parent=87 // pred_check_branch
            %1302 = sbr.rel (%p1300) target = $region456
          $region455: #{tpu_custom_call.1} parent=87 // pred_region
            %s1303 = sshll.u32 1, 1
            %s1304 = ssub.s32 %s1303, 1
            loop: start=0, step=1, limit=1
            $region457: #{tpu_custom_call.1} parent=455 // loop_pre_header
              _
            $region458: #{tpu_custom_call.1} parent=455 // loop_header
              %s1306 = sphi 0, %s1310
              %p1307 = scmp.ge.s32.totalorder %s1306, 1
              %s1311 = sphi %s1292, %s1292
              %s1312 = sphi %s1293, %s1293
            $region459: #{tpu_custom_call.1} parent=455 // loop_header_branch
              %1309 = sbr.rel (%p1307) target = $region463
            $region460: #{tpu_custom_call.1} parent=455 // loop_body
              %v1313 = vld [vmem:[%s1311] sm:%s1304]
              %1314 = vst [vmem:[%s1312] sm:%s1304] %v1313
            $region461: #{tpu_custom_call.1} parent=455 // loop_footer
              %s1310 = sadd.s32 1, %s1306
            $region462: #{tpu_custom_call.1} parent=455 // loop_footer_branch
              %1305 = sbr.rel target = $region458
            $region463: #{tpu_custom_call.1} parent=455 // loop_exit
              _
          $region456: #{tpu_custom_call.1} parent=87 // pred_fallthru
            _
          // Predicated region
          $region475: #{tpu_custom_call.1} parent=87 // pred_check
            _
          $region476: #{tpu_custom_call.1} parent=87 // pred_check_branch
            %1339 = sbr.rel (0) target = $region478
          $region477: #{tpu_custom_call.1} parent=87 // pred_region
            %1340 = vsyncadd %s1294, 16
          $region478: #{tpu_custom_call.1} parent=87 // pred_fallthru
            _
          %s1341 = sld [smem:[#allocation5 + $0xd]]
          %s1342 = scalar_lea.vmem %s1, %s1341
          %s1343 = scalar_lea.vmem [#allocation2], 13
          %s1344 = scalar_lea.sflag [#allocation3], 13
          %p1346 = scmp.lt.u32.totalorder 1, 8
          %p1347 = pneg %p1346
          // Predicated region
          $region479: #{tpu_custom_call.1} parent=87 // pred_check
            _
          $region480: #{tpu_custom_call.1} parent=87 // pred_check_branch
            %1349 = sbr.rel (%p1346) target = $region482
          $region481: #{tpu_custom_call.1} parent=87 // pred_region
            %s1365 = sand.u32 1, 7
            %p1366 = scmp.eq.s32.totalorder %s1365, 0
            %p1367 = pneg %p1366
            // Predicated region
            $region494: #{tpu_custom_call.1} parent=481 // pred_check
              _
            $region495: #{tpu_custom_call.1} parent=481 // pred_check_branch
              %1369 = sbr.rel (%p1366) target = $region497
            $region496: #{tpu_custom_call.1} parent=481 // pred_region
              %s1370 = sand.u32 1, 7
              %s1371 = ssub.s32 1, %s1370
              %s1372 = scalar_lea.vmem %s1342, %s1371
              %s1373 = ssub.s32 1, %s1370
              %s1374 = scalar_lea.vmem %s1343, %s1373 [#allocation2]
              %s1375 = sshll.u32 1, %s1370
              %s1376 = ssub.s32 %s1375, 1
              loop: start=0, step=1, limit=1
              $region498: #{tpu_custom_call.1} parent=496 // loop_pre_header
                _
              $region499: #{tpu_custom_call.1} parent=496 // loop_header
                %s1378 = sphi 0, %s1382
                %p1379 = scmp.ge.s32.totalorder %s1378, 1
                %s1383 = sphi %s1372, %s1372
                %s1384 = sphi %s1374, %s1374
              $region500: #{tpu_custom_call.1} parent=496 // loop_header_branch
                %1381 = sbr.rel (%p1379) target = $region504
              $region501: #{tpu_custom_call.1} parent=496 // loop_body
                %v1385 = vld [vmem:[%s1383] sm:%s1376]
                %1386 = vst [vmem:[%s1384] sm:%s1376] %v1385
              $region502: #{tpu_custom_call.1} parent=496 // loop_footer
                %s1382 = sadd.s32 1, %s1378
              $region503: #{tpu_custom_call.1} parent=496 // loop_footer_branch
                %1377 = sbr.rel target = $region499
              $region504: #{tpu_custom_call.1} parent=496 // loop_exit
                _
            $region497: #{tpu_custom_call.1} parent=481 // pred_fallthru
              _
          $region482: #{tpu_custom_call.1} parent=87 // pred_fallthru
            _
          // Predicated region
          $region483: #{tpu_custom_call.1} parent=87 // pred_check
            %p1350 = pneg %p1346
          $region484: #{tpu_custom_call.1} parent=87 // pred_check_branch
            %1352 = sbr.rel (%p1350) target = $region486
          $region485: #{tpu_custom_call.1} parent=87 // pred_region
            %s1353 = sshll.u32 1, 1
            %s1354 = ssub.s32 %s1353, 1
            loop: start=0, step=1, limit=1
            $region487: #{tpu_custom_call.1} parent=485 // loop_pre_header
              _
            $region488: #{tpu_custom_call.1} parent=485 // loop_header
              %s1356 = sphi 0, %s1360
              %p1357 = scmp.ge.s32.totalorder %s1356, 1
              %s1361 = sphi %s1342, %s1342
              %s1362 = sphi %s1343, %s1343
            $region489: #{tpu_custom_call.1} parent=485 // loop_header_branch
              %1359 = sbr.rel (%p1357) target = $region493
            $region490: #{tpu_custom_call.1} parent=485 // loop_body
              %v1363 = vld [vmem:[%s1361] sm:%s1354]
              %1364 = vst [vmem:[%s1362] sm:%s1354] %v1363
            $region491: #{tpu_custom_call.1} parent=485 // loop_footer
              %s1360 = sadd.s32 1, %s1356
            $region492: #{tpu_custom_call.1} parent=485 // loop_footer_branch
              %1355 = sbr.rel target = $region488
            $region493: #{tpu_custom_call.1} parent=485 // loop_exit
              _
          $region486: #{tpu_custom_call.1} parent=87 // pred_fallthru
            _
          // Predicated region
          $region505: #{tpu_custom_call.1} parent=87 // pred_check
            _
          $region506: #{tpu_custom_call.1} parent=87 // pred_check_branch
            %1389 = sbr.rel (0) target = $region508
          $region507: #{tpu_custom_call.1} parent=87 // pred_region
            %1390 = vsyncadd %s1344, 16
          $region508: #{tpu_custom_call.1} parent=87 // pred_fallthru
            _
          %s1391 = sld [smem:[#allocation5 + $0xe]]
          %s1392 = scalar_lea.vmem %s1, %s1391
          %s1393 = scalar_lea.vmem [#allocation2], 14
          %s1394 = scalar_lea.sflag [#allocation3], 14
          %p1396 = scmp.lt.u32.totalorder 1, 8
          %p1397 = pneg %p1396
          // Predicated region
          $region509: #{tpu_custom_call.1} parent=87 // pred_check
            _
          $region510: #{tpu_custom_call.1} parent=87 // pred_check_branch
            %1399 = sbr.rel (%p1396) target = $region512
          $region511: #{tpu_custom_call.1} parent=87 // pred_region
            %s1415 = sand.u32 1, 7
            %p1416 = scmp.eq.s32.totalorder %s1415, 0
            %p1417 = pneg %p1416
            // Predicated region
            $region524: #{tpu_custom_call.1} parent=511 // pred_check
              _
            $region525: #{tpu_custom_call.1} parent=511 // pred_check_branch
              %1419 = sbr.rel (%p1416) target = $region527
            $region526: #{tpu_custom_call.1} parent=511 // pred_region
              %s1420 = sand.u32 1, 7
              %s1421 = ssub.s32 1, %s1420
              %s1422 = scalar_lea.vmem %s1392, %s1421
              %s1423 = ssub.s32 1, %s1420
              %s1424 = scalar_lea.vmem %s1393, %s1423 [#allocation2]
              %s1425 = sshll.u32 1, %s1420
              %s1426 = ssub.s32 %s1425, 1
              loop: start=0, step=1, limit=1
              $region528: #{tpu_custom_call.1} parent=526 // loop_pre_header
                _
              $region529: #{tpu_custom_call.1} parent=526 // loop_header
                %s1428 = sphi 0, %s1432
                %p1429 = scmp.ge.s32.totalorder %s1428, 1
                %s1433 = sphi %s1422, %s1422
                %s1434 = sphi %s1424, %s1424
              $region530: #{tpu_custom_call.1} parent=526 // loop_header_branch
                %1431 = sbr.rel (%p1429) target = $region534
              $region531: #{tpu_custom_call.1} parent=526 // loop_body
                %v1435 = vld [vmem:[%s1433] sm:%s1426]
                %1436 = vst [vmem:[%s1434] sm:%s1426] %v1435
              $region532: #{tpu_custom_call.1} parent=526 // loop_footer
                %s1432 = sadd.s32 1, %s1428
              $region533: #{tpu_custom_call.1} parent=526 // loop_footer_branch
                %1427 = sbr.rel target = $region529
              $region534: #{tpu_custom_call.1} parent=526 // loop_exit
                _
            $region527: #{tpu_custom_call.1} parent=511 // pred_fallthru
              _
          $region512: #{tpu_custom_call.1} parent=87 // pred_fallthru
            _
          // Predicated region
          $region513: #{tpu_custom_call.1} parent=87 // pred_check
            %p1400 = pneg %p1396
          $region514: #{tpu_custom_call.1} parent=87 // pred_check_branch
            %1402 = sbr.rel (%p1400) target = $region516
          $region515: #{tpu_custom_call.1} parent=87 // pred_region
            %s1403 = sshll.u32 1, 1
            %s1404 = ssub.s32 %s1403, 1
            loop: start=0, step=1, limit=1
            $region517: #{tpu_custom_call.1} parent=515 // loop_pre_header
              _
            $region518: #{tpu_custom_call.1} parent=515 // loop_header
              %s1406 = sphi 0, %s1410
              %p1407 = scmp.ge.s32.totalorder %s1406, 1
              %s1411 = sphi %s1392, %s1392
              %s1412 = sphi %s1393, %s1393
            $region519: #{tpu_custom_call.1} parent=515 // loop_header_branch
              %1409 = sbr.rel (%p1407) target = $region523
            $region520: #{tpu_custom_call.1} parent=515 // loop_body
              %v1413 = vld [vmem:[%s1411] sm:%s1404]
              %1414 = vst [vmem:[%s1412] sm:%s1404] %v1413
            $region521: #{tpu_custom_call.1} parent=515 // loop_footer
              %s1410 = sadd.s32 1, %s1406
            $region522: #{tpu_custom_call.1} parent=515 // loop_footer_branch
              %1405 = sbr.rel target = $region518
            $region523: #{tpu_custom_call.1} parent=515 // loop_exit
              _
          $region516: #{tpu_custom_call.1} parent=87 // pred_fallthru
            _
          // Predicated region
          $region535: #{tpu_custom_call.1} parent=87 // pred_check
            _
          $region536: #{tpu_custom_call.1} parent=87 // pred_check_branch
            %1439 = sbr.rel (0) target = $region538
          $region537: #{tpu_custom_call.1} parent=87 // pred_region
            %1440 = vsyncadd %s1394, 16
          $region538: #{tpu_custom_call.1} parent=87 // pred_fallthru
            _
          %s1441 = sld [smem:[#allocation5 + $0xf]]
          %s1442 = scalar_lea.vmem %s1, %s1441
          %s1443 = scalar_lea.vmem [#allocation2], 15
          %s1444 = scalar_lea.sflag [#allocation3], 15
          %p1446 = scmp.lt.u32.totalorder 1, 8
          %p1447 = pneg %p1446
          // Predicated region
          $region539: #{tpu_custom_call.1} parent=87 // pred_check
            _
          $region540: #{tpu_custom_call.1} parent=87 // pred_check_branch
            %1449 = sbr.rel (%p1446) target = $region542
          $region541: #{tpu_custom_call.1} parent=87 // pred_region
            %s1465 = sand.u32 1, 7
            %p1466 = scmp.eq.s32.totalorder %s1465, 0
            %p1467 = pneg %p1466
            // Predicated region
            $region554: #{tpu_custom_call.1} parent=541 // pred_check
              _
            $region555: #{tpu_custom_call.1} parent=541 // pred_check_branch
              %1469 = sbr.rel (%p1466) target = $region557
            $region556: #{tpu_custom_call.1} parent=541 // pred_region
              %s1470 = sand.u32 1, 7
              %s1471 = ssub.s32 1, %s1470
              %s1472 = scalar_lea.vmem %s1442, %s1471
              %s1473 = ssub.s32 1, %s1470
              %s1474 = scalar_lea.vmem %s1443, %s1473 [#allocation2]
              %s1475 = sshll.u32 1, %s1470
              %s1476 = ssub.s32 %s1475, 1
              loop: start=0, step=1, limit=1
              $region558: #{tpu_custom_call.1} parent=556 // loop_pre_header
                _
              $region559: #{tpu_custom_call.1} parent=556 // loop_header
                %s1478 = sphi 0, %s1482
                %p1479 = scmp.ge.s32.totalorder %s1478, 1
                %s1483 = sphi %s1472, %s1472
                %s1484 = sphi %s1474, %s1474
              $region560: #{tpu_custom_call.1} parent=556 // loop_header_branch
                %1481 = sbr.rel (%p1479) target = $region564
              $region561: #{tpu_custom_call.1} parent=556 // loop_body
                %v1485 = vld [vmem:[%s1483] sm:%s1476]
                %1486 = vst [vmem:[%s1484] sm:%s1476] %v1485
              $region562: #{tpu_custom_call.1} parent=556 // loop_footer
                %s1482 = sadd.s32 1, %s1478
              $region563: #{tpu_custom_call.1} parent=556 // loop_footer_branch
                %1477 = sbr.rel target = $region559
              $region564: #{tpu_custom_call.1} parent=556 // loop_exit
                _
            $region557: #{tpu_custom_call.1} parent=541 // pred_fallthru
              _
          $region542: #{tpu_custom_call.1} parent=87 // pred_fallthru
            _
          // Predicated region
          $region543: #{tpu_custom_call.1} parent=87 // pred_check
            %p1450 = pneg %p1446
          $region544: #{tpu_custom_call.1} parent=87 // pred_check_branch
            %1452 = sbr.rel (%p1450) target = $region546
          $region545: #{tpu_custom_call.1} parent=87 // pred_region
            %s1453 = sshll.u32 1, 1
            %s1454 = ssub.s32 %s1453, 1
            loop: start=0, step=1, limit=1
            $region547: #{tpu_custom_call.1} parent=545 // loop_pre_header
              _
            $region548: #{tpu_custom_call.1} parent=545 // loop_header
              %s1456 = sphi 0, %s1460
              %p1457 = scmp.ge.s32.totalorder %s1456, 1
              %s1461 = sphi %s1442, %s1442
              %s1462 = sphi %s1443, %s1443
            $region549: #{tpu_custom_call.1} parent=545 // loop_header_branch
              %1459 = sbr.rel (%p1457) target = $region553
            $region550: #{tpu_custom_call.1} parent=545 // loop_body
              %v1463 = vld [vmem:[%s1461] sm:%s1454]
              %1464 = vst [vmem:[%s1462] sm:%s1454] %v1463
            $region551: #{tpu_custom_call.1} parent=545 // loop_footer
              %s1460 = sadd.s32 1, %s1456
            $region552: #{tpu_custom_call.1} parent=545 // loop_footer_branch
              %1455 = sbr.rel target = $region548
            $region553: #{tpu_custom_call.1} parent=545 // loop_exit
              _
          $region546: #{tpu_custom_call.1} parent=87 // pred_fallthru
            _
          // Predicated region
          $region565: #{tpu_custom_call.1} parent=87 // pred_check
            _
          $region566: #{tpu_custom_call.1} parent=87 // pred_check_branch
            %1489 = sbr.rel (0) target = $region568
          $region567: #{tpu_custom_call.1} parent=87 // pred_region
            %1490 = vsyncadd %s1444, 16
          $region568: #{tpu_custom_call.1} parent=87 // pred_fallthru
            _
          %s1491 = smul.u32 1, 1
          %s1492 = sshll.u32 %s1491, 4
          %1493 = dma.done [#allocation3], %s1492
          %s1494 = sshll.u32 %s1491, 4
          %1495 = dma.done %s744, %s1494
          %s1496 = sshll.u32 %s1491, 4
          %1497 = dma.done %s794, %s1496
          %s1498 = sshll.u32 %s1491, 4
          %1499 = dma.done %s844, %s1498
          %s1500 = sshll.u32 %s1491, 4
          %1501 = dma.done %s894, %s1500
          %s1502 = sshll.u32 %s1491, 4
          %1503 = dma.done %s944, %s1502
          %s1504 = sshll.u32 %s1491, 4
          %1505 = dma.done %s994, %s1504
          %s1506 = sshll.u32 %s1491, 4
          %1507 = dma.done %s1044, %s1506
          %s1508 = sshll.u32 %s1491, 4
          %1509 = dma.done %s1094, %s1508
          %s1510 = sshll.u32 %s1491, 4
          %1511 = dma.done %s1144, %s1510
          %s1512 = sshll.u32 %s1491, 4
          %1513 = dma.done %s1194, %s1512
          %s1514 = sshll.u32 %s1491, 4
          %1515 = dma.done %s1244, %s1514
          %s1516 = sshll.u32 %s1491, 4
          %1517 = dma.done %s1294, %s1516
          %s1518 = sshll.u32 %s1491, 4
          %1519 = dma.done %s1344, %s1518
          %s1520 = sshll.u32 %s1491, 4
          %1521 = dma.done %s1394, %s1520
          %s1522 = sshll.u32 %s1491, 4
          %1523 = dma.done %s1444, %s1522
          %v1524 = vld [vmem:[%s2] sm:$0xff]
          %v1525 = vld [vmem:[#allocation2] sm:$0xff]
          %v1526 = vadd.f32 %v1525, %v1524
          %vm1527 = vcmask 261120
          %1528 = vst.msk [vmem:[#allocation6] sm:$0xff] %vm1527, %v1526
          %v1529 = vld [vmem:[#allocation2 + $0x8] sm:$0xff]
          %v1530 = vadd.f32 %v1529, %v1524
          %s1531 = scalar_lea.vmem [#allocation6], 8
          %1532 = vst.msk [vmem:[%s1531] sm:$0xff] %vm1527, %v1530
        $region88: #{tpu_custom_call.1} parent=83 // pred_fallthru
          _
        %v1533 = vld [vmem:[%s648] sm:$0xf]
        %v1534 = vld [vmem:[%s648 + $0x4] sm:$0xf]
        %v1535 = vld [vmem:[%s648 + $0x8] sm:$0xf]
        %v1536 = vld [vmem:[%s648 + $0xc] sm:$0xf]
        %v1537 = vld [vmem:[%s648 + $0x10] sm:$0xf]
        %v1538 = vld [vmem:[%s648 + $0x14] sm:$0xf]
        %v1539 = vld [vmem:[%s648 + $0x18] sm:$0xf]
        %v1540 = vld [vmem:[%s648 + $0x1c] sm:$0xf]
        %v1541 = vld [vmem:[%s648 + $0x20] sm:$0xf]
        %v1542 = vld [vmem:[%s648 + $0x24] sm:$0xf]
        %v1543 = vld [vmem:[%s648 + $0x28] sm:$0xf]
        %v1544 = vld [vmem:[%s648 + $0x2c] sm:$0xf]
        %v1545 = vld [vmem:[%s651] sm:$0x1]
        %v1546 = vld [vmem:[%s656] sm:$0xf]
        %v1547 = vld [vmem:[%s656 + $0x4] sm:$0xf]
        %v1548 = vld [vmem:[%s656 + $0x8] sm:$0xf]
        %v1549 = vld [vmem:[%s656 + $0xc] sm:$0xf]
        %v1550 = vld [vmem:[%s656 + $0x10] sm:$0xf]
        %v1551 = vld [vmem:[%s656 + $0x14] sm:$0xf]
        %v1552 = vld [vmem:[%s656 + $0x18] sm:$0xf]
        %v1553 = vld [vmem:[%s656 + $0x1c] sm:$0xf]
        %v1554 = vld [vmem:[%s656 + $0x20] sm:$0xf]
        %v1555 = vld [vmem:[%s656 + $0x24] sm:$0xf]
        %v1556 = vld [vmem:[%s656 + $0x28] sm:$0xf]
        %v1557 = vld [vmem:[%s656 + $0x2c] sm:$0xf]
        %v1558 = vld [vmem:[%s656 + $0x30] sm:$0xf]
        %v1559 = vld [vmem:[%s656 + $0x34] sm:$0xf]
        %v1560 = vld [vmem:[%s656 + $0x38] sm:$0xf]
        %v1561 = vld [vmem:[%s656 + $0x3c] sm:$0xf]
        %v1562 = vld [vmem:[%s659] sm:$0x1]
        %v1563 = vld [vmem:[%s662] sm:$0x1]
        %v1564 = vld [vmem:[%s665] sm:$0x1]
        %v1565 = vld [vmem:[%s668] sm:$0x1]
        %v1566 = vld [vmem:[%s671] sm:$0x1]
        %v1567 = vld [vmem:[%s676] sm:$0xf]
        %v1568 = vld [vmem:[%s676 + $0x4] sm:$0xf]
        %v1569 = vld [vmem:[%s676 + $0x8] sm:$0xf]
        %v1570 = vld [vmem:[%s676 + $0xc] sm:$0xf]
        %v1571 = vld [vmem:[%s676 + $0x10] sm:$0xf]
        %v1572 = vld [vmem:[%s676 + $0x14] sm:$0xf]
        %v1573 = vld [vmem:[%s676 + $0x18] sm:$0xf]
        %v1574 = vld [vmem:[%s676 + $0x1c] sm:$0xf]
        %v1575 = vld [vmem:[%s676 + $0x20] sm:$0xf]
        %v1576 = vld [vmem:[%s676 + $0x24] sm:$0xf]
        %v1577 = vld [vmem:[%s676 + $0x28] sm:$0xf]
        %v1578 = vld [vmem:[%s676 + $0x2c] sm:$0xf]
        %v1579 = vld [vmem:[%s676 + $0x30] sm:$0xf]
        %v1580 = vld [vmem:[%s676 + $0x34] sm:$0xf]
        %v1581 = vld [vmem:[%s676 + $0x38] sm:$0xf]
        %v1582 = vld [vmem:[%s676 + $0x3c] sm:$0xf]
        %v1583 = vld [vmem:[%s679] sm:$0x1]
        %v1584 = vld [vmem:[%s684] sm:$0xf]
        %v1585 = vld [vmem:[%s684 + $0x4] sm:$0xf]
        %v1586 = vld [vmem:[%s684 + $0x8] sm:$0xf]
        %v1587 = vld [vmem:[%s684 + $0xc] sm:$0xf]
        %v1588 = vld [vmem:[%s687] sm:$0x1]
        %v1589 = vld [vmem:[#allocation6] sm:$0xff]
        %v1590 = vld [vmem:[#allocation6 + $0x8] sm:$0xff]
        %vm1591 = vcmask 261120
        %v1592 = vsel %vm1591, %v1589, 0.0
        %1593 = vadd.xlane.f32.xlu0 %v1592
        %v1594 = vpop.xlane.xlu0 %1593
        %v1595 = vrcp.pop 32.0
        %v1596 = vmul.f32 %v1594, %v1595
        %v1597 = vsub.f32 %v1589, %v1596
        %v1598 = vmul.f32 %v1597, %v1597
        %v1599 = vsel %vm1591, %v1598, 0.0
        %1600 = vadd.xlane.f32.xlu0 %v1599
        %v1601 = vpop.xlane.xlu0 %1600
        %v1602 = vmul.f32 %v1601, %v1595
        %v1603 = vadd.f32 %v1602, 1e-05
        %v1604 = vrsqrt.pop %v1603
        %v1605 = vmul.f32 %v1597, %v1604
        %v1607 = vlaneseq
        %v1608 = vshrl.u32 %v1607, 7
        %v1609 = vsub.s32 0, %v1608
        %v1610 = vrot.slane %v1563, %v1609
        %v1612 = vmul.f32 %v1605, %v1610
        %v1614 = vlaneseq
        %v1615 = vshrl.u32 %v1614, 7
        %v1616 = vsub.s32 0, %v1615
        %v1617 = vrot.slane %v1564, %v1616
        %v1619 = vadd.f32 %v1612, %v1617
        %v1620 = vpack.c.bf16 %v1619, %v1619
        %v1622 = vlaneseq
        %v1623 = vshrl.u32 %v1622, 7
        %v1624 = vsub.s32 0, %v1623
        %v1625 = vrot.slane %v1545, %v1624
        %v1639 = vunpack.c.l.b16 %v1533
        %v1640 = vunpack.c.l.b16 %v1534
        %v1641 = vunpack.c.l.b16 %v1535
        %v1642 = vunpack.c.l.b16 %v1536
        %v1643 = vunpack.c.l.b16 %v1537
        %v1644 = vunpack.c.l.b16 %v1538
        %v1645 = vunpack.c.l.b16 %v1539
        %v1646 = vunpack.c.l.b16 %v1540
        %v1647 = vunpack.c.l.b16 %v1541
        %v1648 = vunpack.c.l.b16 %v1542
        %v1649 = vunpack.c.l.b16 %v1543
        %v1650 = vunpack.c.l.b16 %v1544
        %v1651 = vpack.c.b16 %v1640, %v1639
        %v1652 = vpack.c.b16 %v1642, %v1641
        %v1653 = vpack.c.b16 %v1644, %v1643
        %v1654 = vpack.c.b16 %v1646, %v1645
        %v1655 = vpack.c.b16 %v1648, %v1647
        %v1656 = vpack.c.b16 %v1650, %v1649
        %v1658 = vsel %vm1591, %v1620, 0
        %v1661 = vsel %vm1591, %v1651, 0
        %v1664 = vsel %vm1591, %v1652, 0
        %v1667 = vsel %vm1591, %v1653, 0
        %v1670 = vsel %vm1591, %v1654, 0
        %v1673 = vsel %vm1591, %v1655, 0
        %v1676 = vsel %vm1591, %v1656, 0
        %1678 = vmatprep.subr.bf16.mxu0 0
        %1679 = vmatpush1.bf16.xpose.msra.mxu0 0
        %1680 = vmatprep.subr.bf16.mxu0 0
        %1681 = vmatpush1.bf16.xpose.msra.mxu0 0
        %1682 = vmatprep.subr.bf16.mxu0 0
        %1683 = vmatpush1.bf16.xpose.msra.mxu0 %v1676
        %1684 = vmatprep.subr.bf16.mxu0 0
        %1685 = vmatpush1.bf16.xpose.msra.mxu0 %v1673
        %1686 = vmatprep.subr.bf16.mxu0 0
        %1687 = vmatpush1.bf16.xpose.msra.mxu0 %v1670
        %1688 = vmatprep.subr.bf16.mxu0 0
        %1689 = vmatpush1.bf16.xpose.msra.mxu0 %v1667
        %1690 = vmatprep.subr.bf16.mxu0 0
        %1691 = vmatpush1.bf16.xpose.msra.mxu0 %v1664
        %1692 = vmatprep.subr.bf16.mxu0 0
        %1693 = vmatpush1.bf16.xpose.msra.mxu0 %v1661
        %1694 = vmatprep.subr.bf16.mxu0 0
        %1695 = vmatpush2.bf16.xpose.msra.mxu0 0
        %1696 = vmatprep.subr.bf16.mxu0 0
        %1697 = vmatpush2.bf16.xpose.msra.mxu0 0
        %1698 = vmatprep.subr.bf16.mxu0 0
        %1699 = vmatpush2.bf16.xpose.msra.mxu0 0
        %1700 = vmatprep.subr.bf16.mxu0 0
        %1701 = vmatpush2.bf16.xpose.msra.mxu0 0
        %1702 = vmatprep.subr.bf16.mxu0 0
        %1703 = vmatpush2.bf16.xpose.msra.mxu0 0
        %1704 = vmatprep.subr.bf16.mxu0 0
        %1705 = vmatpush2.bf16.xpose.msra.mxu0 0
        %1706 = vmatprep.subr.bf16.mxu0 0
        %1707 = vmatpush2.bf16.xpose.msra.mxu0 0
        %1708 = vmatprep.subr.bf16.mxu0 0
        %1709 = vmatpush2.bf16.xpose.msra.mxu0 0
        %1710 = vmatprep.mubr.bf16.mxu0 0
        %1711 = vmatmul.mubr.bf16.gmra.mxu0 %v1658
        %v1712 = vpop.f32.mrf.mxu0
        %v1713 = vadd.f32 %v1625, %v1712
        %v1714 = vpop.f32.mrf.mxu0
        %v1715 = vpop.f32.mrf.mxu0
        %v1716 = vpop.f32.mrf.mxu0
        %1717 = vdwg.mxu0
        %v1718 = vmul.f32 %v1713, 0.35355338
        %1720 = vrot.lane.b32.xlu0 %v1718, 120
        %v1721 = vpop.permute.xlu0 %1720
        %1723 = vrot.lane.b32.xlu0 %v1718, 112
        %v1724 = vpop.permute.xlu0 %1723
        %1726 = vrot.lane.b32.xlu0 %v1718, 104
        %v1727 = vpop.permute.xlu0 %1726
        %v1729 = vcombine.low %v1718, %v1724
        %v1730 = vcombine.high %v1718, %v1724
        %v1732 = vunpack.c.l.s4 1983009808
        %v1733 = vunpack.c.0.s8 %v1732
        %v1734 = vlaneseq
        %v1735 = vshrl.u32 %v1734, 7
        %v1736 = vsub.s32 %v1733, %v1735
        %v1737 = vrot.slane %v1729, %v1736
        %v1739 = vunpack.c.l.s4 1983009808
        %v1740 = vunpack.c.0.s8 %v1739
        %v1741 = vlaneseq
        %v1742 = vshrl.u32 %v1741, 7
        %v1743 = vsub.s32 %v1740, %v1742
        %v1744 = vrot.slane %v1730, %v1743
        %v1745 = vcombine.low %v1721, %v1727
        %v1746 = vcombine.high %v1721, %v1727
        %v1748 = vunpack.c.l.s4 1983009808
        %v1749 = vunpack.c.0.s8 %v1748
        %v1750 = vlaneseq
        %v1751 = vshrl.u32 %v1750, 7
        %v1752 = vsub.s32 %v1749, %v1751
        %v1753 = vrot.slane %v1745, %v1752
        %v1755 = vunpack.c.l.s4 1983009808
        %v1756 = vunpack.c.0.s8 %v1755
        %v1757 = vlaneseq
        %v1758 = vshrl.u32 %v1757, 7
        %v1759 = vsub.s32 %v1756, %v1758
        %v1760 = vrot.slane %v1746, %v1759
        %v1761 = vcombine.low %v1737, %v1753
        %v1762 = vcombine.high %v1737, %v1753
        %v1764 = vunpack.c.l.s4 1934713408
        %v1765 = vunpack.c.0.s8 %v1764
        %v1766 = vlaneseq
        %v1767 = vshrl.u32 %v1766, 7
        %v1768 = vsub.s32 %v1765, %v1767
        %v1769 = vrot.slane %v1761, %v1768
        %v1771 = vunpack.c.l.s4 1934713408
        %v1772 = vunpack.c.0.s8 %v1771
        %v1773 = vlaneseq
        %v1774 = vshrl.u32 %v1773, 7
        %v1775 = vsub.s32 %v1772, %v1774
        %v1776 = vrot.slane %v1762, %v1775
        %v1777 = vcombine.low %v1744, %v1760
        %v1778 = vcombine.high %v1744, %v1760
        %v1780 = vunpack.c.l.s4 1934713408
        %v1781 = vunpack.c.0.s8 %v1780
        %v1782 = vlaneseq
        %v1783 = vshrl.u32 %v1782, 7
        %v1784 = vsub.s32 %v1781, %v1783
        %v1785 = vrot.slane %v1777, %v1784
        %v1787 = vunpack.c.l.s4 1934713408
        %v1788 = vunpack.c.0.s8 %v1787
        %v1789 = vlaneseq
        %v1790 = vshrl.u32 %v1789, 7
        %v1791 = vsub.s32 %v1788, %v1790
        %v1792 = vrot.slane %v1778, %v1791
        %v1793 = vcombine.high %v1769, 0.0
        %v1794 = vcombine.high %v1776, 0.0
        %v1795 = vcombine.high %v1785, 0.0
        %v1796 = vcombine.high %v1792, 0.0
        %v1797 = vcombine.low %v1769, %v1776
        %v1799 = vunpack.c.l.s4 1983009808
        %v1800 = vunpack.c.0.s8 %v1799
        %v1801 = vlaneseq
        %v1802 = vshrl.u32 %v1801, 7
        %v1803 = vsub.s32 %v1800, %v1802
        %v1804 = vrot.slane %v1797, %v1803
        %v1805 = vcombine.low %v1793, %v1794
        %v1807 = vunpack.c.l.s4 1983009808
        %v1808 = vunpack.c.0.s8 %v1807
        %v1809 = vlaneseq
        %v1810 = vshrl.u32 %v1809, 7
        %v1811 = vsub.s32 %v1808, %v1810
        %v1812 = vrot.slane %v1805, %v1811
        %v1813 = vcombine.low %v1785, %v1792
        %v1815 = vunpack.c.l.s4 1983009808
        %v1816 = vunpack.c.0.s8 %v1815
        %v1817 = vlaneseq
        %v1818 = vshrl.u32 %v1817, 7
        %v1819 = vsub.s32 %v1816, %v1818
        %v1820 = vrot.slane %v1813, %v1819
        %v1821 = vcombine.low %v1795, %v1796
        %v1823 = vunpack.c.l.s4 1983009808
        %v1824 = vunpack.c.0.s8 %v1823
        %v1825 = vlaneseq
        %v1826 = vshrl.u32 %v1825, 7
        %v1827 = vsub.s32 %v1824, %v1826
        %v1828 = vrot.slane %v1821, %v1827
        %v1829 = vcombine.low %v1804, %v1812
        %v1830 = vcombine.high %v1804, %v1812
        %v1832 = vunpack.c.l.s4 1934713408
        %v1833 = vunpack.c.0.s8 %v1832
        %v1834 = vlaneseq
        %v1835 = vshrl.u32 %v1834, 7
        %v1836 = vsub.s32 %v1833, %v1835
        %v1837 = vrot.slane %v1829, %v1836
        %v1839 = vunpack.c.l.s4 1934713408
        %v1840 = vunpack.c.0.s8 %v1839
        %v1841 = vlaneseq
        %v1842 = vshrl.u32 %v1841, 7
        %v1843 = vsub.s32 %v1840, %v1842
        %v1844 = vrot.slane %v1830, %v1843
        %v1845 = vcombine.low %v1820, %v1828
        %v1846 = vcombine.high %v1820, %v1828
        %v1848 = vunpack.c.l.s4 1934713408
        %v1849 = vunpack.c.0.s8 %v1848
        %v1850 = vlaneseq
        %v1851 = vshrl.u32 %v1850, 7
        %v1852 = vsub.s32 %v1849, %v1851
        %v1853 = vrot.slane %v1845, %v1852
        %v1855 = vunpack.c.l.s4 1934713408
        %v1856 = vunpack.c.0.s8 %v1855
        %v1857 = vlaneseq
        %v1858 = vshrl.u32 %v1857, 7
        %v1859 = vsub.s32 %v1856, %v1858
        %v1860 = vrot.slane %v1846, %v1859
        %v1861 = vcombine.low %v1837, %v1853
        %v1862 = vcombine.high %v1837, %v1853
        %v1863 = vcombine.low %v1844, %v1860
        %v1864 = vcombine.high %v1844, %v1860
        %1866 = vrot.lane.b32.xlu0 %v1713, 120
        %v1867 = vpop.permute.xlu0 %1866
        %1868 = vrot.lane.b32.xlu0 %v1713, 112
        %v1869 = vpop.permute.xlu0 %1868
        %1870 = vrot.lane.b32.xlu0 %v1713, 104
        %v1871 = vpop.permute.xlu0 %1870
        %1872 = vrot.lane.b32.xlu0 %v1713, 96
        %v1873 = vpop.permute.xlu0 %1872
        %1874 = vrot.lane.b32.xlu0 %v1867, 96
        %v1875 = vpop.permute.xlu0 %1874
        %1876 = vrot.lane.b32.xlu0 %v1869, 96
        %v1877 = vpop.permute.xlu0 %1876
        %1878 = vrot.lane.b32.xlu0 %v1871, 96
        %v1879 = vpop.permute.xlu0 %1878
        %v1884 = vcombine.low %v1873, %v1877
        %v1885 = vcombine.high %v1873, %v1877
        %v1887 = vunpack.c.l.s4 1983009808
        %v1888 = vunpack.c.0.s8 %v1887
        %v1889 = vlaneseq
        %v1890 = vshrl.u32 %v1889, 7
        %v1891 = vsub.s32 %v1888, %v1890
        %v1892 = vrot.slane %v1884, %v1891
        %v1894 = vunpack.c.l.s4 1983009808
        %v1895 = vunpack.c.0.s8 %v1894
        %v1896 = vlaneseq
        %v1897 = vshrl.u32 %v1896, 7
        %v1898 = vsub.s32 %v1895, %v1897
        %v1899 = vrot.slane %v1885, %v1898
        %v1900 = vcombine.low %v1875, %v1879
        %v1901 = vcombine.high %v1875, %v1879
        %v1903 = vunpack.c.l.s4 1983009808
        %v1904 = vunpack.c.0.s8 %v1903
        %v1905 = vlaneseq
        %v1906 = vshrl.u32 %v1905, 7
        %v1907 = vsub.s32 %v1904, %v1906
        %v1908 = vrot.slane %v1900, %v1907
        %v1910 = vunpack.c.l.s4 1983009808
        %v1911 = vunpack.c.0.s8 %v1910
        %v1912 = vlaneseq
        %v1913 = vshrl.u32 %v1912, 7
        %v1914 = vsub.s32 %v1911, %v1913
        %v1915 = vrot.slane %v1901, %v1914
        %v1916 = vcombine.low %v1892, %v1908
        %v1917 = vcombine.high %v1892, %v1908
        %v1919 = vunpack.c.l.s4 1934713408
        %v1920 = vunpack.c.0.s8 %v1919
        %v1921 = vlaneseq
        %v1922 = vshrl.u32 %v1921, 7
        %v1923 = vsub.s32 %v1920, %v1922
        %v1924 = vrot.slane %v1916, %v1923
        %v1926 = vunpack.c.l.s4 1934713408
        %v1927 = vunpack.c.0.s8 %v1926
        %v1928 = vlaneseq
        %v1929 = vshrl.u32 %v1928, 7
        %v1930 = vsub.s32 %v1927, %v1929
        %v1931 = vrot.slane %v1917, %v1930
        %v1932 = vcombine.low %v1899, %v1915
        %v1933 = vcombine.high %v1899, %v1915
        %v1935 = vunpack.c.l.s4 1934713408
        %v1936 = vunpack.c.0.s8 %v1935
        %v1937 = vlaneseq
        %v1938 = vshrl.u32 %v1937, 7
        %v1939 = vsub.s32 %v1936, %v1938
        %v1940 = vrot.slane %v1932, %v1939
        %v1942 = vunpack.c.l.s4 1934713408
        %v1943 = vunpack.c.0.s8 %v1942
        %v1944 = vlaneseq
        %v1945 = vshrl.u32 %v1944, 7
        %v1946 = vsub.s32 %v1943, %v1945
        %v1947 = vrot.slane %v1933, %v1946
        %v1948 = vcombine.high %v1924, 0.0
        %v1949 = vcombine.high %v1931, 0.0
        %v1950 = vcombine.high %v1940, 0.0
        %v1951 = vcombine.high %v1947, 0.0
        %v1952 = vcombine.low %v1924, %v1931
        %v1954 = vunpack.c.l.s4 1983009808
        %v1955 = vunpack.c.0.s8 %v1954
        %v1956 = vlaneseq
        %v1957 = vshrl.u32 %v1956, 7
        %v1958 = vsub.s32 %v1955, %v1957
        %v1959 = vrot.slane %v1952, %v1958
        %v1960 = vcombine.low %v1948, %v1949
        %v1962 = vunpack.c.l.s4 1983009808
        %v1963 = vunpack.c.0.s8 %v1962
        %v1964 = vlaneseq
        %v1965 = vshrl.u32 %v1964, 7
        %v1966 = vsub.s32 %v1963, %v1965
        %v1967 = vrot.slane %v1960, %v1966
        %v1968 = vcombine.low %v1940, %v1947
        %v1970 = vunpack.c.l.s4 1983009808
        %v1971 = vunpack.c.0.s8 %v1970
        %v1972 = vlaneseq
        %v1973 = vshrl.u32 %v1972, 7
        %v1974 = vsub.s32 %v1971, %v1973
        %v1975 = vrot.slane %v1968, %v1974
        %v1976 = vcombine.low %v1950, %v1951
        %v1978 = vunpack.c.l.s4 1983009808
        %v1979 = vunpack.c.0.s8 %v1978
        %v1980 = vlaneseq
        %v1981 = vshrl.u32 %v1980, 7
        %v1982 = vsub.s32 %v1979, %v1981
        %v1983 = vrot.slane %v1976, %v1982
        %v1984 = vcombine.low %v1959, %v1967
        %v1985 = vcombine.high %v1959, %v1967
        %v1987 = vunpack.c.l.s4 1934713408
        %v1988 = vunpack.c.0.s8 %v1987
        %v1989 = vlaneseq
        %v1990 = vshrl.u32 %v1989, 7
        %v1991 = vsub.s32 %v1988, %v1990
        %v1992 = vrot.slane %v1984, %v1991
        %v1994 = vunpack.c.l.s4 1934713408
        %v1995 = vunpack.c.0.s8 %v1994
        %v1996 = vlaneseq
        %v1997 = vshrl.u32 %v1996, 7
        %v1998 = vsub.s32 %v1995, %v1997
        %v1999 = vrot.slane %v1985, %v1998
        %v2000 = vcombine.low %v1975, %v1983
        %v2001 = vcombine.high %v1975, %v1983
        %v2003 = vunpack.c.l.s4 1934713408
        %v2004 = vunpack.c.0.s8 %v2003
        %v2005 = vlaneseq
        %v2006 = vshrl.u32 %v2005, 7
        %v2007 = vsub.s32 %v2004, %v2006
        %v2008 = vrot.slane %v2000, %v2007
        %v2010 = vunpack.c.l.s4 1934713408
        %v2011 = vunpack.c.0.s8 %v2010
        %v2012 = vlaneseq
        %v2013 = vshrl.u32 %v2012, 7
        %v2014 = vsub.s32 %v2011, %v2013
        %v2015 = vrot.slane %v2001, %v2014
        %v2016 = vcombine.low %v1992, %v2008
        %v2017 = vcombine.high %v1992, %v2008
        %v2018 = vcombine.low %v1999, %v2015
        %v2019 = vcombine.high %v1999, %v2015
        %2020 = vrot.lane.b32.xlu0 %v1713, 64
        %v2021 = vpop.permute.xlu0 %2020
        %2022 = vrot.lane.b32.xlu0 %v1867, 64
        %v2023 = vpop.permute.xlu0 %2022
        %2024 = vrot.lane.b32.xlu0 %v1869, 64
        %v2025 = vpop.permute.xlu0 %2024
        %2026 = vrot.lane.b32.xlu0 %v1871, 64
        %v2027 = vpop.permute.xlu0 %2026
        %v2032 = vcombine.low %v2021, %v2025
        %v2033 = vcombine.high %v2021, %v2025
        %v2035 = vunpack.c.l.s4 1983009808
        %v2036 = vunpack.c.0.s8 %v2035
        %v2037 = vlaneseq
        %v2038 = vshrl.u32 %v2037, 7
        %v2039 = vsub.s32 %v2036, %v2038
        %v2040 = vrot.slane %v2032, %v2039
        %v2042 = vunpack.c.l.s4 1983009808
        %v2043 = vunpack.c.0.s8 %v2042
        %v2044 = vlaneseq
        %v2045 = vshrl.u32 %v2044, 7
        %v2046 = vsub.s32 %v2043, %v2045
        %v2047 = vrot.slane %v2033, %v2046
        %v2048 = vcombine.low %v2023, %v2027
        %v2049 = vcombine.high %v2023, %v2027
        %v2051 = vunpack.c.l.s4 1983009808
        %v2052 = vunpack.c.0.s8 %v2051
        %v2053 = vlaneseq
        %v2054 = vshrl.u32 %v2053, 7
        %v2055 = vsub.s32 %v2052, %v2054
        %v2056 = vrot.slane %v2048, %v2055
        %v2058 = vunpack.c.l.s4 1983009808
        %v2059 = vunpack.c.0.s8 %v2058
        %v2060 = vlaneseq
        %v2061 = vshrl.u32 %v2060, 7
        %v2062 = vsub.s32 %v2059, %v2061
        %v2063 = vrot.slane %v2049, %v2062
        %v2064 = vcombine.low %v2040, %v2056
        %v2065 = vcombine.high %v2040, %v2056
        %v2067 = vunpack.c.l.s4 1934713408
        %v2068 = vunpack.c.0.s8 %v2067
        %v2069 = vlaneseq
        %v2070 = vshrl.u32 %v2069, 7
        %v2071 = vsub.s32 %v2068, %v2070
        %v2072 = vrot.slane %v2064, %v2071
        %v2074 = vunpack.c.l.s4 1934713408
        %v2075 = vunpack.c.0.s8 %v2074
        %v2076 = vlaneseq
        %v2077 = vshrl.u32 %v2076, 7
        %v2078 = vsub.s32 %v2075, %v2077
        %v2079 = vrot.slane %v2065, %v2078
        %v2080 = vcombine.low %v2047, %v2063
        %v2081 = vcombine.high %v2047, %v2063
        %v2083 = vunpack.c.l.s4 1934713408
        %v2084 = vunpack.c.0.s8 %v2083
        %v2085 = vlaneseq
        %v2086 = vshrl.u32 %v2085, 7
        %v2087 = vsub.s32 %v2084, %v2086
        %v2088 = vrot.slane %v2080, %v2087
        %v2090 = vunpack.c.l.s4 1934713408
        %v2091 = vunpack.c.0.s8 %v2090
        %v2092 = vlaneseq
        %v2093 = vshrl.u32 %v2092, 7
        %v2094 = vsub.s32 %v2091, %v2093
        %v2095 = vrot.slane %v2081, %v2094
        %v2096 = vcombine.high %v2072, 0.0
        %v2097 = vcombine.high %v2079, 0.0
        %v2098 = vcombine.high %v2088, 0.0
        %v2099 = vcombine.high %v2095, 0.0
        %v2100 = vcombine.low %v2072, %v2079
        %v2102 = vunpack.c.l.s4 1983009808
        %v2103 = vunpack.c.0.s8 %v2102
        %v2104 = vlaneseq
        %v2105 = vshrl.u32 %v2104, 7
        %v2106 = vsub.s32 %v2103, %v2105
        %v2107 = vrot.slane %v2100, %v2106
        %v2108 = vcombine.low %v2096, %v2097
        %v2110 = vunpack.c.l.s4 1983009808
        %v2111 = vunpack.c.0.s8 %v2110
        %v2112 = vlaneseq
        %v2113 = vshrl.u32 %v2112, 7
        %v2114 = vsub.s32 %v2111, %v2113
        %v2115 = vrot.slane %v2108, %v2114
        %v2116 = vcombine.low %v2088, %v2095
        %v2118 = vunpack.c.l.s4 1983009808
        %v2119 = vunpack.c.0.s8 %v2118
        %v2120 = vlaneseq
        %v2121 = vshrl.u32 %v2120, 7
        %v2122 = vsub.s32 %v2119, %v2121
        %v2123 = vrot.slane %v2116, %v2122
        %v2124 = vcombine.low %v2098, %v2099
        %v2126 = vunpack.c.l.s4 1983009808
        %v2127 = vunpack.c.0.s8 %v2126
        %v2128 = vlaneseq
        %v2129 = vshrl.u32 %v2128, 7
        %v2130 = vsub.s32 %v2127, %v2129
        %v2131 = vrot.slane %v2124, %v2130
        %v2132 = vcombine.low %v2107, %v2115
        %v2133 = vcombine.high %v2107, %v2115
        %v2135 = vunpack.c.l.s4 1934713408
        %v2136 = vunpack.c.0.s8 %v2135
        %v2137 = vlaneseq
        %v2138 = vshrl.u32 %v2137, 7
        %v2139 = vsub.s32 %v2136, %v2138
        %v2140 = vrot.slane %v2132, %v2139
        %v2142 = vunpack.c.l.s4 1934713408
        %v2143 = vunpack.c.0.s8 %v2142
        %v2144 = vlaneseq
        %v2145 = vshrl.u32 %v2144, 7
        %v2146 = vsub.s32 %v2143, %v2145
        %v2147 = vrot.slane %v2133, %v2146
        %v2148 = vcombine.low %v2123, %v2131
        %v2149 = vcombine.high %v2123, %v2131
        %v2151 = vunpack.c.l.s4 1934713408
        %v2152 = vunpack.c.0.s8 %v2151
        %v2153 = vlaneseq
        %v2154 = vshrl.u32 %v2153, 7
        %v2155 = vsub.s32 %v2152, %v2154
        %v2156 = vrot.slane %v2148, %v2155
        %v2158 = vunpack.c.l.s4 1934713408
        %v2159 = vunpack.c.0.s8 %v2158
        %v2160 = vlaneseq
        %v2161 = vshrl.u32 %v2160, 7
        %v2162 = vsub.s32 %v2159, %v2161
        %v2163 = vrot.slane %v2149, %v2162
        %v2164 = vcombine.low %v2140, %v2156
        %v2165 = vcombine.high %v2140, %v2156
        %v2166 = vcombine.low %v2147, %v2163
        %v2167 = vcombine.high %v2147, %v2163
        %v2168 = vpack.c.bf16 %v1861, %v1861
        %v2169 = vpack.c.bf16 %v1862, %v1862
        %v2170 = vpack.c.bf16 %v1863, %v1863
        %v2171 = vpack.c.bf16 %v1864, %v1864
        %v2172 = vpack.c.bf16 %v2016, %v2016
        %v2173 = vpack.c.bf16 %v2017, %v2017
        %v2174 = vpack.c.bf16 %v2018, %v2018
        %v2175 = vpack.c.bf16 %v2019, %v2019
        %v2176 = vld [vmem:[%s3] sm:$0xff]
        %vm2177 = vcmask 64512
        %v2179 = vsel %vm2177, %v2168, 0
        %v2182 = vsel %vm2177, %v2172, 0
        %2184 = vmatprep.subr.bf16.mxu0 0
        %2185 = vmatpush1.bf16.xpose.msra.mxu0 0
        %2186 = vmatprep.subr.bf16.mxu0 0
        %2187 = vmatpush1.bf16.xpose.msra.mxu0 0
        %2188 = vmatprep.subr.bf16.mxu0 0
        %2189 = vmatpush1.bf16.xpose.msra.mxu0 0
        %2190 = vmatprep.subr.bf16.mxu0 0
        %2191 = vmatpush1.bf16.xpose.msra.mxu0 0
        %2192 = vmatprep.subr.bf16.mxu0 0
        %2193 = vmatpush1.bf16.xpose.msra.mxu0 0
        %2194 = vmatprep.subr.bf16.mxu0 0
        %2195 = vmatpush1.bf16.xpose.msra.mxu0 0
        %2196 = vmatprep.subr.bf16.mxu0 0
        %2197 = vmatpush1.bf16.xpose.msra.mxu0 0
        %2198 = vmatprep.subr.bf16.mxu0 0
        %2199 = vmatpush1.bf16.xpose.msra.mxu0 %v2182
        %2200 = vmatprep.subr.bf16.mxu0 0
        %2201 = vmatpush2.bf16.xpose.msra.mxu0 0
        %2202 = vmatprep.subr.bf16.mxu0 0
        %2203 = vmatpush2.bf16.xpose.msra.mxu0 0
        %2204 = vmatprep.subr.bf16.mxu0 0
        %2205 = vmatpush2.bf16.xpose.msra.mxu0 0
        %2206 = vmatprep.subr.bf16.mxu0 0
        %2207 = vmatpush2.bf16.xpose.msra.mxu0 0
        %2208 = vmatprep.subr.bf16.mxu0 0
        %2209 = vmatpush2.bf16.xpose.msra.mxu0 0
        %2210 = vmatprep.subr.bf16.mxu0 0
        %2211 = vmatpush2.bf16.xpose.msra.mxu0 0
        %2212 = vmatprep.subr.bf16.mxu0 0
        %2213 = vmatpush2.bf16.xpose.msra.mxu0 0
        %2214 = vmatprep.subr.bf16.mxu0 0
        %2215 = vmatpush2.bf16.xpose.msra.mxu0 0
        %2216 = vmatprep.mubr.bf16.mxu0 0
        %2217 = vmatmul.mubr.bf16.gmra.mxu0 %v2179
        %v2218 = vpop.f32.mrf.mxu0
        %v2219 = vadd.f32 %v2176, %v2218
        %v2220 = vpop.f32.mrf.mxu0
        %v2221 = vpop.f32.mrf.mxu0
        %v2222 = vpop.f32.mrf.mxu0
        %2223 = vdwg.mxu0
        %v2225 = vsel %vm2177, %v2169, 0
        %v2228 = vsel %vm2177, %v2173, 0
        %2230 = vmatprep.subr.bf16.mxu0 0
        %2231 = vmatpush1.bf16.xpose.msra.mxu0 0
        %2232 = vmatprep.subr.bf16.mxu0 0
        %2233 = vmatpush1.bf16.xpose.msra.mxu0 0
        %2234 = vmatprep.subr.bf16.mxu0 0
        %2235 = vmatpush1.bf16.xpose.msra.mxu0 0
        %2236 = vmatprep.subr.bf16.mxu0 0
        %2237 = vmatpush1.bf16.xpose.msra.mxu0 0
        %2238 = vmatprep.subr.bf16.mxu0 0
        %2239 = vmatpush1.bf16.xpose.msra.mxu0 0
        %2240 = vmatprep.subr.bf16.mxu0 0
        %2241 = vmatpush1.bf16.xpose.msra.mxu0 0
        %2242 = vmatprep.subr.bf16.mxu0 0
        %2243 = vmatpush1.bf16.xpose.msra.mxu0 0
        %2244 = vmatprep.subr.bf16.mxu0 0
        %2245 = vmatpush1.bf16.xpose.msra.mxu0 %v2228
        %2246 = vmatprep.subr.bf16.mxu0 0
        %2247 = vmatpush2.bf16.xpose.msra.mxu0 0
        %2248 = vmatprep.subr.bf16.mxu0 0
        %2249 = vmatpush2.bf16.xpose.msra.mxu0 0
        %2250 = vmatprep.subr.bf16.mxu0 0
        %2251 = vmatpush2.bf16.xpose.msra.mxu0 0
        %2252 = vmatprep.subr.bf16.mxu0 0
        %2253 = vmatpush2.bf16.xpose.msra.mxu0 0
        %2254 = vmatprep.subr.bf16.mxu0 0
        %2255 = vmatpush2.bf16.xpose.msra.mxu0 0
        %2256 = vmatprep.subr.bf16.mxu0 0
        %2257 = vmatpush2.bf16.xpose.msra.mxu0 0
        %2258 = vmatprep.subr.bf16.mxu0 0
        %2259 = vmatpush2.bf16.xpose.msra.mxu0 0
        %2260 = vmatprep.subr.bf16.mxu0 0
        %2261 = vmatpush2.bf16.xpose.msra.mxu0 0
        %2262 = vmatprep.mubr.bf16.mxu0 0
        %2263 = vmatmul.mubr.bf16.gmra.mxu0 %v2225
        %v2264 = vpop.f32.mrf.mxu0
        %v2265 = vadd.f32 %v2176, %v2264
        %v2266 = vpop.f32.mrf.mxu0
        %v2267 = vpop.f32.mrf.mxu0
        %v2268 = vpop.f32.mrf.mxu0
        %2269 = vdwg.mxu0
        %v2271 = vsel %vm2177, %v2170, 0
        %v2274 = vsel %vm2177, %v2174, 0
        %2276 = vmatprep.subr.bf16.mxu0 0
        %2277 = vmatpush1.bf16.xpose.msra.mxu0 0
        %2278 = vmatprep.subr.bf16.mxu0 0
        %2279 = vmatpush1.bf16.xpose.msra.mxu0 0
        %2280 = vmatprep.subr.bf16.mxu0 0
        %2281 = vmatpush1.bf16.xpose.msra.mxu0 0
        %2282 = vmatprep.subr.bf16.mxu0 0
        %2283 = vmatpush1.bf16.xpose.msra.mxu0 0
        %2284 = vmatprep.subr.bf16.mxu0 0
        %2285 = vmatpush1.bf16.xpose.msra.mxu0 0
        %2286 = vmatprep.subr.bf16.mxu0 0
        %2287 = vmatpush1.bf16.xpose.msra.mxu0 0
        %2288 = vmatprep.subr.bf16.mxu0 0
        %2289 = vmatpush1.bf16.xpose.msra.mxu0 0
        %2290 = vmatprep.subr.bf16.mxu0 0
        %2291 = vmatpush1.bf16.xpose.msra.mxu0 %v2274
        %2292 = vmatprep.subr.bf16.mxu0 0
        %2293 = vmatpush2.bf16.xpose.msra.mxu0 0
        %2294 = vmatprep.subr.bf16.mxu0 0
        %2295 = vmatpush2.bf16.xpose.msra.mxu0 0
        %2296 = vmatprep.subr.bf16.mxu0 0
        %2297 = vmatpush2.bf16.xpose.msra.mxu0 0
        %2298 = vmatprep.subr.bf16.mxu0 0
        %2299 = vmatpush2.bf16.xpose.msra.mxu0 0
        %2300 = vmatprep.subr.bf16.mxu0 0
        %2301 = vmatpush2.bf16.xpose.msra.mxu0 0
        %2302 = vmatprep.subr.bf16.mxu0 0
        %2303 = vmatpush2.bf16.xpose.msra.mxu0 0
        %2304 = vmatprep.subr.bf16.mxu0 0
        %2305 = vmatpush2.bf16.xpose.msra.mxu0 0
        %2306 = vmatprep.subr.bf16.mxu0 0
        %2307 = vmatpush2.bf16.xpose.msra.mxu0 0
        %2308 = vmatprep.mubr.bf16.mxu0 0
        %2309 = vmatmul.mubr.bf16.gmra.mxu0 %v2271
        %v2310 = vpop.f32.mrf.mxu0
        %v2311 = vadd.f32 %v2176, %v2310
        %v2312 = vpop.f32.mrf.mxu0
        %v2313 = vpop.f32.mrf.mxu0
        %v2314 = vpop.f32.mrf.mxu0
        %2315 = vdwg.mxu0
        %v2317 = vsel %vm2177, %v2171, 0
        %v2320 = vsel %vm2177, %v2175, 0
        %2322 = vmatprep.subr.bf16.mxu0 0
        %2323 = vmatpush1.bf16.xpose.msra.mxu0 0
        %2324 = vmatprep.subr.bf16.mxu0 0
        %2325 = vmatpush1.bf16.xpose.msra.mxu0 0
        %2326 = vmatprep.subr.bf16.mxu0 0
        %2327 = vmatpush1.bf16.xpose.msra.mxu0 0
        %2328 = vmatprep.subr.bf16.mxu0 0
        %2329 = vmatpush1.bf16.xpose.msra.mxu0 0
        %2330 = vmatprep.subr.bf16.mxu0 0
        %2331 = vmatpush1.bf16.xpose.msra.mxu0 0
        %2332 = vmatprep.subr.bf16.mxu0 0
        %2333 = vmatpush1.bf16.xpose.msra.mxu0 0
        %2334 = vmatprep.subr.bf16.mxu0 0
        %2335 = vmatpush1.bf16.xpose.msra.mxu0 0
        %2336 = vmatprep.subr.bf16.mxu0 0
        %2337 = vmatpush1.bf16.xpose.msra.mxu0 %v2320
        %2338 = vmatprep.subr.bf16.mxu0 0
        %2339 = vmatpush2.bf16.xpose.msra.mxu0 0
        %2340 = vmatprep.subr.bf16.mxu0 0
        %2341 = vmatpush2.bf16.xpose.msra.mxu0 0
        %2342 = vmatprep.subr.bf16.mxu0 0
        %2343 = vmatpush2.bf16.xpose.msra.mxu0 0
        %2344 = vmatprep.subr.bf16.mxu0 0
        %2345 = vmatpush2.bf16.xpose.msra.mxu0 0
        %2346 = vmatprep.subr.bf16.mxu0 0
        %2347 = vmatpush2.bf16.xpose.msra.mxu0 0
        %2348 = vmatprep.subr.bf16.mxu0 0
        %2349 = vmatpush2.bf16.xpose.msra.mxu0 0
        %2350 = vmatprep.subr.bf16.mxu0 0
        %2351 = vmatpush2.bf16.xpose.msra.mxu0 0
        %2352 = vmatprep.subr.bf16.mxu0 0
        %2353 = vmatpush2.bf16.xpose.msra.mxu0 0
        %2354 = vmatprep.mubr.bf16.mxu0 0
        %2355 = vmatmul.mubr.bf16.gmra.mxu0 %v2317
        %v2356 = vpop.f32.mrf.mxu0
        %v2357 = vadd.f32 %v2176, %v2356
        %v2358 = vpop.f32.mrf.mxu0
        %v2359 = vpop.f32.mrf.mxu0
        %v2360 = vpop.f32.mrf.mxu0
        %2361 = vdwg.mxu0
        %v2362 = vsel %vm2177, %v2219, -inf
        %2363 = vmax.xlane.f32.xlu0 %v2362
        %v2364 = vpop.xlane.xlu0 %2363
        %v2365 = vsel %vm2177, %v2265, -inf
        %2366 = vmax.xlane.f32.xlu0 %v2365
        %v2367 = vpop.xlane.xlu0 %2366
        %v2368 = vsel %vm2177, %v2311, -inf
        %2369 = vmax.xlane.f32.xlu0 %v2368
        %v2370 = vpop.xlane.xlu0 %2369
        %v2371 = vsel %vm2177, %v2357, -inf
        %2372 = vmax.xlane.f32.xlu0 %v2371
        %v2373 = vpop.xlane.xlu0 %2372
        %v2374 = vsub.f32 %v2219, %v2364
        %v2375 = vsub.f32 %v2265, %v2367
        %v2376 = vsub.f32 %v2311, %v2370
        %v2377 = vsub.f32 %v2357, %v2373
        %v2378 = vmul.f32 %v2374, 1.442695
        %v2379 = vpow.pop %v2378
        %v2380 = vmul.f32 %v2375, 1.442695
        %v2381 = vpow.pop %v2380
        %v2382 = vmul.f32 %v2376, 1.442695
        %v2383 = vpow.pop %v2382
        %v2384 = vmul.f32 %v2377, 1.442695
        %v2385 = vpow.pop %v2384
        %v2386 = vsel %vm2177, %v2379, 0.0
        %2387 = vadd.xlane.f32.xlu0 %v2386
        %v2388 = vpop.xlane.xlu0 %2387
        %v2389 = vsel %vm2177, %v2381, 0.0
        %2390 = vadd.xlane.f32.xlu0 %v2389
        %v2391 = vpop.xlane.xlu0 %2390
        %v2392 = vsel %vm2177, %v2383, 0.0
        %2393 = vadd.xlane.f32.xlu0 %v2392
        %v2394 = vpop.xlane.xlu0 %2393
        %v2395 = vsel %vm2177, %v2385, 0.0
        %2396 = vadd.xlane.f32.xlu0 %v2395
        %v2397 = vpop.xlane.xlu0 %2396
        %v2398 = vrcp.pop %v2388
        %v2399 = vrcp.pop %v2391
        %v2400 = vrcp.pop %v2394
        %v2401 = vrcp.pop %v2397
        %v2402 = vmul.f32 %v2379, %v2398
        %v2403 = vmul.f32 %v2381, %v2399
        %v2404 = vmul.f32 %v2383, %v2400
        %v2405 = vmul.f32 %v2385, %v2401
        %v2406 = vpack.c.bf16 %v2402, %v2402
        %v2407 = vpack.c.bf16 %v2403, %v2403
        %v2408 = vpack.c.bf16 %v2404, %v2404
        %v2409 = vpack.c.bf16 %v2405, %v2405
        %v2410 = vpack.c.bf16 %v2164, %v2164
        %v2411 = vpack.c.bf16 %v2165, %v2165
        %v2412 = vpack.c.bf16 %v2166, %v2166
        %v2413 = vpack.c.bf16 %v2167, %v2167
        %v2415 = vsel %vm2177, %v2406, 0
        %vm2417 = vcmask 1043456
        %v2419 = vsel %vm2417, %v2410, 0
        %2421 = vmatprep.subr.bf16.mxu0 0
        %2422 = vmatpush1.bf16.msra.mxu0 0
        %2423 = vmatprep.subr.bf16.mxu0 0
        %2424 = vmatpush1.bf16.msra.mxu0 0
        %2425 = vmatprep.subr.bf16.mxu0 0
        %2426 = vmatpush1.bf16.msra.mxu0 0
        %2427 = vmatprep.subr.bf16.mxu0 0
        %2428 = vmatpush1.bf16.msra.mxu0 0
        %2429 = vmatprep.subr.bf16.mxu0 0
        %2430 = vmatpush1.bf16.msra.mxu0 0
        %2431 = vmatprep.subr.bf16.mxu0 0
        %2432 = vmatpush1.bf16.msra.mxu0 0
        %2433 = vmatprep.subr.bf16.mxu0 0
        %2434 = vmatpush1.bf16.msra.mxu0 0
        %2435 = vmatprep.subr.bf16.mxu0 0
        %2436 = vmatpush1.bf16.msra.mxu0 %v2419
        %2437 = vmatprep.subr.bf16.mxu0 0
        %2438 = vmatpush2.bf16.msra.mxu0 0
        %2439 = vmatprep.subr.bf16.mxu0 0
        %2440 = vmatpush2.bf16.msra.mxu0 0
        %2441 = vmatprep.subr.bf16.mxu0 0
        %2442 = vmatpush2.bf16.msra.mxu0 0
        %2443 = vmatprep.subr.bf16.mxu0 0
        %2444 = vmatpush2.bf16.msra.mxu0 0
        %2445 = vmatprep.subr.bf16.mxu0 0
        %2446 = vmatpush2.bf16.msra.mxu0 0
        %2447 = vmatprep.subr.bf16.mxu0 0
        %2448 = vmatpush2.bf16.msra.mxu0 0
        %2449 = vmatprep.subr.bf16.mxu0 0
        %2450 = vmatpush2.bf16.msra.mxu0 0
        %2451 = vmatprep.subr.bf16.mxu0 0
        %2452 = vmatpush2.bf16.msra.mxu0 0
        %2453 = vmatprep.mubr.bf16.mxu0 0
        %2454 = vmatmul.mubr.bf16.gmra.mxu0 %v2415
        %v2455 = vpop.f32.mrf.mxu0
        %v2456 = vadd.f32 0.0, %v2455
        %v2457 = vpop.f32.mrf.mxu0
        %v2458 = vpop.f32.mrf.mxu0
        %v2459 = vpop.f32.mrf.mxu0
        %2460 = vdwg.mxu0
        %v2462 = vsel %vm2177, %v2407, 0
        %v2465 = vsel %vm2417, %v2411, 0
        %2467 = vmatprep.subr.bf16.mxu0 0
        %2468 = vmatpush1.bf16.msra.mxu0 0
        %2469 = vmatprep.subr.bf16.mxu0 0
        %2470 = vmatpush1.bf16.msra.mxu0 0
        %2471 = vmatprep.subr.bf16.mxu0 0
        %2472 = vmatpush1.bf16.msra.mxu0 0
        %2473 = vmatprep.subr.bf16.mxu0 0
        %2474 = vmatpush1.bf16.msra.mxu0 0
        %2475 = vmatprep.subr.bf16.mxu0 0
        %2476 = vmatpush1.bf16.msra.mxu0 0
        %2477 = vmatprep.subr.bf16.mxu0 0
        %2478 = vmatpush1.bf16.msra.mxu0 0
        %2479 = vmatprep.subr.bf16.mxu0 0
        %2480 = vmatpush1.bf16.msra.mxu0 0
        %2481 = vmatprep.subr.bf16.mxu0 0
        %2482 = vmatpush1.bf16.msra.mxu0 %v2465
        %2483 = vmatprep.subr.bf16.mxu0 0
        %2484 = vmatpush2.bf16.msra.mxu0 0
        %2485 = vmatprep.subr.bf16.mxu0 0
        %2486 = vmatpush2.bf16.msra.mxu0 0
        %2487 = vmatprep.subr.bf16.mxu0 0
        %2488 = vmatpush2.bf16.msra.mxu0 0
        %2489 = vmatprep.subr.bf16.mxu0 0
        %2490 = vmatpush2.bf16.msra.mxu0 0
        %2491 = vmatprep.subr.bf16.mxu0 0
        %2492 = vmatpush2.bf16.msra.mxu0 0
        %2493 = vmatprep.subr.bf16.mxu0 0
        %2494 = vmatpush2.bf16.msra.mxu0 0
        %2495 = vmatprep.subr.bf16.mxu0 0
        %2496 = vmatpush2.bf16.msra.mxu0 0
        %2497 = vmatprep.subr.bf16.mxu0 0
        %2498 = vmatpush2.bf16.msra.mxu0 0
        %2499 = vmatprep.mubr.bf16.mxu0 0
        %2500 = vmatmul.mubr.bf16.gmra.mxu0 %v2462
        %v2501 = vpop.f32.mrf.mxu0
        %v2502 = vadd.f32 0.0, %v2501
        %v2503 = vpop.f32.mrf.mxu0
        %v2504 = vpop.f32.mrf.mxu0
        %v2505 = vpop.f32.mrf.mxu0
        %2506 = vdwg.mxu0
        %v2508 = vsel %vm2177, %v2408, 0
        %v2511 = vsel %vm2417, %v2412, 0
        %2513 = vmatprep.subr.bf16.mxu0 0
        %2514 = vmatpush1.bf16.msra.mxu0 0
        %2515 = vmatprep.subr.bf16.mxu0 0
        %2516 = vmatpush1.bf16.msra.mxu0 0
        %2517 = vmatprep.subr.bf16.mxu0 0
        %2518 = vmatpush1.bf16.msra.mxu0 0
        %2519 = vmatprep.subr.bf16.mxu0 0
        %2520 = vmatpush1.bf16.msra.mxu0 0
        %2521 = vmatprep.subr.bf16.mxu0 0
        %2522 = vmatpush1.bf16.msra.mxu0 0
        %2523 = vmatprep.subr.bf16.mxu0 0
        %2524 = vmatpush1.bf16.msra.mxu0 0
        %2525 = vmatprep.subr.bf16.mxu0 0
        %2526 = vmatpush1.bf16.msra.mxu0 0
        %2527 = vmatprep.subr.bf16.mxu0 0
        %2528 = vmatpush1.bf16.msra.mxu0 %v2511
        %2529 = vmatprep.subr.bf16.mxu0 0
        %2530 = vmatpush2.bf16.msra.mxu0 0
        %2531 = vmatprep.subr.bf16.mxu0 0
        %2532 = vmatpush2.bf16.msra.mxu0 0
        %2533 = vmatprep.subr.bf16.mxu0 0
        %2534 = vmatpush2.bf16.msra.mxu0 0
        %2535 = vmatprep.subr.bf16.mxu0 0
        %2536 = vmatpush2.bf16.msra.mxu0 0
        %2537 = vmatprep.subr.bf16.mxu0 0
        %2538 = vmatpush2.bf16.msra.mxu0 0
        %2539 = vmatprep.subr.bf16.mxu0 0
        %2540 = vmatpush2.bf16.msra.mxu0 0
        %2541 = vmatprep.subr.bf16.mxu0 0
        %2542 = vmatpush2.bf16.msra.mxu0 0
        %2543 = vmatprep.subr.bf16.mxu0 0
        %2544 = vmatpush2.bf16.msra.mxu0 0
        %2545 = vmatprep.mubr.bf16.mxu0 0
        %2546 = vmatmul.mubr.bf16.gmra.mxu0 %v2508
        %v2547 = vpop.f32.mrf.mxu0
        %v2548 = vadd.f32 0.0, %v2547
        %v2549 = vpop.f32.mrf.mxu0
        %v2550 = vpop.f32.mrf.mxu0
        %v2551 = vpop.f32.mrf.mxu0
        %2552 = vdwg.mxu0
        %v2554 = vsel %vm2177, %v2409, 0
        %v2557 = vsel %vm2417, %v2413, 0
        %2559 = vmatprep.subr.bf16.mxu0 0
        %2560 = vmatpush1.bf16.msra.mxu0 0
        %2561 = vmatprep.subr.bf16.mxu0 0
        %2562 = vmatpush1.bf16.msra.mxu0 0
        %2563 = vmatprep.subr.bf16.mxu0 0
        %2564 = vmatpush1.bf16.msra.mxu0 0
        %2565 = vmatprep.subr.bf16.mxu0 0
        %2566 = vmatpush1.bf16.msra.mxu0 0
        %2567 = vmatprep.subr.bf16.mxu0 0
        %2568 = vmatpush1.bf16.msra.mxu0 0
        %2569 = vmatprep.subr.bf16.mxu0 0
        %2570 = vmatpush1.bf16.msra.mxu0 0
        %2571 = vmatprep.subr.bf16.mxu0 0
        %2572 = vmatpush1.bf16.msra.mxu0 0
        %2573 = vmatprep.subr.bf16.mxu0 0
        %2574 = vmatpush1.bf16.msra.mxu0 %v2557
        %2575 = vmatprep.subr.bf16.mxu0 0
        %2576 = vmatpush2.bf16.msra.mxu0 0
        %2577 = vmatprep.subr.bf16.mxu0 0
        %2578 = vmatpush2.bf16.msra.mxu0 0
        %2579 = vmatprep.subr.bf16.mxu0 0
        %2580 = vmatpush2.bf16.msra.mxu0 0
        %2581 = vmatprep.subr.bf16.mxu0 0
        %2582 = vmatpush2.bf16.msra.mxu0 0
        %2583 = vmatprep.subr.bf16.mxu0 0
        %2584 = vmatpush2.bf16.msra.mxu0 0
        %2585 = vmatprep.subr.bf16.mxu0 0
        %2586 = vmatpush2.bf16.msra.mxu0 0
        %2587 = vmatprep.subr.bf16.mxu0 0
        %2588 = vmatpush2.bf16.msra.mxu0 0
        %2589 = vmatprep.subr.bf16.mxu0 0
        %2590 = vmatpush2.bf16.msra.mxu0 0
        %2591 = vmatprep.mubr.bf16.mxu0 0
        %2592 = vmatmul.mubr.bf16.gmra.mxu0 %v2554
        %v2593 = vpop.f32.mrf.mxu0
        %v2594 = vadd.f32 0.0, %v2593
        %v2595 = vpop.f32.mrf.mxu0
        %v2596 = vpop.f32.mrf.mxu0
        %v2597 = vpop.f32.mrf.mxu0
        %2598 = vdwg.mxu0
        %v2599 = vpack.c.bf16 %v2456, %v2456
        %v2600 = vpack.c.bf16 %v2502, %v2502
        %v2601 = vpack.c.bf16 %v2548, %v2548
        %v2602 = vpack.c.bf16 %v2594, %v2594
        %v2607 = vunpack.c.l.b16 %v1546
        %v2608 = vunpack.c.l.b16 %v1547
        %v2609 = vunpack.c.l.b16 %v1548
        %v2610 = vunpack.c.l.b16 %v1549
        %v2611 = vpack.c.b16 %v2608, %v2607
        %v2612 = vpack.c.b16 %v2610, %v2609
        %v2614 = vsel %vm2177, %v2599, 0
        %v2617 = vsel %vm2177, %v2611, 0
        %v2620 = vsel %vm2177, %v2612, 0
        %2622 = vmatprep.subr.bf16.mxu0 0
        %2623 = vmatpush1.bf16.xpose.msra.mxu0 0
        %2624 = vmatprep.subr.bf16.mxu0 0
        %2625 = vmatpush1.bf16.xpose.msra.mxu0 0
        %2626 = vmatprep.subr.bf16.mxu0 0
        %2627 = vmatpush1.bf16.xpose.msra.mxu0 0
        %2628 = vmatprep.subr.bf16.mxu0 0
        %2629 = vmatpush1.bf16.xpose.msra.mxu0 0
        %2630 = vmatprep.subr.bf16.mxu0 0
        %2631 = vmatpush1.bf16.xpose.msra.mxu0 0
        %2632 = vmatprep.subr.bf16.mxu0 0
        %2633 = vmatpush1.bf16.xpose.msra.mxu0 0
        %2634 = vmatprep.subr.bf16.mxu0 0
        %2635 = vmatpush1.bf16.xpose.msra.mxu0 %v2620
        %2636 = vmatprep.subr.bf16.mxu0 0
        %2637 = vmatpush1.bf16.xpose.msra.mxu0 %v2617
        %2638 = vmatprep.subr.bf16.mxu0 0
        %2639 = vmatpush2.bf16.xpose.msra.mxu0 0
        %2640 = vmatprep.subr.bf16.mxu0 0
        %2641 = vmatpush2.bf16.xpose.msra.mxu0 0
        %2642 = vmatprep.subr.bf16.mxu0 0
        %2643 = vmatpush2.bf16.xpose.msra.mxu0 0
        %2644 = vmatprep.subr.bf16.mxu0 0
        %2645 = vmatpush2.bf16.xpose.msra.mxu0 0
        %2646 = vmatprep.subr.bf16.mxu0 0
        %2647 = vmatpush2.bf16.xpose.msra.mxu0 0
        %2648 = vmatprep.subr.bf16.mxu0 0
        %2649 = vmatpush2.bf16.xpose.msra.mxu0 0
        %2650 = vmatprep.subr.bf16.mxu0 0
        %2651 = vmatpush2.bf16.xpose.msra.mxu0 0
        %2652 = vmatprep.subr.bf16.mxu0 0
        %2653 = vmatpush2.bf16.xpose.msra.mxu0 0
        %2654 = vmatprep.mubr.bf16.mxu0 0
        %2655 = vmatmul.mubr.bf16.gmra.mxu0 %v2614
        %v2656 = vpop.f32.mrf.mxu0
        %v2657 = vadd.f32 0.0, %v2656
        %v2658 = vpop.f32.mrf.mxu0
        %v2659 = vpop.f32.mrf.mxu0
        %v2660 = vpop.f32.mrf.mxu0
        %2661 = vdwg.mxu0
        %v2666 = vunpack.c.l.b16 %v1550
        %v2667 = vunpack.c.l.b16 %v1551
        %v2668 = vunpack.c.l.b16 %v1552
        %v2669 = vunpack.c.l.b16 %v1553
        %v2670 = vpack.c.b16 %v2667, %v2666
        %v2671 = vpack.c.b16 %v2669, %v2668
        %v2673 = vsel %vm2177, %v2600, 0
        %v2676 = vsel %vm2177, %v2670, 0
        %v2679 = vsel %vm2177, %v2671, 0
        %2681 = vmatprep.subr.bf16.mxu0 0
        %2682 = vmatpush1.bf16.xpose.msra.mxu0 0
        %2683 = vmatprep.subr.bf16.mxu0 0
        %2684 = vmatpush1.bf16.xpose.msra.mxu0 0
        %2685 = vmatprep.subr.bf16.mxu0 0
        %2686 = vmatpush1.bf16.xpose.msra.mxu0 0
        %2687 = vmatprep.subr.bf16.mxu0 0
        %2688 = vmatpush1.bf16.xpose.msra.mxu0 0
        %2689 = vmatprep.subr.bf16.mxu0 0
        %2690 = vmatpush1.bf16.xpose.msra.mxu0 0
        %2691 = vmatprep.subr.bf16.mxu0 0
        %2692 = vmatpush1.bf16.xpose.msra.mxu0 0
        %2693 = vmatprep.subr.bf16.mxu0 0
        %2694 = vmatpush1.bf16.xpose.msra.mxu0 %v2679
        %2695 = vmatprep.subr.bf16.mxu0 0
        %2696 = vmatpush1.bf16.xpose.msra.mxu0 %v2676
        %2697 = vmatprep.subr.bf16.mxu0 0
        %2698 = vmatpush2.bf16.xpose.msra.mxu0 0
        %2699 = vmatprep.subr.bf16.mxu0 0
        %2700 = vmatpush2.bf16.xpose.msra.mxu0 0
        %2701 = vmatprep.subr.bf16.mxu0 0
        %2702 = vmatpush2.bf16.xpose.msra.mxu0 0
        %2703 = vmatprep.subr.bf16.mxu0 0
        %2704 = vmatpush2.bf16.xpose.msra.mxu0 0
        %2705 = vmatprep.subr.bf16.mxu0 0
        %2706 = vmatpush2.bf16.xpose.msra.mxu0 0
        %2707 = vmatprep.subr.bf16.mxu0 0
        %2708 = vmatpush2.bf16.xpose.msra.mxu0 0
        %2709 = vmatprep.subr.bf16.mxu0 0
        %2710 = vmatpush2.bf16.xpose.msra.mxu0 0
        %2711 = vmatprep.subr.bf16.mxu0 0
        %2712 = vmatpush2.bf16.xpose.msra.mxu0 0
        %2713 = vmatprep.mubr.bf16.mxu0 0
        %2714 = vmatmul.mubr.bf16.gmra.mxu0 %v2673
        %v2715 = vpop.f32.mrf.mxu0
        %v2716 = vadd.f32 0.0, %v2715
        %v2717 = vpop.f32.mrf.mxu0
        %v2718 = vpop.f32.mrf.mxu0
        %v2719 = vpop.f32.mrf.mxu0
        %2720 = vdwg.mxu0
        %v2725 = vunpack.c.l.b16 %v1554
        %v2726 = vunpack.c.l.b16 %v1555
        %v2727 = vunpack.c.l.b16 %v1556
        %v2728 = vunpack.c.l.b16 %v1557
        %v2729 = vpack.c.b16 %v2726, %v2725
        %v2730 = vpack.c.b16 %v2728, %v2727
        %v2732 = vsel %vm2177, %v2601, 0
        %v2735 = vsel %vm2177, %v2729, 0
        %v2738 = vsel %vm2177, %v2730, 0
        %2740 = vmatprep.subr.bf16.mxu0 0
        %2741 = vmatpush1.bf16.xpose.msra.mxu0 0
        %2742 = vmatprep.subr.bf16.mxu0 0
        %2743 = vmatpush1.bf16.xpose.msra.mxu0 0
        %2744 = vmatprep.subr.bf16.mxu0 0
        %2745 = vmatpush1.bf16.xpose.msra.mxu0 0
        %2746 = vmatprep.subr.bf16.mxu0 0
        %2747 = vmatpush1.bf16.xpose.msra.mxu0 0
        %2748 = vmatprep.subr.bf16.mxu0 0
        %2749 = vmatpush1.bf16.xpose.msra.mxu0 0
        %2750 = vmatprep.subr.bf16.mxu0 0
        %2751 = vmatpush1.bf16.xpose.msra.mxu0 0
        %2752 = vmatprep.subr.bf16.mxu0 0
        %2753 = vmatpush1.bf16.xpose.msra.mxu0 %v2738
        %2754 = vmatprep.subr.bf16.mxu0 0
        %2755 = vmatpush1.bf16.xpose.msra.mxu0 %v2735
        %2756 = vmatprep.subr.bf16.mxu0 0
        %2757 = vmatpush2.bf16.xpose.msra.mxu0 0
        %2758 = vmatprep.subr.bf16.mxu0 0
        %2759 = vmatpush2.bf16.xpose.msra.mxu0 0
        %2760 = vmatprep.subr.bf16.mxu0 0
        %2761 = vmatpush2.bf16.xpose.msra.mxu0 0
        %2762 = vmatprep.subr.bf16.mxu0 0
        %2763 = vmatpush2.bf16.xpose.msra.mxu0 0
        %2764 = vmatprep.subr.bf16.mxu0 0
        %2765 = vmatpush2.bf16.xpose.msra.mxu0 0
        %2766 = vmatprep.subr.bf16.mxu0 0
        %2767 = vmatpush2.bf16.xpose.msra.mxu0 0
        %2768 = vmatprep.subr.bf16.mxu0 0
        %2769 = vmatpush2.bf16.xpose.msra.mxu0 0
        %2770 = vmatprep.subr.bf16.mxu0 0
        %2771 = vmatpush2.bf16.xpose.msra.mxu0 0
        %2772 = vmatprep.mubr.bf16.mxu0 0
        %2773 = vmatmul.mubr.bf16.gmra.mxu0 %v2732
        %v2774 = vpop.f32.mrf.mxu0
        %v2775 = vadd.f32 0.0, %v2774
        %v2776 = vpop.f32.mrf.mxu0
        %v2777 = vpop.f32.mrf.mxu0
        %v2778 = vpop.f32.mrf.mxu0
        %2779 = vdwg.mxu0
        %v2784 = vunpack.c.l.b16 %v1558
        %v2785 = vunpack.c.l.b16 %v1559
        %v2786 = vunpack.c.l.b16 %v1560
        %v2787 = vunpack.c.l.b16 %v1561
        %v2788 = vpack.c.b16 %v2785, %v2784
        %v2789 = vpack.c.b16 %v2787, %v2786
        %v2791 = vsel %vm2177, %v2602, 0
        %v2794 = vsel %vm2177, %v2788, 0
        %v2797 = vsel %vm2177, %v2789, 0
        %2799 = vmatprep.subr.bf16.mxu0 0
        %2800 = vmatpush1.bf16.xpose.msra.mxu0 0
        %2801 = vmatprep.subr.bf16.mxu0 0
        %2802 = vmatpush1.bf16.xpose.msra.mxu0 0
        %2803 = vmatprep.subr.bf16.mxu0 0
        %2804 = vmatpush1.bf16.xpose.msra.mxu0 0
        %2805 = vmatprep.subr.bf16.mxu0 0
        %2806 = vmatpush1.bf16.xpose.msra.mxu0 0
        %2807 = vmatprep.subr.bf16.mxu0 0
        %2808 = vmatpush1.bf16.xpose.msra.mxu0 0
        %2809 = vmatprep.subr.bf16.mxu0 0
        %2810 = vmatpush1.bf16.xpose.msra.mxu0 0
        %2811 = vmatprep.subr.bf16.mxu0 0
        %2812 = vmatpush1.bf16.xpose.msra.mxu0 %v2797
        %2813 = vmatprep.subr.bf16.mxu0 0
        %2814 = vmatpush1.bf16.xpose.msra.mxu0 %v2794
        %2815 = vmatprep.subr.bf16.mxu0 0
        %2816 = vmatpush2.bf16.xpose.msra.mxu0 0
        %2817 = vmatprep.subr.bf16.mxu0 0
        %2818 = vmatpush2.bf16.xpose.msra.mxu0 0
        %2819 = vmatprep.subr.bf16.mxu0 0
        %2820 = vmatpush2.bf16.xpose.msra.mxu0 0
        %2821 = vmatprep.subr.bf16.mxu0 0
        %2822 = vmatpush2.bf16.xpose.msra.mxu0 0
        %2823 = vmatprep.subr.bf16.mxu0 0
        %2824 = vmatpush2.bf16.xpose.msra.mxu0 0
        %2825 = vmatprep.subr.bf16.mxu0 0
        %2826 = vmatpush2.bf16.xpose.msra.mxu0 0
        %2827 = vmatprep.subr.bf16.mxu0 0
        %2828 = vmatpush2.bf16.xpose.msra.mxu0 0
        %2829 = vmatprep.subr.bf16.mxu0 0
        %2830 = vmatpush2.bf16.xpose.msra.mxu0 0
        %2831 = vmatprep.mubr.bf16.mxu0 0
        %2832 = vmatmul.mubr.bf16.gmra.mxu0 %v2791
        %v2833 = vpop.f32.mrf.mxu0
        %v2834 = vadd.f32 0.0, %v2833
        %v2835 = vpop.f32.mrf.mxu0
        %v2836 = vpop.f32.mrf.mxu0
        %v2837 = vpop.f32.mrf.mxu0
        %2838 = vdwg.mxu0
        %v2839 = vsel %vm1591, %v2657, 0.0
        %v2840 = vsel %vm1591, %v2716, 0.0
        %v2841 = vadd.f32 %v2839, %v2840
        %v2842 = vsel %vm1591, %v2775, 0.0
        %v2843 = vadd.f32 %v2841, %v2842
        %v2844 = vsel %vm1591, %v2834, 0.0
        %v2845 = vadd.f32 %v2843, %v2844
        %v2846 = vadd.f32 %v1589, %v2845
        %v2848 = vlaneseq
        %v2849 = vshrl.u32 %v2848, 7
        %v2850 = vsub.s32 0, %v2849
        %v2851 = vrot.slane %v1562, %v2850
        %v2853 = vadd.f32 %v2846, %v2851
        %v2854 = vsel %vm1591, %v2853, 0.0
        %2855 = vadd.xlane.f32.xlu0 %v2854
        %v2856 = vpop.xlane.xlu0 %2855
        %v2857 = vmul.f32 %v2856, %v1595
        %v2858 = vsub.f32 %v2853, %v2857
        %v2859 = vmul.f32 %v2858, %v2858
        %v2860 = vsel %vm1591, %v2859, 0.0
        %2861 = vadd.xlane.f32.xlu0 %v2860
        %v2862 = vpop.xlane.xlu0 %2861
        %v2863 = vmul.f32 %v2862, %v1595
        %v2864 = vadd.f32 %v2863, 1e-05
        %v2865 = vrsqrt.pop %v2864
        %v2866 = vmul.f32 %v2858, %v2865
        %v2868 = vlaneseq
        %v2869 = vshrl.u32 %v2868, 7
        %v2870 = vsub.s32 0, %v2869
        %v2871 = vrot.slane %v1565, %v2870
        %v2873 = vmul.f32 %v2866, %v2871
        %v2875 = vlaneseq
        %v2876 = vshrl.u32 %v2875, 7
        %v2877 = vsub.s32 0, %v2876
        %v2878 = vrot.slane %v1566, %v2877
        %v2880 = vadd.f32 %v2873, %v2878
        %v2881 = vpack.c.bf16 %v2880, %v2880
        %v2883 = vlaneseq
        %v2884 = vshrl.u32 %v2883, 7
        %v2885 = vsub.s32 0, %v2884
        %v2886 = vrot.slane %v1583, %v2885
        %v2904 = vunpack.c.l.b16 %v1567
        %v2905 = vunpack.c.l.b16 %v1568
        %v2906 = vunpack.c.l.b16 %v1569
        %v2907 = vunpack.c.l.b16 %v1570
        %v2908 = vunpack.c.l.b16 %v1571
        %v2909 = vunpack.c.l.b16 %v1572
        %v2910 = vunpack.c.l.b16 %v1573
        %v2911 = vunpack.c.l.b16 %v1574
        %v2912 = vunpack.c.l.b16 %v1575
        %v2913 = vunpack.c.l.b16 %v1576
        %v2914 = vunpack.c.l.b16 %v1577
        %v2915 = vunpack.c.l.b16 %v1578
        %v2916 = vunpack.c.l.b16 %v1579
        %v2917 = vunpack.c.l.b16 %v1580
        %v2918 = vunpack.c.l.b16 %v1581
        %v2919 = vunpack.c.l.b16 %v1582
        %v2920 = vpack.c.b16 %v2905, %v2904
        %v2921 = vpack.c.b16 %v2907, %v2906
        %v2922 = vpack.c.b16 %v2909, %v2908
        %v2923 = vpack.c.b16 %v2911, %v2910
        %v2924 = vpack.c.b16 %v2913, %v2912
        %v2925 = vpack.c.b16 %v2915, %v2914
        %v2926 = vpack.c.b16 %v2917, %v2916
        %v2927 = vpack.c.b16 %v2919, %v2918
        %v2929 = vsel %vm1591, %v2881, 0
        %v2932 = vsel %vm1591, %v2920, 0
        %v2935 = vsel %vm1591, %v2921, 0
        %v2938 = vsel %vm1591, %v2922, 0
        %v2941 = vsel %vm1591, %v2923, 0
        %v2944 = vsel %vm1591, %v2924, 0
        %v2947 = vsel %vm1591, %v2925, 0
        %v2950 = vsel %vm1591, %v2926, 0
        %v2953 = vsel %vm1591, %v2927, 0
        %2955 = vmatprep.subr.bf16.mxu0 0
        %2956 = vmatpush1.bf16.xpose.msra.mxu0 %v2953
        %2957 = vmatprep.subr.bf16.mxu0 0
        %2958 = vmatpush1.bf16.xpose.msra.mxu0 %v2950
        %2959 = vmatprep.subr.bf16.mxu0 0
        %2960 = vmatpush1.bf16.xpose.msra.mxu0 %v2947
        %2961 = vmatprep.subr.bf16.mxu0 0
        %2962 = vmatpush1.bf16.xpose.msra.mxu0 %v2944
        %2963 = vmatprep.subr.bf16.mxu0 0
        %2964 = vmatpush1.bf16.xpose.msra.mxu0 %v2941
        %2965 = vmatprep.subr.bf16.mxu0 0
        %2966 = vmatpush1.bf16.xpose.msra.mxu0 %v2938
        %2967 = vmatprep.subr.bf16.mxu0 0
        %2968 = vmatpush1.bf16.xpose.msra.mxu0 %v2935
        %2969 = vmatprep.subr.bf16.mxu0 0
        %2970 = vmatpush1.bf16.xpose.msra.mxu0 %v2932
        %2971 = vmatprep.subr.bf16.mxu0 0
        %2972 = vmatpush2.bf16.xpose.msra.mxu0 0
        %2973 = vmatprep.subr.bf16.mxu0 0
        %2974 = vmatpush2.bf16.xpose.msra.mxu0 0
        %2975 = vmatprep.subr.bf16.mxu0 0
        %2976 = vmatpush2.bf16.xpose.msra.mxu0 0
        %2977 = vmatprep.subr.bf16.mxu0 0
        %2978 = vmatpush2.bf16.xpose.msra.mxu0 0
        %2979 = vmatprep.subr.bf16.mxu0 0
        %2980 = vmatpush2.bf16.xpose.msra.mxu0 0
        %2981 = vmatprep.subr.bf16.mxu0 0
        %2982 = vmatpush2.bf16.xpose.msra.mxu0 0
        %2983 = vmatprep.subr.bf16.mxu0 0
        %2984 = vmatpush2.bf16.xpose.msra.mxu0 0
        %2985 = vmatprep.subr.bf16.mxu0 0
        %2986 = vmatpush2.bf16.xpose.msra.mxu0 0
        %2987 = vmatprep.mubr.bf16.mxu0 0
        %2988 = vmatmul.mubr.bf16.gmra.mxu0 %v2929
        %v2989 = vpop.f32.mrf.mxu0
        %v2990 = vadd.f32 %v2886, %v2989
        %v2991 = vpop.f32.mrf.mxu0
        %v2992 = vpop.f32.mrf.mxu0
        %v2993 = vpop.f32.mrf.mxu0
        %2994 = vdwg.mxu0
        %v2995 = vmul.f32 %v2990, 0.5
        %v2996 = vmul.f32 %v2990, 0.70710677
        %v2997 = verf.f32.pop %v2996
        %v2998 = vadd.f32 %v2997, 1.0
        %v2999 = vmul.f32 %v2995, %v2998
        %v3000 = vpack.c.bf16 %v2999, %v2999
        %v3002 = vlaneseq
        %v3003 = vshrl.u32 %v3002, 7
        %v3004 = vsub.s32 0, %v3003
        %v3005 = vrot.slane %v1588, %v3004
        %v3011 = vunpack.c.l.b16 %v1584
        %v3012 = vunpack.c.l.b16 %v1585
        %v3013 = vunpack.c.l.b16 %v1586
        %v3014 = vunpack.c.l.b16 %v1587
        %v3015 = vpack.c.b16 %v3012, %v3011
        %v3016 = vpack.c.b16 %v3014, %v3013
        %3019 = vmatprep.subr.bf16.mxu0 0
        %3020 = vmatpush1.bf16.xpose.msra.mxu0 0
        %3021 = vmatprep.subr.bf16.mxu0 0
        %3022 = vmatpush1.bf16.xpose.msra.mxu0 0
        %3023 = vmatprep.subr.bf16.mxu0 0
        %3024 = vmatpush1.bf16.xpose.msra.mxu0 0
        %3025 = vmatprep.subr.bf16.mxu0 0
        %3026 = vmatpush1.bf16.xpose.msra.mxu0 0
        %3027 = vmatprep.subr.bf16.mxu0 0
        %3028 = vmatpush1.bf16.xpose.msra.mxu0 0
        %3029 = vmatprep.subr.bf16.mxu0 0
        %3030 = vmatpush1.bf16.xpose.msra.mxu0 0
        %3031 = vmatprep.subr.bf16.mxu0 0
        %3032 = vmatpush1.bf16.xpose.msra.mxu0 %v3016
        %3033 = vmatprep.subr.bf16.mxu0 0
        %3034 = vmatpush1.bf16.xpose.msra.mxu0 %v3015
        %3035 = vmatprep.subr.bf16.mxu0 0
        %3036 = vmatpush2.bf16.xpose.msra.mxu0 0
        %3037 = vmatprep.subr.bf16.mxu0 0
        %3038 = vmatpush2.bf16.xpose.msra.mxu0 0
        %3039 = vmatprep.subr.bf16.mxu0 0
        %3040 = vmatpush2.bf16.xpose.msra.mxu0 0
        %3041 = vmatprep.subr.bf16.mxu0 0
        %3042 = vmatpush2.bf16.xpose.msra.mxu0 0
        %3043 = vmatprep.subr.bf16.mxu0 0
        %3044 = vmatpush2.bf16.xpose.msra.mxu0 0
        %3045 = vmatprep.subr.bf16.mxu0 0
        %3046 = vmatpush2.bf16.xpose.msra.mxu0 0
        %3047 = vmatprep.subr.bf16.mxu0 0
        %3048 = vmatpush2.bf16.xpose.msra.mxu0 0
        %3049 = vmatprep.subr.bf16.mxu0 0
        %3050 = vmatpush2.bf16.xpose.msra.mxu0 0
        %3051 = vmatprep.mubr.bf16.mxu0 0
        %3052 = vmatmul.mubr.bf16.gmra.mxu0 %v3000
        %v3053 = vpop.f32.mrf.mxu0
        %v3054 = vadd.f32 %v3005, %v3053
        %v3055 = vpop.f32.mrf.mxu0
        %v3056 = vpop.f32.mrf.mxu0
        %v3057 = vpop.f32.mrf.mxu0
        %3058 = vdwg.mxu0
        %v3059 = vadd.f32 %v2853, %v3054
        %3060 = vst.msk [vmem:[#allocation6] sm:$0xff] %vm1591, %v3059
        %v3061 = vsel %vm1591, %v1590, 0.0
        %3062 = vadd.xlane.f32.xlu0 %v3061
        %v3063 = vpop.xlane.xlu0 %3062
        %v3064 = vmul.f32 %v3063, %v1595
        %v3065 = vsub.f32 %v1590, %v3064
        %v3066 = vmul.f32 %v3065, %v3065
        %v3067 = vsel %vm1591, %v3066, 0.0
        %3068 = vadd.xlane.f32.xlu0 %v3067
        %v3069 = vpop.xlane.xlu0 %3068
        %v3070 = vmul.f32 %v3069, %v1595
        %v3071 = vadd.f32 %v3070, 1e-05
        %v3072 = vrsqrt.pop %v3071
        %v3073 = vmul.f32 %v3065, %v3072
        %v3074 = vmul.f32 %v3073, %v1610
        %v3075 = vadd.f32 %v3074, %v1617
        %v3076 = vpack.c.bf16 %v3075, %v3075
        %v3078 = vsel %vm1591, %v3076, 0
        %3080 = vmatprep.subr.bf16.mxu0 0
        %3081 = vmatpush1.bf16.xpose.msra.mxu0 0
        %3082 = vmatprep.subr.bf16.mxu0 0
        %3083 = vmatpush1.bf16.xpose.msra.mxu0 0
        %3084 = vmatprep.subr.bf16.mxu0 0
        %3085 = vmatpush1.bf16.xpose.msra.mxu0 %v1676
        %3086 = vmatprep.subr.bf16.mxu0 0
        %3087 = vmatpush1.bf16.xpose.msra.mxu0 %v1673
        %3088 = vmatprep.subr.bf16.mxu0 0
        %3089 = vmatpush1.bf16.xpose.msra.mxu0 %v1670
        %3090 = vmatprep.subr.bf16.mxu0 0
        %3091 = vmatpush1.bf16.xpose.msra.mxu0 %v1667
        %3092 = vmatprep.subr.bf16.mxu0 0
        %3093 = vmatpush1.bf16.xpose.msra.mxu0 %v1664
        %3094 = vmatprep.subr.bf16.mxu0 0
        %3095 = vmatpush1.bf16.xpose.msra.mxu0 %v1661
        %3096 = vmatprep.subr.bf16.mxu0 0
        %3097 = vmatpush2.bf16.xpose.msra.mxu0 0
        %3098 = vmatprep.subr.bf16.mxu0 0
        %3099 = vmatpush2.bf16.xpose.msra.mxu0 0
        %3100 = vmatprep.subr.bf16.mxu0 0
        %3101 = vmatpush2.bf16.xpose.msra.mxu0 0
        %3102 = vmatprep.subr.bf16.mxu0 0
        %3103 = vmatpush2.bf16.xpose.msra.mxu0 0
        %3104 = vmatprep.subr.bf16.mxu0 0
        %3105 = vmatpush2.bf16.xpose.msra.mxu0 0
        %3106 = vmatprep.subr.bf16.mxu0 0
        %3107 = vmatpush2.bf16.xpose.msra.mxu0 0
        %3108 = vmatprep.subr.bf16.mxu0 0
        %3109 = vmatpush2.bf16.xpose.msra.mxu0 0
        %3110 = vmatprep.subr.bf16.mxu0 0
        %3111 = vmatpush2.bf16.xpose.msra.mxu0 0
        %3112 = vmatprep.mubr.bf16.mxu0 0
        %3113 = vmatmul.mubr.bf16.gmra.mxu0 %v3078
        %v3114 = vpop.f32.mrf.mxu0
        %v3115 = vadd.f32 %v1625, %v3114
        %v3116 = vpop.f32.mrf.mxu0
        %v3117 = vpop.f32.mrf.mxu0
        %v3118 = vpop.f32.mrf.mxu0
        %3119 = vdwg.mxu0
        %v3120 = vmul.f32 %v3115, 0.35355338
        %3122 = vrot.lane.b32.xlu0 %v3120, 120
        %v3123 = vpop.permute.xlu0 %3122
        %3125 = vrot.lane.b32.xlu0 %v3120, 112
        %v3126 = vpop.permute.xlu0 %3125
        %3128 = vrot.lane.b32.xlu0 %v3120, 104
        %v3129 = vpop.permute.xlu0 %3128
        %v3131 = vcombine.low %v3120, %v3126
        %v3132 = vcombine.high %v3120, %v3126
        %v3134 = vunpack.c.l.s4 1983009808
        %v3135 = vunpack.c.0.s8 %v3134
        %v3136 = vlaneseq
        %v3137 = vshrl.u32 %v3136, 7
        %v3138 = vsub.s32 %v3135, %v3137
        %v3139 = vrot.slane %v3131, %v3138
        %v3141 = vunpack.c.l.s4 1983009808
        %v3142 = vunpack.c.0.s8 %v3141
        %v3143 = vlaneseq
        %v3144 = vshrl.u32 %v3143, 7
        %v3145 = vsub.s32 %v3142, %v3144
        %v3146 = vrot.slane %v3132, %v3145
        %v3147 = vcombine.low %v3123, %v3129
        %v3148 = vcombine.high %v3123, %v3129
        %v3150 = vunpack.c.l.s4 1983009808
        %v3151 = vunpack.c.0.s8 %v3150
        %v3152 = vlaneseq
        %v3153 = vshrl.u32 %v3152, 7
        %v3154 = vsub.s32 %v3151, %v3153
        %v3155 = vrot.slane %v3147, %v3154
        %v3157 = vunpack.c.l.s4 1983009808
        %v3158 = vunpack.c.0.s8 %v3157
        %v3159 = vlaneseq
        %v3160 = vshrl.u32 %v3159, 7
        %v3161 = vsub.s32 %v3158, %v3160
        %v3162 = vrot.slane %v3148, %v3161
        %v3163 = vcombine.low %v3139, %v3155
        %v3164 = vcombine.high %v3139, %v3155
        %v3166 = vunpack.c.l.s4 1934713408
        %v3167 = vunpack.c.0.s8 %v3166
        %v3168 = vlaneseq
        %v3169 = vshrl.u32 %v3168, 7
        %v3170 = vsub.s32 %v3167, %v3169
        %v3171 = vrot.slane %v3163, %v3170
        %v3173 = vunpack.c.l.s4 1934713408
        %v3174 = vunpack.c.0.s8 %v3173
        %v3175 = vlaneseq
        %v3176 = vshrl.u32 %v3175, 7
        %v3177 = vsub.s32 %v3174, %v3176
        %v3178 = vrot.slane %v3164, %v3177
        %v3179 = vcombine.low %v3146, %v3162
        %v3180 = vcombine.high %v3146, %v3162
        %v3182 = vunpack.c.l.s4 1934713408
        %v3183 = vunpack.c.0.s8 %v3182
        %v3184 = vlaneseq
        %v3185 = vshrl.u32 %v3184, 7
        %v3186 = vsub.s32 %v3183, %v3185
        %v3187 = vrot.slane %v3179, %v3186
        %v3189 = vunpack.c.l.s4 1934713408
        %v3190 = vunpack.c.0.s8 %v3189
        %v3191 = vlaneseq
        %v3192 = vshrl.u32 %v3191, 7
        %v3193 = vsub.s32 %v3190, %v3192
        %v3194 = vrot.slane %v3180, %v3193
        %v3195 = vcombine.high %v3171, 0.0
        %v3196 = vcombine.high %v3178, 0.0
        %v3197 = vcombine.high %v3187, 0.0
        %v3198 = vcombine.high %v3194, 0.0
        %v3199 = vcombine.low %v3171, %v3178
        %v3201 = vunpack.c.l.s4 1983009808
        %v3202 = vunpack.c.0.s8 %v3201
        %v3203 = vlaneseq
        %v3204 = vshrl.u32 %v3203, 7
        %v3205 = vsub.s32 %v3202, %v3204
        %v3206 = vrot.slane %v3199, %v3205
        %v3207 = vcombine.low %v3195, %v3196
        %v3209 = vunpack.c.l.s4 1983009808
        %v3210 = vunpack.c.0.s8 %v3209
        %v3211 = vlaneseq
        %v3212 = vshrl.u32 %v3211, 7
        %v3213 = vsub.s32 %v3210, %v3212
        %v3214 = vrot.slane %v3207, %v3213
        %v3215 = vcombine.low %v3187, %v3194
        %v3217 = vunpack.c.l.s4 1983009808
        %v3218 = vunpack.c.0.s8 %v3217
        %v3219 = vlaneseq
        %v3220 = vshrl.u32 %v3219, 7
        %v3221 = vsub.s32 %v3218, %v3220
        %v3222 = vrot.slane %v3215, %v3221
        %v3223 = vcombine.low %v3197, %v3198
        %v3225 = vunpack.c.l.s4 1983009808
        %v3226 = vunpack.c.0.s8 %v3225
        %v3227 = vlaneseq
        %v3228 = vshrl.u32 %v3227, 7
        %v3229 = vsub.s32 %v3226, %v3228
        %v3230 = vrot.slane %v3223, %v3229
        %v3231 = vcombine.low %v3206, %v3214
        %v3232 = vcombine.high %v3206, %v3214
        %v3234 = vunpack.c.l.s4 1934713408
        %v3235 = vunpack.c.0.s8 %v3234
        %v3236 = vlaneseq
        %v3237 = vshrl.u32 %v3236, 7
        %v3238 = vsub.s32 %v3235, %v3237
        %v3239 = vrot.slane %v3231, %v3238
        %v3241 = vunpack.c.l.s4 1934713408
        %v3242 = vunpack.c.0.s8 %v3241
        %v3243 = vlaneseq
        %v3244 = vshrl.u32 %v3243, 7
        %v3245 = vsub.s32 %v3242, %v3244
        %v3246 = vrot.slane %v3232, %v3245
        %v3247 = vcombine.low %v3222, %v3230
        %v3248 = vcombine.high %v3222, %v3230
        %v3250 = vunpack.c.l.s4 1934713408
        %v3251 = vunpack.c.0.s8 %v3250
        %v3252 = vlaneseq
        %v3253 = vshrl.u32 %v3252, 7
        %v3254 = vsub.s32 %v3251, %v3253
        %v3255 = vrot.slane %v3247, %v3254
        %v3257 = vunpack.c.l.s4 1934713408
        %v3258 = vunpack.c.0.s8 %v3257
        %v3259 = vlaneseq
        %v3260 = vshrl.u32 %v3259, 7
        %v3261 = vsub.s32 %v3258, %v3260
        %v3262 = vrot.slane %v3248, %v3261
        %v3263 = vcombine.low %v3239, %v3255
        %v3264 = vcombine.high %v3239, %v3255
        %v3265 = vcombine.low %v3246, %v3262
        %v3266 = vcombine.high %v3246, %v3262
        %3268 = vrot.lane.b32.xlu0 %v3115, 120
        %v3269 = vpop.permute.xlu0 %3268
        %3270 = vrot.lane.b32.xlu0 %v3115, 112
        %v3271 = vpop.permute.xlu0 %3270
        %3272 = vrot.lane.b32.xlu0 %v3115, 104
        %v3273 = vpop.permute.xlu0 %3272
        %3274 = vrot.lane.b32.xlu0 %v3115, 96
        %v3275 = vpop.permute.xlu0 %3274
        %3276 = vrot.lane.b32.xlu0 %v3269, 96
        %v3277 = vpop.permute.xlu0 %3276
        %3278 = vrot.lane.b32.xlu0 %v3271, 96
        %v3279 = vpop.permute.xlu0 %3278
        %3280 = vrot.lane.b32.xlu0 %v3273, 96
        %v3281 = vpop.permute.xlu0 %3280
        %v3286 = vcombine.low %v3275, %v3279
        %v3287 = vcombine.high %v3275, %v3279
        %v3289 = vunpack.c.l.s4 1983009808
        %v3290 = vunpack.c.0.s8 %v3289
        %v3291 = vlaneseq
        %v3292 = vshrl.u32 %v3291, 7
        %v3293 = vsub.s32 %v3290, %v3292
        %v3294 = vrot.slane %v3286, %v3293
        %v3296 = vunpack.c.l.s4 1983009808
        %v3297 = vunpack.c.0.s8 %v3296
        %v3298 = vlaneseq
        %v3299 = vshrl.u32 %v3298, 7
        %v3300 = vsub.s32 %v3297, %v3299
        %v3301 = vrot.slane %v3287, %v3300
        %v3302 = vcombine.low %v3277, %v3281
        %v3303 = vcombine.high %v3277, %v3281
        %v3305 = vunpack.c.l.s4 1983009808
        %v3306 = vunpack.c.0.s8 %v3305
        %v3307 = vlaneseq
        %v3308 = vshrl.u32 %v3307, 7
        %v3309 = vsub.s32 %v3306, %v3308
        %v3310 = vrot.slane %v3302, %v3309
        %v3312 = vunpack.c.l.s4 1983009808
        %v3313 = vunpack.c.0.s8 %v3312
        %v3314 = vlaneseq
        %v3315 = vshrl.u32 %v3314, 7
        %v3316 = vsub.s32 %v3313, %v3315
        %v3317 = vrot.slane %v3303, %v3316
        %v3318 = vcombine.low %v3294, %v3310
        %v3319 = vcombine.high %v3294, %v3310
        %v3321 = vunpack.c.l.s4 1934713408
        %v3322 = vunpack.c.0.s8 %v3321
        %v3323 = vlaneseq
        %v3324 = vshrl.u32 %v3323, 7
        %v3325 = vsub.s32 %v3322, %v3324
        %v3326 = vrot.slane %v3318, %v3325
        %v3328 = vunpack.c.l.s4 1934713408
        %v3329 = vunpack.c.0.s8 %v3328
        %v3330 = vlaneseq
        %v3331 = vshrl.u32 %v3330, 7
        %v3332 = vsub.s32 %v3329, %v3331
        %v3333 = vrot.slane %v3319, %v3332
        %v3334 = vcombine.low %v3301, %v3317
        %v3335 = vcombine.high %v3301, %v3317
        %v3337 = vunpack.c.l.s4 1934713408
        %v3338 = vunpack.c.0.s8 %v3337
        %v3339 = vlaneseq
        %v3340 = vshrl.u32 %v3339, 7
        %v3341 = vsub.s32 %v3338, %v3340
        %v3342 = vrot.slane %v3334, %v3341
        %v3344 = vunpack.c.l.s4 1934713408
        %v3345 = vunpack.c.0.s8 %v3344
        %v3346 = vlaneseq
        %v3347 = vshrl.u32 %v3346, 7
        %v3348 = vsub.s32 %v3345, %v3347
        %v3349 = vrot.slane %v3335, %v3348
        %v3350 = vcombine.high %v3326, 0.0
        %v3351 = vcombine.high %v3333, 0.0
        %v3352 = vcombine.high %v3342, 0.0
        %v3353 = vcombine.high %v3349, 0.0
        %v3354 = vcombine.low %v3326, %v3333
        %v3356 = vunpack.c.l.s4 1983009808
        %v3357 = vunpack.c.0.s8 %v3356
        %v3358 = vlaneseq
        %v3359 = vshrl.u32 %v3358, 7
        %v3360 = vsub.s32 %v3357, %v3359
        %v3361 = vrot.slane %v3354, %v3360
        %v3362 = vcombine.low %v3350, %v3351
        %v3364 = vunpack.c.l.s4 1983009808
        %v3365 = vunpack.c.0.s8 %v3364
        %v3366 = vlaneseq
        %v3367 = vshrl.u32 %v3366, 7
        %v3368 = vsub.s32 %v3365, %v3367
        %v3369 = vrot.slane %v3362, %v3368
        %v3370 = vcombine.low %v3342, %v3349
        %v3372 = vunpack.c.l.s4 1983009808
        %v3373 = vunpack.c.0.s8 %v3372
        %v3374 = vlaneseq
        %v3375 = vshrl.u32 %v3374, 7
        %v3376 = vsub.s32 %v3373, %v3375
        %v3377 = vrot.slane %v3370, %v3376
        %v3378 = vcombine.low %v3352, %v3353
        %v3380 = vunpack.c.l.s4 1983009808
        %v3381 = vunpack.c.0.s8 %v3380
        %v3382 = vlaneseq
        %v3383 = vshrl.u32 %v3382, 7
        %v3384 = vsub.s32 %v3381, %v3383
        %v3385 = vrot.slane %v3378, %v3384
        %v3386 = vcombine.low %v3361, %v3369
        %v3387 = vcombine.high %v3361, %v3369
        %v3389 = vunpack.c.l.s4 1934713408
        %v3390 = vunpack.c.0.s8 %v3389
        %v3391 = vlaneseq
        %v3392 = vshrl.u32 %v3391, 7
        %v3393 = vsub.s32 %v3390, %v3392
        %v3394 = vrot.slane %v3386, %v3393
        %v3396 = vunpack.c.l.s4 1934713408
        %v3397 = vunpack.c.0.s8 %v3396
        %v3398 = vlaneseq
        %v3399 = vshrl.u32 %v3398, 7
        %v3400 = vsub.s32 %v3397, %v3399
        %v3401 = vrot.slane %v3387, %v3400
        %v3402 = vcombine.low %v3377, %v3385
        %v3403 = vcombine.high %v3377, %v3385
        %v3405 = vunpack.c.l.s4 1934713408
        %v3406 = vunpack.c.0.s8 %v3405
        %v3407 = vlaneseq
        %v3408 = vshrl.u32 %v3407, 7
        %v3409 = vsub.s32 %v3406, %v3408
        %v3410 = vrot.slane %v3402, %v3409
        %v3412 = vunpack.c.l.s4 1934713408
        %v3413 = vunpack.c.0.s8 %v3412
        %v3414 = vlaneseq
        %v3415 = vshrl.u32 %v3414, 7
        %v3416 = vsub.s32 %v3413, %v3415
        %v3417 = vrot.slane %v3403, %v3416
        %v3418 = vcombine.low %v3394, %v3410
        %v3419 = vcombine.high %v3394, %v3410
        %v3420 = vcombine.low %v3401, %v3417
        %v3421 = vcombine.high %v3401, %v3417
        %3422 = vrot.lane.b32.xlu0 %v3115, 64
        %v3423 = vpop.permute.xlu0 %3422
        %3424 = vrot.lane.b32.xlu0 %v3269, 64
        %v3425 = vpop.permute.xlu0 %3424
        %3426 = vrot.lane.b32.xlu0 %v3271, 64
        %v3427 = vpop.permute.xlu0 %3426
        %3428 = vrot.lane.b32.xlu0 %v3273, 64
        %v3429 = vpop.permute.xlu0 %3428
        %v3434 = vcombine.low %v3423, %v3427
        %v3435 = vcombine.high %v3423, %v3427
        %v3437 = vunpack.c.l.s4 1983009808
        %v3438 = vunpack.c.0.s8 %v3437
        %v3439 = vlaneseq
        %v3440 = vshrl.u32 %v3439, 7
        %v3441 = vsub.s32 %v3438, %v3440
        %v3442 = vrot.slane %v3434, %v3441
        %v3444 = vunpack.c.l.s4 1983009808
        %v3445 = vunpack.c.0.s8 %v3444
        %v3446 = vlaneseq
        %v3447 = vshrl.u32 %v3446, 7
        %v3448 = vsub.s32 %v3445, %v3447
        %v3449 = vrot.slane %v3435, %v3448
        %v3450 = vcombine.low %v3425, %v3429
        %v3451 = vcombine.high %v3425, %v3429
        %v3453 = vunpack.c.l.s4 1983009808
        %v3454 = vunpack.c.0.s8 %v3453
        %v3455 = vlaneseq
        %v3456 = vshrl.u32 %v3455, 7
        %v3457 = vsub.s32 %v3454, %v3456
        %v3458 = vrot.slane %v3450, %v3457
        %v3460 = vunpack.c.l.s4 1983009808
        %v3461 = vunpack.c.0.s8 %v3460
        %v3462 = vlaneseq
        %v3463 = vshrl.u32 %v3462, 7
        %v3464 = vsub.s32 %v3461, %v3463
        %v3465 = vrot.slane %v3451, %v3464
        %v3466 = vcombine.low %v3442, %v3458
        %v3467 = vcombine.high %v3442, %v3458
        %v3469 = vunpack.c.l.s4 1934713408
        %v3470 = vunpack.c.0.s8 %v3469
        %v3471 = vlaneseq
        %v3472 = vshrl.u32 %v3471, 7
        %v3473 = vsub.s32 %v3470, %v3472
        %v3474 = vrot.slane %v3466, %v3473
        %v3476 = vunpack.c.l.s4 1934713408
        %v3477 = vunpack.c.0.s8 %v3476
        %v3478 = vlaneseq
        %v3479 = vshrl.u32 %v3478, 7
        %v3480 = vsub.s32 %v3477, %v3479
        %v3481 = vrot.slane %v3467, %v3480
        %v3482 = vcombine.low %v3449, %v3465
        %v3483 = vcombine.high %v3449, %v3465
        %v3485 = vunpack.c.l.s4 1934713408
        %v3486 = vunpack.c.0.s8 %v3485
        %v3487 = vlaneseq
        %v3488 = vshrl.u32 %v3487, 7
        %v3489 = vsub.s32 %v3486, %v3488
        %v3490 = vrot.slane %v3482, %v3489
        %v3492 = vunpack.c.l.s4 1934713408
        %v3493 = vunpack.c.0.s8 %v3492
        %v3494 = vlaneseq
        %v3495 = vshrl.u32 %v3494, 7
        %v3496 = vsub.s32 %v3493, %v3495
        %v3497 = vrot.slane %v3483, %v3496
        %v3498 = vcombine.high %v3474, 0.0
        %v3499 = vcombine.high %v3481, 0.0
        %v3500 = vcombine.high %v3490, 0.0
        %v3501 = vcombine.high %v3497, 0.0
        %v3502 = vcombine.low %v3474, %v3481
        %v3504 = vunpack.c.l.s4 1983009808
        %v3505 = vunpack.c.0.s8 %v3504
        %v3506 = vlaneseq
        %v3507 = vshrl.u32 %v3506, 7
        %v3508 = vsub.s32 %v3505, %v3507
        %v3509 = vrot.slane %v3502, %v3508
        %v3510 = vcombine.low %v3498, %v3499
        %v3512 = vunpack.c.l.s4 1983009808
        %v3513 = vunpack.c.0.s8 %v3512
        %v3514 = vlaneseq
        %v3515 = vshrl.u32 %v3514, 7
        %v3516 = vsub.s32 %v3513, %v3515
        %v3517 = vrot.slane %v3510, %v3516
        %v3518 = vcombine.low %v3490, %v3497
        %v3520 = vunpack.c.l.s4 1983009808
        %v3521 = vunpack.c.0.s8 %v3520
        %v3522 = vlaneseq
        %v3523 = vshrl.u32 %v3522, 7
        %v3524 = vsub.s32 %v3521, %v3523
        %v3525 = vrot.slane %v3518, %v3524
        %v3526 = vcombine.low %v3500, %v3501
        %v3528 = vunpack.c.l.s4 1983009808
        %v3529 = vunpack.c.0.s8 %v3528
        %v3530 = vlaneseq
        %v3531 = vshrl.u32 %v3530, 7
        %v3532 = vsub.s32 %v3529, %v3531
        %v3533 = vrot.slane %v3526, %v3532
        %v3534 = vcombine.low %v3509, %v3517
        %v3535 = vcombine.high %v3509, %v3517
        %v3537 = vunpack.c.l.s4 1934713408
        %v3538 = vunpack.c.0.s8 %v3537
        %v3539 = vlaneseq
        %v3540 = vshrl.u32 %v3539, 7
        %v3541 = vsub.s32 %v3538, %v3540
        %v3542 = vrot.slane %v3534, %v3541
        %v3544 = vunpack.c.l.s4 1934713408
        %v3545 = vunpack.c.0.s8 %v3544
        %v3546 = vlaneseq
        %v3547 = vshrl.u32 %v3546, 7
        %v3548 = vsub.s32 %v3545, %v3547
        %v3549 = vrot.slane %v3535, %v3548
        %v3550 = vcombine.low %v3525, %v3533
        %v3551 = vcombine.high %v3525, %v3533
        %v3553 = vunpack.c.l.s4 1934713408
        %v3554 = vunpack.c.0.s8 %v3553
        %v3555 = vlaneseq
        %v3556 = vshrl.u32 %v3555, 7
        %v3557 = vsub.s32 %v3554, %v3556
        %v3558 = vrot.slane %v3550, %v3557
        %v3560 = vunpack.c.l.s4 1934713408
        %v3561 = vunpack.c.0.s8 %v3560
        %v3562 = vlaneseq
        %v3563 = vshrl.u32 %v3562, 7
        %v3564 = vsub.s32 %v3561, %v3563
        %v3565 = vrot.slane %v3551, %v3564
        %v3566 = vcombine.low %v3542, %v3558
        %v3567 = vcombine.high %v3542, %v3558
        %v3568 = vcombine.low %v3549, %v3565
        %v3569 = vcombine.high %v3549, %v3565
        %v3570 = vpack.c.bf16 %v3263, %v3263
        %v3571 = vpack.c.bf16 %v3264, %v3264
        %v3572 = vpack.c.bf16 %v3265, %v3265
        %v3573 = vpack.c.bf16 %v3266, %v3266
        %v3574 = vpack.c.bf16 %v3418, %v3418
        %v3575 = vpack.c.bf16 %v3419, %v3419
        %v3576 = vpack.c.bf16 %v3420, %v3420
        %v3577 = vpack.c.bf16 %v3421, %v3421
        %v3578 = vld [vmem:[%s3] sm:$0xff]
        %v3580 = vsel %vm2177, %v3570, 0
        %v3583 = vsel %vm2177, %v3574, 0
        %3585 = vmatprep.subr.bf16.mxu0 0
        %3586 = vmatpush1.bf16.xpose.msra.mxu0 0
        %3587 = vmatprep.subr.bf16.mxu0 0
        %3588 = vmatpush1.bf16.xpose.msra.mxu0 0
        %3589 = vmatprep.subr.bf16.mxu0 0
        %3590 = vmatpush1.bf16.xpose.msra.mxu0 0
        %3591 = vmatprep.subr.bf16.mxu0 0
        %3592 = vmatpush1.bf16.xpose.msra.mxu0 0
        %3593 = vmatprep.subr.bf16.mxu0 0
        %3594 = vmatpush1.bf16.xpose.msra.mxu0 0
        %3595 = vmatprep.subr.bf16.mxu0 0
        %3596 = vmatpush1.bf16.xpose.msra.mxu0 0
        %3597 = vmatprep.subr.bf16.mxu0 0
        %3598 = vmatpush1.bf16.xpose.msra.mxu0 0
        %3599 = vmatprep.subr.bf16.mxu0 0
        %3600 = vmatpush1.bf16.xpose.msra.mxu0 %v3583
        %3601 = vmatprep.subr.bf16.mxu0 0
        %3602 = vmatpush2.bf16.xpose.msra.mxu0 0
        %3603 = vmatprep.subr.bf16.mxu0 0
        %3604 = vmatpush2.bf16.xpose.msra.mxu0 0
        %3605 = vmatprep.subr.bf16.mxu0 0
        %3606 = vmatpush2.bf16.xpose.msra.mxu0 0
        %3607 = vmatprep.subr.bf16.mxu0 0
        %3608 = vmatpush2.bf16.xpose.msra.mxu0 0
        %3609 = vmatprep.subr.bf16.mxu0 0
        %3610 = vmatpush2.bf16.xpose.msra.mxu0 0
        %3611 = vmatprep.subr.bf16.mxu0 0
        %3612 = vmatpush2.bf16.xpose.msra.mxu0 0
        %3613 = vmatprep.subr.bf16.mxu0 0
        %3614 = vmatpush2.bf16.xpose.msra.mxu0 0
        %3615 = vmatprep.subr.bf16.mxu0 0
        %3616 = vmatpush2.bf16.xpose.msra.mxu0 0
        %3617 = vmatprep.mubr.bf16.mxu0 0
        %3618 = vmatmul.mubr.bf16.gmra.mxu0 %v3580
        %v3619 = vpop.f32.mrf.mxu0
        %v3620 = vadd.f32 %v3578, %v3619
        %v3621 = vpop.f32.mrf.mxu0
        %v3622 = vpop.f32.mrf.mxu0
        %v3623 = vpop.f32.mrf.mxu0
        %3624 = vdwg.mxu0
        %v3626 = vsel %vm2177, %v3571, 0
        %v3629 = vsel %vm2177, %v3575, 0
        %3631 = vmatprep.subr.bf16.mxu0 0
        %3632 = vmatpush1.bf16.xpose.msra.mxu0 0
        %3633 = vmatprep.subr.bf16.mxu0 0
        %3634 = vmatpush1.bf16.xpose.msra.mxu0 0
        %3635 = vmatprep.subr.bf16.mxu0 0
        %3636 = vmatpush1.bf16.xpose.msra.mxu0 0
        %3637 = vmatprep.subr.bf16.mxu0 0
        %3638 = vmatpush1.bf16.xpose.msra.mxu0 0
        %3639 = vmatprep.subr.bf16.mxu0 0
        %3640 = vmatpush1.bf16.xpose.msra.mxu0 0
        %3641 = vmatprep.subr.bf16.mxu0 0
        %3642 = vmatpush1.bf16.xpose.msra.mxu0 0
        %3643 = vmatprep.subr.bf16.mxu0 0
        %3644 = vmatpush1.bf16.xpose.msra.mxu0 0
        %3645 = vmatprep.subr.bf16.mxu0 0
        %3646 = vmatpush1.bf16.xpose.msra.mxu0 %v3629
        %3647 = vmatprep.subr.bf16.mxu0 0
        %3648 = vmatpush2.bf16.xpose.msra.mxu0 0
        %3649 = vmatprep.subr.bf16.mxu0 0
        %3650 = vmatpush2.bf16.xpose.msra.mxu0 0
        %3651 = vmatprep.subr.bf16.mxu0 0
        %3652 = vmatpush2.bf16.xpose.msra.mxu0 0
        %3653 = vmatprep.subr.bf16.mxu0 0
        %3654 = vmatpush2.bf16.xpose.msra.mxu0 0
        %3655 = vmatprep.subr.bf16.mxu0 0
        %3656 = vmatpush2.bf16.xpose.msra.mxu0 0
        %3657 = vmatprep.subr.bf16.mxu0 0
        %3658 = vmatpush2.bf16.xpose.msra.mxu0 0
        %3659 = vmatprep.subr.bf16.mxu0 0
        %3660 = vmatpush2.bf16.xpose.msra.mxu0 0
        %3661 = vmatprep.subr.bf16.mxu0 0
        %3662 = vmatpush2.bf16.xpose.msra.mxu0 0
        %3663 = vmatprep.mubr.bf16.mxu0 0
        %3664 = vmatmul.mubr.bf16.gmra.mxu0 %v3626
        %v3665 = vpop.f32.mrf.mxu0
        %v3666 = vadd.f32 %v3578, %v3665
        %v3667 = vpop.f32.mrf.mxu0
        %v3668 = vpop.f32.mrf.mxu0
        %v3669 = vpop.f32.mrf.mxu0
        %3670 = vdwg.mxu0
        %v3672 = vsel %vm2177, %v3572, 0
        %v3675 = vsel %vm2177, %v3576, 0
        %3677 = vmatprep.subr.bf16.mxu0 0
        %3678 = vmatpush1.bf16.xpose.msra.mxu0 0
        %3679 = vmatprep.subr.bf16.mxu0 0
        %3680 = vmatpush1.bf16.xpose.msra.mxu0 0
        %3681 = vmatprep.subr.bf16.mxu0 0
        %3682 = vmatpush1.bf16.xpose.msra.mxu0 0
        %3683 = vmatprep.subr.bf16.mxu0 0
        %3684 = vmatpush1.bf16.xpose.msra.mxu0 0
        %3685 = vmatprep.subr.bf16.mxu0 0
        %3686 = vmatpush1.bf16.xpose.msra.mxu0 0
        %3687 = vmatprep.subr.bf16.mxu0 0
        %3688 = vmatpush1.bf16.xpose.msra.mxu0 0
        %3689 = vmatprep.subr.bf16.mxu0 0
        %3690 = vmatpush1.bf16.xpose.msra.mxu0 0
        %3691 = vmatprep.subr.bf16.mxu0 0
        %3692 = vmatpush1.bf16.xpose.msra.mxu0 %v3675
        %3693 = vmatprep.subr.bf16.mxu0 0
        %3694 = vmatpush2.bf16.xpose.msra.mxu0 0
        %3695 = vmatprep.subr.bf16.mxu0 0
        %3696 = vmatpush2.bf16.xpose.msra.mxu0 0
        %3697 = vmatprep.subr.bf16.mxu0 0
        %3698 = vmatpush2.bf16.xpose.msra.mxu0 0
        %3699 = vmatprep.subr.bf16.mxu0 0
        %3700 = vmatpush2.bf16.xpose.msra.mxu0 0
        %3701 = vmatprep.subr.bf16.mxu0 0
        %3702 = vmatpush2.bf16.xpose.msra.mxu0 0
        %3703 = vmatprep.subr.bf16.mxu0 0
        %3704 = vmatpush2.bf16.xpose.msra.mxu0 0
        %3705 = vmatprep.subr.bf16.mxu0 0
        %3706 = vmatpush2.bf16.xpose.msra.mxu0 0
        %3707 = vmatprep.subr.bf16.mxu0 0
        %3708 = vmatpush2.bf16.xpose.msra.mxu0 0
        %3709 = vmatprep.mubr.bf16.mxu0 0
        %3710 = vmatmul.mubr.bf16.gmra.mxu0 %v3672
        %v3711 = vpop.f32.mrf.mxu0
        %v3712 = vadd.f32 %v3578, %v3711
        %v3713 = vpop.f32.mrf.mxu0
        %v3714 = vpop.f32.mrf.mxu0
        %v3715 = vpop.f32.mrf.mxu0
        %3716 = vdwg.mxu0
        %v3718 = vsel %vm2177, %v3573, 0
        %v3721 = vsel %vm2177, %v3577, 0
        %3723 = vmatprep.subr.bf16.mxu0 0
        %3724 = vmatpush1.bf16.xpose.msra.mxu0 0
        %3725 = vmatprep.subr.bf16.mxu0 0
        %3726 = vmatpush1.bf16.xpose.msra.mxu0 0
        %3727 = vmatprep.subr.bf16.mxu0 0
        %3728 = vmatpush1.bf16.xpose.msra.mxu0 0
        %3729 = vmatprep.subr.bf16.mxu0 0
        %3730 = vmatpush1.bf16.xpose.msra.mxu0 0
        %3731 = vmatprep.subr.bf16.mxu0 0
        %3732 = vmatpush1.bf16.xpose.msra.mxu0 0
        %3733 = vmatprep.subr.bf16.mxu0 0
        %3734 = vmatpush1.bf16.xpose.msra.mxu0 0
        %3735 = vmatprep.subr.bf16.mxu0 0
        %3736 = vmatpush1.bf16.xpose.msra.mxu0 0
        %3737 = vmatprep.subr.bf16.mxu0 0
        %3738 = vmatpush1.bf16.xpose.msra.mxu0 %v3721
        %3739 = vmatprep.subr.bf16.mxu0 0
        %3740 = vmatpush2.bf16.xpose.msra.mxu0 0
        %3741 = vmatprep.subr.bf16.mxu0 0
        %3742 = vmatpush2.bf16.xpose.msra.mxu0 0
        %3743 = vmatprep.subr.bf16.mxu0 0
        %3744 = vmatpush2.bf16.xpose.msra.mxu0 0
        %3745 = vmatprep.subr.bf16.mxu0 0
        %3746 = vmatpush2.bf16.xpose.msra.mxu0 0
        %3747 = vmatprep.subr.bf16.mxu0 0
        %3748 = vmatpush2.bf16.xpose.msra.mxu0 0
        %3749 = vmatprep.subr.bf16.mxu0 0
        %3750 = vmatpush2.bf16.xpose.msra.mxu0 0
        %3751 = vmatprep.subr.bf16.mxu0 0
        %3752 = vmatpush2.bf16.xpose.msra.mxu0 0
        %3753 = vmatprep.subr.bf16.mxu0 0
        %3754 = vmatpush2.bf16.xpose.msra.mxu0 0
        %3755 = vmatprep.mubr.bf16.mxu0 0
        %3756 = vmatmul.mubr.bf16.gmra.mxu0 %v3718
        %v3757 = vpop.f32.mrf.mxu0
        %v3758 = vadd.f32 %v3578, %v3757
        %v3759 = vpop.f32.mrf.mxu0
        %v3760 = vpop.f32.mrf.mxu0
        %v3761 = vpop.f32.mrf.mxu0
        %3762 = vdwg.mxu0
        %v3763 = vsel %vm2177, %v3620, -inf
        %3764 = vmax.xlane.f32.xlu0 %v3763
        %v3765 = vpop.xlane.xlu0 %3764
        %v3766 = vsel %vm2177, %v3666, -inf
        %3767 = vmax.xlane.f32.xlu0 %v3766
        %v3768 = vpop.xlane.xlu0 %3767
        %v3769 = vsel %vm2177, %v3712, -inf
        %3770 = vmax.xlane.f32.xlu0 %v3769
        %v3771 = vpop.xlane.xlu0 %3770
        %v3772 = vsel %vm2177, %v3758, -inf
        %3773 = vmax.xlane.f32.xlu0 %v3772
        %v3774 = vpop.xlane.xlu0 %3773
        %v3775 = vsub.f32 %v3620, %v3765
        %v3776 = vsub.f32 %v3666, %v3768
        %v3777 = vsub.f32 %v3712, %v3771
        %v3778 = vsub.f32 %v3758, %v3774
        %v3779 = vmul.f32 %v3775, 1.442695
        %v3780 = vpow.pop %v3779
        %v3781 = vmul.f32 %v3776, 1.442695
        %v3782 = vpow.pop %v3781
        %v3783 = vmul.f32 %v3777, 1.442695
        %v3784 = vpow.pop %v3783
        %v3785 = vmul.f32 %v3778, 1.442695
        %v3786 = vpow.pop %v3785
        %v3787 = vsel %vm2177, %v3780, 0.0
        %3788 = vadd.xlane.f32.xlu0 %v3787
        %v3789 = vpop.xlane.xlu0 %3788
        %v3790 = vsel %vm2177, %v3782, 0.0
        %3791 = vadd.xlane.f32.xlu0 %v3790
        %v3792 = vpop.xlane.xlu0 %3791
        %v3793 = vsel %vm2177, %v3784, 0.0
        %3794 = vadd.xlane.f32.xlu0 %v3793
        %v3795 = vpop.xlane.xlu0 %3794
        %v3796 = vsel %vm2177, %v3786, 0.0
        %3797 = vadd.xlane.f32.xlu0 %v3796
        %v3798 = vpop.xlane.xlu0 %3797
        %v3799 = vrcp.pop %v3789
        %v3800 = vrcp.pop %v3792
        %v3801 = vrcp.pop %v3795
        %v3802 = vrcp.pop %v3798
        %v3803 = vmul.f32 %v3780, %v3799
        %v3804 = vmul.f32 %v3782, %v3800
        %v3805 = vmul.f32 %v3784, %v3801
        %v3806 = vmul.f32 %v3786, %v3802
        %v3807 = vpack.c.bf16 %v3803, %v3803
        %v3808 = vpack.c.bf16 %v3804, %v3804
        %v3809 = vpack.c.bf16 %v3805, %v3805
        %v3810 = vpack.c.bf16 %v3806, %v3806
        %v3811 = vpack.c.bf16 %v3566, %v3566
        %v3812 = vpack.c.bf16 %v3567, %v3567
        %v3813 = vpack.c.bf16 %v3568, %v3568
        %v3814 = vpack.c.bf16 %v3569, %v3569
        %v3816 = vsel %vm2177, %v3807, 0
        %v3819 = vsel %vm2417, %v3811, 0
        %3821 = vmatprep.subr.bf16.mxu0 0
        %3822 = vmatpush1.bf16.msra.mxu0 0
        %3823 = vmatprep.subr.bf16.mxu0 0
        %3824 = vmatpush1.bf16.msra.mxu0 0
        %3825 = vmatprep.subr.bf16.mxu0 0
        %3826 = vmatpush1.bf16.msra.mxu0 0
        %3827 = vmatprep.subr.bf16.mxu0 0
        %3828 = vmatpush1.bf16.msra.mxu0 0
        %3829 = vmatprep.subr.bf16.mxu0 0
        %3830 = vmatpush1.bf16.msra.mxu0 0
        %3831 = vmatprep.subr.bf16.mxu0 0
        %3832 = vmatpush1.bf16.msra.mxu0 0
        %3833 = vmatprep.subr.bf16.mxu0 0
        %3834 = vmatpush1.bf16.msra.mxu0 0
        %3835 = vmatprep.subr.bf16.mxu0 0
        %3836 = vmatpush1.bf16.msra.mxu0 %v3819
        %3837 = vmatprep.subr.bf16.mxu0 0
        %3838 = vmatpush2.bf16.msra.mxu0 0
        %3839 = vmatprep.subr.bf16.mxu0 0
        %3840 = vmatpush2.bf16.msra.mxu0 0
        %3841 = vmatprep.subr.bf16.mxu0 0
        %3842 = vmatpush2.bf16.msra.mxu0 0
        %3843 = vmatprep.subr.bf16.mxu0 0
        %3844 = vmatpush2.bf16.msra.mxu0 0
        %3845 = vmatprep.subr.bf16.mxu0 0
        %3846 = vmatpush2.bf16.msra.mxu0 0
        %3847 = vmatprep.subr.bf16.mxu0 0
        %3848 = vmatpush2.bf16.msra.mxu0 0
        %3849 = vmatprep.subr.bf16.mxu0 0
        %3850 = vmatpush2.bf16.msra.mxu0 0
        %3851 = vmatprep.subr.bf16.mxu0 0
        %3852 = vmatpush2.bf16.msra.mxu0 0
        %3853 = vmatprep.mubr.bf16.mxu0 0
        %3854 = vmatmul.mubr.bf16.gmra.mxu0 %v3816
        %v3855 = vpop.f32.mrf.mxu0
        %v3856 = vadd.f32 0.0, %v3855
        %v3857 = vpop.f32.mrf.mxu0
        %v3858 = vpop.f32.mrf.mxu0
        %v3859 = vpop.f32.mrf.mxu0
        %3860 = vdwg.mxu0
        %v3862 = vsel %vm2177, %v3808, 0
        %v3865 = vsel %vm2417, %v3812, 0
        %3867 = vmatprep.subr.bf16.mxu0 0
        %3868 = vmatpush1.bf16.msra.mxu0 0
        %3869 = vmatprep.subr.bf16.mxu0 0
        %3870 = vmatpush1.bf16.msra.mxu0 0
        %3871 = vmatprep.subr.bf16.mxu0 0
        %3872 = vmatpush1.bf16.msra.mxu0 0
        %3873 = vmatprep.subr.bf16.mxu0 0
        %3874 = vmatpush1.bf16.msra.mxu0 0
        %3875 = vmatprep.subr.bf16.mxu0 0
        %3876 = vmatpush1.bf16.msra.mxu0 0
        %3877 = vmatprep.subr.bf16.mxu0 0
        %3878 = vmatpush1.bf16.msra.mxu0 0
        %3879 = vmatprep.subr.bf16.mxu0 0
        %3880 = vmatpush1.bf16.msra.mxu0 0
        %3881 = vmatprep.subr.bf16.mxu0 0
        %3882 = vmatpush1.bf16.msra.mxu0 %v3865
        %3883 = vmatprep.subr.bf16.mxu0 0
        %3884 = vmatpush2.bf16.msra.mxu0 0
        %3885 = vmatprep.subr.bf16.mxu0 0
        %3886 = vmatpush2.bf16.msra.mxu0 0
        %3887 = vmatprep.subr.bf16.mxu0 0
        %3888 = vmatpush2.bf16.msra.mxu0 0
        %3889 = vmatprep.subr.bf16.mxu0 0
        %3890 = vmatpush2.bf16.msra.mxu0 0
        %3891 = vmatprep.subr.bf16.mxu0 0
        %3892 = vmatpush2.bf16.msra.mxu0 0
        %3893 = vmatprep.subr.bf16.mxu0 0
        %3894 = vmatpush2.bf16.msra.mxu0 0
        %3895 = vmatprep.subr.bf16.mxu0 0
        %3896 = vmatpush2.bf16.msra.mxu0 0
        %3897 = vmatprep.subr.bf16.mxu0 0
        %3898 = vmatpush2.bf16.msra.mxu0 0
        %3899 = vmatprep.mubr.bf16.mxu0 0
        %3900 = vmatmul.mubr.bf16.gmra.mxu0 %v3862
        %v3901 = vpop.f32.mrf.mxu0
        %v3902 = vadd.f32 0.0, %v3901
        %v3903 = vpop.f32.mrf.mxu0
        %v3904 = vpop.f32.mrf.mxu0
        %v3905 = vpop.f32.mrf.mxu0
        %3906 = vdwg.mxu0
        %v3908 = vsel %vm2177, %v3809, 0
        %v3911 = vsel %vm2417, %v3813, 0
        %3913 = vmatprep.subr.bf16.mxu0 0
        %3914 = vmatpush1.bf16.msra.mxu0 0
        %3915 = vmatprep.subr.bf16.mxu0 0
        %3916 = vmatpush1.bf16.msra.mxu0 0
        %3917 = vmatprep.subr.bf16.mxu0 0
        %3918 = vmatpush1.bf16.msra.mxu0 0
        %3919 = vmatprep.subr.bf16.mxu0 0
        %3920 = vmatpush1.bf16.msra.mxu0 0
        %3921 = vmatprep.subr.bf16.mxu0 0
        %3922 = vmatpush1.bf16.msra.mxu0 0
        %3923 = vmatprep.subr.bf16.mxu0 0
        %3924 = vmatpush1.bf16.msra.mxu0 0
        %3925 = vmatprep.subr.bf16.mxu0 0
        %3926 = vmatpush1.bf16.msra.mxu0 0
        %3927 = vmatprep.subr.bf16.mxu0 0
        %3928 = vmatpush1.bf16.msra.mxu0 %v3911
        %3929 = vmatprep.subr.bf16.mxu0 0
        %3930 = vmatpush2.bf16.msra.mxu0 0
        %3931 = vmatprep.subr.bf16.mxu0 0
        %3932 = vmatpush2.bf16.msra.mxu0 0
        %3933 = vmatprep.subr.bf16.mxu0 0
        %3934 = vmatpush2.bf16.msra.mxu0 0
        %3935 = vmatprep.subr.bf16.mxu0 0
        %3936 = vmatpush2.bf16.msra.mxu0 0
        %3937 = vmatprep.subr.bf16.mxu0 0
        %3938 = vmatpush2.bf16.msra.mxu0 0
        %3939 = vmatprep.subr.bf16.mxu0 0
        %3940 = vmatpush2.bf16.msra.mxu0 0
        %3941 = vmatprep.subr.bf16.mxu0 0
        %3942 = vmatpush2.bf16.msra.mxu0 0
        %3943 = vmatprep.subr.bf16.mxu0 0
        %3944 = vmatpush2.bf16.msra.mxu0 0
        %3945 = vmatprep.mubr.bf16.mxu0 0
        %3946 = vmatmul.mubr.bf16.gmra.mxu0 %v3908
        %v3947 = vpop.f32.mrf.mxu0
        %v3948 = vadd.f32 0.0, %v3947
        %v3949 = vpop.f32.mrf.mxu0
        %v3950 = vpop.f32.mrf.mxu0
        %v3951 = vpop.f32.mrf.mxu0
        %3952 = vdwg.mxu0
        %v3954 = vsel %vm2177, %v3810, 0
        %v3957 = vsel %vm2417, %v3814, 0
        %3959 = vmatprep.subr.bf16.mxu0 0
        %3960 = vmatpush1.bf16.msra.mxu0 0
        %3961 = vmatprep.subr.bf16.mxu0 0
        %3962 = vmatpush1.bf16.msra.mxu0 0
        %3963 = vmatprep.subr.bf16.mxu0 0
        %3964 = vmatpush1.bf16.msra.mxu0 0
        %3965 = vmatprep.subr.bf16.mxu0 0
        %3966 = vmatpush1.bf16.msra.mxu0 0
        %3967 = vmatprep.subr.bf16.mxu0 0
        %3968 = vmatpush1.bf16.msra.mxu0 0
        %3969 = vmatprep.subr.bf16.mxu0 0
        %3970 = vmatpush1.bf16.msra.mxu0 0
        %3971 = vmatprep.subr.bf16.mxu0 0
        %3972 = vmatpush1.bf16.msra.mxu0 0
        %3973 = vmatprep.subr.bf16.mxu0 0
        %3974 = vmatpush1.bf16.msra.mxu0 %v3957
        %3975 = vmatprep.subr.bf16.mxu0 0
        %3976 = vmatpush2.bf16.msra.mxu0 0
        %3977 = vmatprep.subr.bf16.mxu0 0
        %3978 = vmatpush2.bf16.msra.mxu0 0
        %3979 = vmatprep.subr.bf16.mxu0 0
        %3980 = vmatpush2.bf16.msra.mxu0 0
        %3981 = vmatprep.subr.bf16.mxu0 0
        %3982 = vmatpush2.bf16.msra.mxu0 0
        %3983 = vmatprep.subr.bf16.mxu0 0
        %3984 = vmatpush2.bf16.msra.mxu0 0
        %3985 = vmatprep.subr.bf16.mxu0 0
        %3986 = vmatpush2.bf16.msra.mxu0 0
        %3987 = vmatprep.subr.bf16.mxu0 0
        %3988 = vmatpush2.bf16.msra.mxu0 0
        %3989 = vmatprep.subr.bf16.mxu0 0
        %3990 = vmatpush2.bf16.msra.mxu0 0
        %3991 = vmatprep.mubr.bf16.mxu0 0
        %3992 = vmatmul.mubr.bf16.gmra.mxu0 %v3954
        %v3993 = vpop.f32.mrf.mxu0
        %v3994 = vadd.f32 0.0, %v3993
        %v3995 = vpop.f32.mrf.mxu0
        %v3996 = vpop.f32.mrf.mxu0
        %v3997 = vpop.f32.mrf.mxu0
        %3998 = vdwg.mxu0
        %v3999 = vpack.c.bf16 %v3856, %v3856
        %v4000 = vpack.c.bf16 %v3902, %v3902
        %v4001 = vpack.c.bf16 %v3948, %v3948
        %v4002 = vpack.c.bf16 %v3994, %v3994
        %v4004 = vsel %vm2177, %v3999, 0
        %4006 = vmatprep.subr.bf16.mxu0 0
        %4007 = vmatpush1.bf16.xpose.msra.mxu0 0
        %4008 = vmatprep.subr.bf16.mxu0 0
        %4009 = vmatpush1.bf16.xpose.msra.mxu0 0
        %4010 = vmatprep.subr.bf16.mxu0 0
        %4011 = vmatpush1.bf16.xpose.msra.mxu0 0
        %4012 = vmatprep.subr.bf16.mxu0 0
        %4013 = vmatpush1.bf16.xpose.msra.mxu0 0
        %4014 = vmatprep.subr.bf16.mxu0 0
        %4015 = vmatpush1.bf16.xpose.msra.mxu0 0
        %4016 = vmatprep.subr.bf16.mxu0 0
        %4017 = vmatpush1.bf16.xpose.msra.mxu0 0
        %4018 = vmatprep.subr.bf16.mxu0 0
        %4019 = vmatpush1.bf16.xpose.msra.mxu0 %v2620
        %4020 = vmatprep.subr.bf16.mxu0 0
        %4021 = vmatpush1.bf16.xpose.msra.mxu0 %v2617
        %4022 = vmatprep.subr.bf16.mxu0 0
        %4023 = vmatpush2.bf16.xpose.msra.mxu0 0
        %4024 = vmatprep.subr.bf16.mxu0 0
        %4025 = vmatpush2.bf16.xpose.msra.mxu0 0
        %4026 = vmatprep.subr.bf16.mxu0 0
        %4027 = vmatpush2.bf16.xpose.msra.mxu0 0
        %4028 = vmatprep.subr.bf16.mxu0 0
        %4029 = vmatpush2.bf16.xpose.msra.mxu0 0
        %4030 = vmatprep.subr.bf16.mxu0 0
        %4031 = vmatpush2.bf16.xpose.msra.mxu0 0
        %4032 = vmatprep.subr.bf16.mxu0 0
        %4033 = vmatpush2.bf16.xpose.msra.mxu0 0
        %4034 = vmatprep.subr.bf16.mxu0 0
        %4035 = vmatpush2.bf16.xpose.msra.mxu0 0
        %4036 = vmatprep.subr.bf16.mxu0 0
        %4037 = vmatpush2.bf16.xpose.msra.mxu0 0
        %4038 = vmatprep.mubr.bf16.mxu0 0
        %4039 = vmatmul.mubr.bf16.gmra.mxu0 %v4004
        %v4040 = vpop.f32.mrf.mxu0
        %v4041 = vadd.f32 0.0, %v4040
        %v4042 = vpop.f32.mrf.mxu0
        %v4043 = vpop.f32.mrf.mxu0
        %v4044 = vpop.f32.mrf.mxu0
        %4045 = vdwg.mxu0
        %v4047 = vsel %vm2177, %v4000, 0
        %4049 = vmatprep.subr.bf16.mxu0 0
        %4050 = vmatpush1.bf16.xpose.msra.mxu0 0
        %4051 = vmatprep.subr.bf16.mxu0 0
        %4052 = vmatpush1.bf16.xpose.msra.mxu0 0
        %4053 = vmatprep.subr.bf16.mxu0 0
        %4054 = vmatpush1.bf16.xpose.msra.mxu0 0
        %4055 = vmatprep.subr.bf16.mxu0 0
        %4056 = vmatpush1.bf16.xpose.msra.mxu0 0
        %4057 = vmatprep.subr.bf16.mxu0 0
        %4058 = vmatpush1.bf16.xpose.msra.mxu0 0
        %4059 = vmatprep.subr.bf16.mxu0 0
        %4060 = vmatpush1.bf16.xpose.msra.mxu0 0
        %4061 = vmatprep.subr.bf16.mxu0 0
        %4062 = vmatpush1.bf16.xpose.msra.mxu0 %v2679
        %4063 = vmatprep.subr.bf16.mxu0 0
        %4064 = vmatpush1.bf16.xpose.msra.mxu0 %v2676
        %4065 = vmatprep.subr.bf16.mxu0 0
        %4066 = vmatpush2.bf16.xpose.msra.mxu0 0
        %4067 = vmatprep.subr.bf16.mxu0 0
        %4068 = vmatpush2.bf16.xpose.msra.mxu0 0
        %4069 = vmatprep.subr.bf16.mxu0 0
        %4070 = vmatpush2.bf16.xpose.msra.mxu0 0
        %4071 = vmatprep.subr.bf16.mxu0 0
        %4072 = vmatpush2.bf16.xpose.msra.mxu0 0
        %4073 = vmatprep.subr.bf16.mxu0 0
        %4074 = vmatpush2.bf16.xpose.msra.mxu0 0
        %4075 = vmatprep.subr.bf16.mxu0 0
        %4076 = vmatpush2.bf16.xpose.msra.mxu0 0
        %4077 = vmatprep.subr.bf16.mxu0 0
        %4078 = vmatpush2.bf16.xpose.msra.mxu0 0
        %4079 = vmatprep.subr.bf16.mxu0 0
        %4080 = vmatpush2.bf16.xpose.msra.mxu0 0
        %4081 = vmatprep.mubr.bf16.mxu0 0
        %4082 = vmatmul.mubr.bf16.gmra.mxu0 %v4047
        %v4083 = vpop.f32.mrf.mxu0
        %v4084 = vadd.f32 0.0, %v4083
        %v4085 = vpop.f32.mrf.mxu0
        %v4086 = vpop.f32.mrf.mxu0
        %v4087 = vpop.f32.mrf.mxu0
        %4088 = vdwg.mxu0
        %v4090 = vsel %vm2177, %v4001, 0
        %4092 = vmatprep.subr.bf16.mxu0 0
        %4093 = vmatpush1.bf16.xpose.msra.mxu0 0
        %4094 = vmatprep.subr.bf16.mxu0 0
        %4095 = vmatpush1.bf16.xpose.msra.mxu0 0
        %4096 = vmatprep.subr.bf16.mxu0 0
        %4097 = vmatpush1.bf16.xpose.msra.mxu0 0
        %4098 = vmatprep.subr.bf16.mxu0 0
        %4099 = vmatpush1.bf16.xpose.msra.mxu0 0
        %4100 = vmatprep.subr.bf16.mxu0 0
        %4101 = vmatpush1.bf16.xpose.msra.mxu0 0
        %4102 = vmatprep.subr.bf16.mxu0 0
        %4103 = vmatpush1.bf16.xpose.msra.mxu0 0
        %4104 = vmatprep.subr.bf16.mxu0 0
        %4105 = vmatpush1.bf16.xpose.msra.mxu0 %v2738
        %4106 = vmatprep.subr.bf16.mxu0 0
        %4107 = vmatpush1.bf16.xpose.msra.mxu0 %v2735
        %4108 = vmatprep.subr.bf16.mxu0 0
        %4109 = vmatpush2.bf16.xpose.msra.mxu0 0
        %4110 = vmatprep.subr.bf16.mxu0 0
        %4111 = vmatpush2.bf16.xpose.msra.mxu0 0
        %4112 = vmatprep.subr.bf16.mxu0 0
        %4113 = vmatpush2.bf16.xpose.msra.mxu0 0
        %4114 = vmatprep.subr.bf16.mxu0 0
        %4115 = vmatpush2.bf16.xpose.msra.mxu0 0
        %4116 = vmatprep.subr.bf16.mxu0 0
        %4117 = vmatpush2.bf16.xpose.msra.mxu0 0
        %4118 = vmatprep.subr.bf16.mxu0 0
        %4119 = vmatpush2.bf16.xpose.msra.mxu0 0
        %4120 = vmatprep.subr.bf16.mxu0 0
        %4121 = vmatpush2.bf16.xpose.msra.mxu0 0
        %4122 = vmatprep.subr.bf16.mxu0 0
        %4123 = vmatpush2.bf16.xpose.msra.mxu0 0
        %4124 = vmatprep.mubr.bf16.mxu0 0
        %4125 = vmatmul.mubr.bf16.gmra.mxu0 %v4090
        %v4126 = vpop.f32.mrf.mxu0
        %v4127 = vadd.f32 0.0, %v4126
        %v4128 = vpop.f32.mrf.mxu0
        %v4129 = vpop.f32.mrf.mxu0
        %v4130 = vpop.f32.mrf.mxu0
        %4131 = vdwg.mxu0
        %v4133 = vsel %vm2177, %v4002, 0
        %4135 = vmatprep.subr.bf16.mxu0 0
        %4136 = vmatpush1.bf16.xpose.msra.mxu0 0
        %4137 = vmatprep.subr.bf16.mxu0 0
        %4138 = vmatpush1.bf16.xpose.msra.mxu0 0
        %4139 = vmatprep.subr.bf16.mxu0 0
        %4140 = vmatpush1.bf16.xpose.msra.mxu0 0
        %4141 = vmatprep.subr.bf16.mxu0 0
        %4142 = vmatpush1.bf16.xpose.msra.mxu0 0
        %4143 = vmatprep.subr.bf16.mxu0 0
        %4144 = vmatpush1.bf16.xpose.msra.mxu0 0
        %4145 = vmatprep.subr.bf16.mxu0 0
        %4146 = vmatpush1.bf16.xpose.msra.mxu0 0
        %4147 = vmatprep.subr.bf16.mxu0 0
        %4148 = vmatpush1.bf16.xpose.msra.mxu0 %v2797
        %4149 = vmatprep.subr.bf16.mxu0 0
        %4150 = vmatpush1.bf16.xpose.msra.mxu0 %v2794
        %4151 = vmatprep.subr.bf16.mxu0 0
        %4152 = vmatpush2.bf16.xpose.msra.mxu0 0
        %4153 = vmatprep.subr.bf16.mxu0 0
        %4154 = vmatpush2.bf16.xpose.msra.mxu0 0
        %4155 = vmatprep.subr.bf16.mxu0 0
        %4156 = vmatpush2.bf16.xpose.msra.mxu0 0
        %4157 = vmatprep.subr.bf16.mxu0 0
        %4158 = vmatpush2.bf16.xpose.msra.mxu0 0
        %4159 = vmatprep.subr.bf16.mxu0 0
        %4160 = vmatpush2.bf16.xpose.msra.mxu0 0
        %4161 = vmatprep.subr.bf16.mxu0 0
        %4162 = vmatpush2.bf16.xpose.msra.mxu0 0
        %4163 = vmatprep.subr.bf16.mxu0 0
        %4164 = vmatpush2.bf16.xpose.msra.mxu0 0
        %4165 = vmatprep.subr.bf16.mxu0 0
        %4166 = vmatpush2.bf16.xpose.msra.mxu0 0
        %4167 = vmatprep.mubr.bf16.mxu0 0
        %4168 = vmatmul.mubr.bf16.gmra.mxu0 %v4133
        %v4169 = vpop.f32.mrf.mxu0
        %v4170 = vadd.f32 0.0, %v4169
        %v4171 = vpop.f32.mrf.mxu0
        %v4172 = vpop.f32.mrf.mxu0
        %v4173 = vpop.f32.mrf.mxu0
        %4174 = vdwg.mxu0
        %v4175 = vsel %vm1591, %v4041, 0.0
        %v4176 = vsel %vm1591, %v4084, 0.0
        %v4177 = vadd.f32 %v4175, %v4176
        %v4178 = vsel %vm1591, %v4127, 0.0
        %v4179 = vadd.f32 %v4177, %v4178
        %v4180 = vsel %vm1591, %v4170, 0.0
        %v4181 = vadd.f32 %v4179, %v4180
        %v4182 = vadd.f32 %v1590, %v4181
        %v4183 = vadd.f32 %v4182, %v2851
        %v4184 = vsel %vm1591, %v4183, 0.0
        %4185 = vadd.xlane.f32.xlu0 %v4184
        %v4186 = vpop.xlane.xlu0 %4185
        %v4187 = vmul.f32 %v4186, %v1595
        %v4188 = vsub.f32 %v4183, %v4187
        %v4189 = vmul.f32 %v4188, %v4188
        %v4190 = vsel %vm1591, %v4189, 0.0
        %4191 = vadd.xlane.f32.xlu0 %v4190
        %v4192 = vpop.xlane.xlu0 %4191
        %v4193 = vmul.f32 %v4192, %v1595
        %v4194 = vadd.f32 %v4193, 1e-05
        %v4195 = vrsqrt.pop %v4194
        %v4196 = vmul.f32 %v4188, %v4195
        %v4197 = vmul.f32 %v4196, %v2871
        %v4198 = vadd.f32 %v4197, %v2878
        %v4199 = vpack.c.bf16 %v4198, %v4198
        %v4201 = vsel %vm1591, %v4199, 0
        %4203 = vmatprep.subr.bf16.mxu0 0
        %4204 = vmatpush1.bf16.xpose.msra.mxu0 %v2953
        %4205 = vmatprep.subr.bf16.mxu0 0
        %4206 = vmatpush1.bf16.xpose.msra.mxu0 %v2950
        %4207 = vmatprep.subr.bf16.mxu0 0
        %4208 = vmatpush1.bf16.xpose.msra.mxu0 %v2947
        %4209 = vmatprep.subr.bf16.mxu0 0
        %4210 = vmatpush1.bf16.xpose.msra.mxu0 %v2944
        %4211 = vmatprep.subr.bf16.mxu0 0
        %4212 = vmatpush1.bf16.xpose.msra.mxu0 %v2941
        %4213 = vmatprep.subr.bf16.mxu0 0
        %4214 = vmatpush1.bf16.xpose.msra.mxu0 %v2938
        %4215 = vmatprep.subr.bf16.mxu0 0
        %4216 = vmatpush1.bf16.xpose.msra.mxu0 %v2935
        %4217 = vmatprep.subr.bf16.mxu0 0
        %4218 = vmatpush1.bf16.xpose.msra.mxu0 %v2932
        %4219 = vmatprep.subr.bf16.mxu0 0
        %4220 = vmatpush2.bf16.xpose.msra.mxu0 0
        %4221 = vmatprep.subr.bf16.mxu0 0
        %4222 = vmatpush2.bf16.xpose.msra.mxu0 0
        %4223 = vmatprep.subr.bf16.mxu0 0
        %4224 = vmatpush2.bf16.xpose.msra.mxu0 0
        %4225 = vmatprep.subr.bf16.mxu0 0
        %4226 = vmatpush2.bf16.xpose.msra.mxu0 0
        %4227 = vmatprep.subr.bf16.mxu0 0
        %4228 = vmatpush2.bf16.xpose.msra.mxu0 0
        %4229 = vmatprep.subr.bf16.mxu0 0
        %4230 = vmatpush2.bf16.xpose.msra.mxu0 0
        %4231 = vmatprep.subr.bf16.mxu0 0
        %4232 = vmatpush2.bf16.xpose.msra.mxu0 0
        %4233 = vmatprep.subr.bf16.mxu0 0
        %4234 = vmatpush2.bf16.xpose.msra.mxu0 0
        %4235 = vmatprep.mubr.bf16.mxu0 0
        %4236 = vmatmul.mubr.bf16.gmra.mxu0 %v4201
        %v4237 = vpop.f32.mrf.mxu0
        %v4238 = vadd.f32 %v2886, %v4237
        %v4239 = vpop.f32.mrf.mxu0
        %v4240 = vpop.f32.mrf.mxu0
        %v4241 = vpop.f32.mrf.mxu0
        %4242 = vdwg.mxu0
        %v4243 = vmul.f32 %v4238, 0.5
        %v4244 = vmul.f32 %v4238, 0.70710677
        %v4245 = verf.f32.pop %v4244
        %v4246 = vadd.f32 %v4245, 1.0
        %v4247 = vmul.f32 %v4243, %v4246
        %v4248 = vpack.c.bf16 %v4247, %v4247
        %4249 = vmatprep.subr.bf16.mxu0 0
        %4250 = vmatpush1.bf16.xpose.msra.mxu0 0
        %4251 = vmatprep.subr.bf16.mxu0 0
        %4252 = vmatpush1.bf16.xpose.msra.mxu0 0
        %4253 = vmatprep.subr.bf16.mxu0 0
        %4254 = vmatpush1.bf16.xpose.msra.mxu0 0
        %4255 = vmatprep.subr.bf16.mxu0 0
        %4256 = vmatpush1.bf16.xpose.msra.mxu0 0
        %4257 = vmatprep.subr.bf16.mxu0 0
        %4258 = vmatpush1.bf16.xpose.msra.mxu0 0
        %4259 = vmatprep.subr.bf16.mxu0 0
        %4260 = vmatpush1.bf16.xpose.msra.mxu0 0
        %4261 = vmatprep.subr.bf16.mxu0 0
        %4262 = vmatpush1.bf16.xpose.msra.mxu0 %v3016
        %4263 = vmatprep.subr.bf16.mxu0 0
        %4264 = vmatpush1.bf16.xpose.msra.mxu0 %v3015
        %4265 = vmatprep.subr.bf16.mxu0 0
        %4266 = vmatpush2.bf16.xpose.msra.mxu0 0
        %4267 = vmatprep.subr.bf16.mxu0 0
        %4268 = vmatpush2.bf16.xpose.msra.mxu0 0
        %4269 = vmatprep.subr.bf16.mxu0 0
        %4270 = vmatpush2.bf16.xpose.msra.mxu0 0
        %4271 = vmatprep.subr.bf16.mxu0 0
        %4272 = vmatpush2.bf16.xpose.msra.mxu0 0
        %4273 = vmatprep.subr.bf16.mxu0 0
        %4274 = vmatpush2.bf16.xpose.msra.mxu0 0
        %4275 = vmatprep.subr.bf16.mxu0 0
        %4276 = vmatpush2.bf16.xpose.msra.mxu0 0
        %4277 = vmatprep.subr.bf16.mxu0 0
        %4278 = vmatpush2.bf16.xpose.msra.mxu0 0
        %4279 = vmatprep.subr.bf16.mxu0 0
        %4280 = vmatpush2.bf16.xpose.msra.mxu0 0
        %4281 = vmatprep.mubr.bf16.mxu0 0
        %4282 = vmatmul.mubr.bf16.gmra.mxu0 %v4248
        %v4283 = vpop.f32.mrf.mxu0
        %v4284 = vadd.f32 %v3005, %v4283
        %v4285 = vpop.f32.mrf.mxu0
        %v4286 = vpop.f32.mrf.mxu0
        %v4287 = vpop.f32.mrf.mxu0
        %4288 = vdwg.mxu0
        %v4289 = vadd.f32 %v4183, %v4284
        %s4290 = scalar_lea.vmem [#allocation6], 8
        %4291 = vst.msk [vmem:[%s4290] sm:$0xff] %vm1591, %v4289
        %p4292 = scmp.eq.s32.totalorder %s36, 1
        // Predicated region
        $region569: #{tpu_custom_call.1} parent=83 // pred_check
          %p4293 = pneg %p4292
        $region570: #{tpu_custom_call.1} parent=83 // pred_check_branch
          %4295 = sbr.rel (%p4293) target = $region572
        $region571: #{tpu_custom_call.1} parent=83 // pred_region
          %v4296 = vld [vmem:[#allocation6] sm:$0xff]
          %v4297 = vld [vmem:[#allocation6 + $0x8] sm:$0xff]
          %v4298 = vld [vmem:[%s16] sm:$0x1]
          %v4299 = vld [vmem:[%s17] sm:$0x1]
          %v4300 = vsel %vm1591, %v4296, 0.0
          %4301 = vadd.xlane.f32.xlu0 %v4300
          %v4302 = vpop.xlane.xlu0 %4301
          %v4303 = vsel %vm1591, %v4297, 0.0
          %4304 = vadd.xlane.f32.xlu0 %v4303
          %v4305 = vpop.xlane.xlu0 %4304
          %v4306 = vmul.f32 %v4302, %v1595
          %v4307 = vmul.f32 %v4305, %v1595
          %v4308 = vsub.f32 %v4296, %v4306
          %v4309 = vsub.f32 %v4297, %v4307
          %v4310 = vmul.f32 %v4308, %v4308
          %v4311 = vmul.f32 %v4309, %v4309
          %v4312 = vsel %vm1591, %v4310, 0.0
          %4313 = vadd.xlane.f32.xlu0 %v4312
          %v4314 = vpop.xlane.xlu0 %4313
          %v4315 = vsel %vm1591, %v4311, 0.0
          %4316 = vadd.xlane.f32.xlu0 %v4315
          %v4317 = vpop.xlane.xlu0 %4316
          %v4318 = vmul.f32 %v4314, %v1595
          %v4319 = vmul.f32 %v4317, %v1595
          %v4320 = vadd.f32 %v4318, 1e-05
          %v4321 = vadd.f32 %v4319, 1e-05
          %v4322 = vrsqrt.pop %v4320
          %v4323 = vrsqrt.pop %v4321
          %v4324 = vmul.f32 %v4308, %v4322
          %v4325 = vmul.f32 %v4309, %v4323
          %v4327 = vlaneseq
          %v4328 = vshrl.u32 %v4327, 7
          %v4329 = vsub.s32 0, %v4328
          %v4330 = vrot.slane %v4298, %v4329
          %v4332 = vmul.f32 %v4324, %v4330
          %v4333 = vmul.f32 %v4325, %v4330
          %v4335 = vlaneseq
          %v4336 = vshrl.u32 %v4335, 7
          %v4337 = vsub.s32 0, %v4336
          %v4338 = vrot.slane %v4299, %v4337
          %v4340 = vadd.f32 %v4332, %v4338
          %v4341 = vadd.f32 %v4333, %v4338
          %4342 = vst.msk [vmem:[#allocation6] sm:$0xff] %vm1591, %v4340
          %4343 = vst.msk [vmem:[#allocation6 + $0x8] sm:$0xff] %vm1591, %v4341
        $region572: #{tpu_custom_call.1} parent=83 // pred_fallthru
          _
        // Predicated region
        $region573: #{tpu_custom_call.1} parent=83 // pred_check
          %p4344 = pneg %p445
        $region574: #{tpu_custom_call.1} parent=83 // pred_check_branch
          %4346 = sbr.rel (%p4344) target = $region576
        $region575: #{tpu_custom_call.1} parent=83 // pred_region
          %s4348 = ssub.s32 256, 256
          %4349 = vsyncadd [#allocation7], %s4348
          %s4350 = sshll.u32 [#allocation6], 4
          %s4351 = int_to_ptr.vmem [resolvable:$true] %s4350
          %4356 = dma.vmem_to_hbm [thread:$0]  %s4351, 256, %s18, [#allocation7], 128, 128, 8
        $region576: #{tpu_custom_call.1} parent=83 // pred_fallthru
          _
        // Predicated region
        $region577: #{tpu_custom_call.1} parent=83 // pred_check
          %p4357 = pneg %p445
        $region578: #{tpu_custom_call.1} parent=83 // pred_check_branch
          %4359 = sbr.rel (%p4357) target = $region580
        $region579: #{tpu_custom_call.1} parent=83 // pred_region
          %4360 = dma.done [#allocation7], 256
        $region580: #{tpu_custom_call.1} parent=83 // pred_fallthru
          _
      $region84: #{tpu_custom_call.1} parent=5 // pred_fallthru
        _
      %p4361 = scmp.le.s32.totalorder 2, %s31
      // Predicated region
      $region581: #{tpu_custom_call.1} parent=5 // pred_check
        %p4362 = pneg %p4361
      $region582: #{tpu_custom_call.1} parent=5 // pred_check_branch
        %4364 = sbr.rel (%p4362) target = $region584
      $region583: #{tpu_custom_call.1} parent=5 // pred_region
        %s4365 = ssub.s32 %s31, 2
      $region584: #{tpu_custom_call.1} parent=5 // pred_fallthru
        _
    $region6: #{tpu_custom_call.1} parent=1 // loop_footer
      %s35 = sadd.s32 1, %s31
    $region7: #{tpu_custom_call.1} parent=1 // loop_footer_branch
      %30 = sbr.rel target = $region3
    $region8: #{tpu_custom_call.1} parent=1 // loop_exit
      _
    %4366 = vsyncpa [#allocation7], 1
    %s4367 = scalar_lea.sflag [#allocation7], 1
    %4368 = vsyncpa %s4367, 1
  %4369 = vsyncmov [#allocation3]
  %s4370 = vpop.sfrf %4369
  %p4371 = scmp.eq.s32.totalorder %s4370, 0
  %p4372 = pneg %p4371
  %4374 = shalt.err (%p4372)
  %s4375 = scalar_lea.sflag [#allocation3], 1
  %4376 = vsyncmov %s4375
  %s4377 = vpop.sfrf %4376
  %p4378 = scmp.eq.s32.totalorder %s4377, 0
  %p4379 = pneg %p4378
  %4381 = shalt.err (%p4379)
  %s4382 = scalar_lea.sflag [#allocation3], 2
  %4383 = vsyncmov %s4382
  %s4384 = vpop.sfrf %4383
  %p4385 = scmp.eq.s32.totalorder %s4384, 0
  %p4386 = pneg %p4385
  %4388 = shalt.err (%p4386)
  %s4389 = scalar_lea.sflag [#allocation3], 3
  %4390 = vsyncmov %s4389
  %s4391 = vpop.sfrf %4390
  %p4392 = scmp.eq.s32.totalorder %s4391, 0
  %p4393 = pneg %p4392
  %4395 = shalt.err (%p4393)
  %s4396 = scalar_lea.sflag [#allocation3], 4
  %4397 = vsyncmov %s4396
  %s4398 = vpop.sfrf %4397
  %p4399 = scmp.eq.s32.totalorder %s4398, 0
  %p4400 = pneg %p4399
  %4402 = shalt.err (%p4400)
  %s4403 = scalar_lea.sflag [#allocation3], 5
  %4404 = vsyncmov %s4403
  %s4405 = vpop.sfrf %4404
  %p4406 = scmp.eq.s32.totalorder %s4405, 0
  %p4407 = pneg %p4406
  %4409 = shalt.err (%p4407)
  %s4410 = scalar_lea.sflag [#allocation3], 6
  %4411 = vsyncmov %s4410
  %s4412 = vpop.sfrf %4411
  %p4413 = scmp.eq.s32.totalorder %s4412, 0
  %p4414 = pneg %p4413
  %4416 = shalt.err (%p4414)
  %s4417 = scalar_lea.sflag [#allocation3], 7
  %4418 = vsyncmov %s4417
  %s4419 = vpop.sfrf %4418
  %p4420 = scmp.eq.s32.totalorder %s4419, 0
  %p4421 = pneg %p4420
  %4423 = shalt.err (%p4421)
  %s4424 = scalar_lea.sflag [#allocation3], 8
  %4425 = vsyncmov %s4424
  %s4426 = vpop.sfrf %4425
  %p4427 = scmp.eq.s32.totalorder %s4426, 0
  %p4428 = pneg %p4427
  %4430 = shalt.err (%p4428)
  %s4431 = scalar_lea.sflag [#allocation3], 9
  %4432 = vsyncmov %s4431
  %s4433 = vpop.sfrf %4432
  %p4434 = scmp.eq.s32.totalorder %s4433, 0
  %p4435 = pneg %p4434
  %4437 = shalt.err (%p4435)
  %s4438 = scalar_lea.sflag [#allocation3], 10
  %4439 = vsyncmov %s4438
  %s4440 = vpop.sfrf %4439
  %p4441 = scmp.eq.s32.totalorder %s4440, 0
  %p4442 = pneg %p4441
  %4444 = shalt.err (%p4442)
  %s4445 = scalar_lea.sflag [#allocation3], 11
  %4446 = vsyncmov %s4445
  %s4447 = vpop.sfrf %4446
  %p4448 = scmp.eq.s32.totalorder %s4447, 0
  %p4449 = pneg %p4448
  %4451 = shalt.err (%p4449)
  %s4452 = scalar_lea.sflag [#allocation3], 12
  %4453 = vsyncmov %s4452
  %s4454 = vpop.sfrf %4453
  %p4455 = scmp.eq.s32.totalorder %s4454, 0
  %p4456 = pneg %p4455
  %4458 = shalt.err (%p4456)
  %s4459 = scalar_lea.sflag [#allocation3], 13
  %4460 = vsyncmov %s4459
  %s4461 = vpop.sfrf %4460
  %p4462 = scmp.eq.s32.totalorder %s4461, 0
  %p4463 = pneg %p4462
  %4465 = shalt.err (%p4463)
  %s4466 = scalar_lea.sflag [#allocation3], 14
  %4467 = vsyncmov %s4466
  %s4468 = vpop.sfrf %4467
  %p4469 = scmp.eq.s32.totalorder %s4468, 0
  %p4470 = pneg %p4469
  %4472 = shalt.err (%p4470)
  %s4473 = scalar_lea.sflag [#allocation3], 15
  %4474 = vsyncmov %s4473
  %s4475 = vpop.sfrf %4474
  %p4476 = scmp.eq.s32.totalorder %s4475, 0
  %p4477 = pneg %p4476
  %4479 = shalt.err (%p4477)

</llo_original>
